<compile_context>
chip_gen: v5e
topology: v5e:2x2
jax: 0.10.0
libtpu: 0.0.40
codegen_flags: <defaults>
</compile_context>

<pallas_src>
import functools

import jax
import jax.numpy as jnp
from jax.experimental import pallas as pl
from jax.experimental.pallas import tpu as pltpu

PAD_IDX = 0
_MIB = 1024 * 1024


def _round_up(x, m):
    return (x + m - 1) // m * m


def _vmem_capacity_bytes():
    """Physical VMEM for generation-aware budgeting; conservative fallback."""
    try:
        return int(pltpu.get_tpu_info().vmem_capacity_bytes)
    except Exception:
        return 64 * _MIB  # v7x-sized fallback: safe on every generation


def _lstm_recurrence_body(emb_ref, w_ih_ref, w_hh_ref, b_ref,
                          gx_scr, h_scr, c_scr, *, t_total, t_chunk):
    """Shared chunk body. Grid = (batch_tiles [parallel], time_chunks [seq])."""
    tc = pl.program_id(1)

    @pl.when(tc == 0)
    def _():
        h_scr[...] = jnp.zeros_like(h_scr)
        c_scr[...] = jnp.zeros_like(c_scr)

    bt_rows, h_pad = h_scr.shape          # (batch-tile rows, padded hidden)
    w_dtype = w_ih_ref.dtype

    # ---- Phase 1: input projection for the whole chunk, one MXU matmul -----
    gx_scr[...] = jnp.dot(emb_ref[0], w_ih_ref[...],
                          preferred_element_type=jnp.float32) + b_ref[...]
    # TODO(synk): overlap next chunk's Phase 1 with this chunk's recurrence
    #             (manual emb DMA + double-buffered gx) -- not implemented.

    ragged = (t_total % t_chunk) != 0

    # ---- Phase 2: sequential recurrence -------------------------------------
    def step(i, carry):
        row = pl.multiple_of(i * bt_rows, bt_rows)
        gates = gx_scr[pl.ds(row, bt_rows), :] + jnp.dot(
            h_scr[...].astype(w_dtype), w_hh_ref[...],
            preferred_element_type=jnp.float32)
        # PyTorch gate order i, f, g, o; slices are 128-lane aligned.
        i_g = jax.nn.sigmoid(gates[:, 0 * h_pad:1 * h_pad])
        f_g = jax.nn.sigmoid(gates[:, 1 * h_pad:2 * h_pad])
        g_g = jnp.tanh(gates[:, 2 * h_pad:3 * h_pad])
        o_g = jax.nn.sigmoid(gates[:, 3 * h_pad:4 * h_pad])
        c_new = f_g * c_scr[...] + i_g * g_g
        h_new = o_g * jnp.tanh(c_new)
        if ragged:
            # Cheap per-step select so every chunk keeps the static, unrolled
            # loop (no dynamic trip-count fallback for ragged T).
            valid = (tc * t_chunk + i) < t_total
            c_new = jnp.where(valid, c_new, c_scr[...])
            h_new = jnp.where(valid, h_new, h_scr[...])
        c_scr[...] = c_new
        h_scr[...] = h_new
        return carry

    # TODO(synk): hold W_hh staged in the MXU across the loop via
    #             pltpu.matmul_push_rhs / matmul_acc_lhs -- not implemented.
    unroll = t_chunk if t_chunk <= 8 else 8
    jax.lax.fori_loop(0, t_chunk, step, 0, unroll=unroll)
    return tc


def _lstm_fused_kernel(emb_ref, w_ih_ref, w_hh_ref, b_ref, w_fc_ref, b_fc_ref,
                       out_ref, gx_scr, h_scr, c_scr, *, t_total, t_chunk):
    """Recurrence + fc + log_softmax fused (small W_fc path)."""
    tc = _lstm_recurrence_body(emb_ref, w_ih_ref, w_hh_ref, b_ref,
                               gx_scr, h_scr, c_scr,
                               t_total=t_total, t_chunk=t_chunk)

    @pl.when(tc == pl.num_programs(1) - 1)
    def _():
        h = h_scr[...].astype(w_fc_ref.dtype)
        scores = jnp.dot(h, w_fc_ref[...],
                         preferred_element_type=jnp.float32) + b_fc_ref[...]
        m = jnp.max(scores, axis=1, keepdims=True)
        z = scores - m
        lse = jnp.log(jnp.sum(jnp.exp(z), axis=1, keepdims=True))
        out_ref[...] = z - lse


def _lstm_recurrence_kernel(emb_ref, w_ih_ref, w_hh_ref, b_ref, h_out_ref,
                            gx_scr, h_scr, c_scr, *, t_total, t_chunk):
    """Recurrence only (large W_fc path); final h written on last chunk."""
    tc = _lstm_recurrence_body(emb_ref, w_ih_ref, w_hh_ref, b_ref,
                               gx_scr, h_scr, c_scr,
                               t_total=t_total, t_chunk=t_chunk)

    @pl.when(tc == pl.num_programs(1) - 1)
    def _():
        h_out_ref[...] = h_scr[...]


def _fc_logsoftmax_kernel(h_ref, w_fc_ref, b_fc_ref, out_ref):
    h = h_ref[...].astype(w_fc_ref.dtype)
    scores = jnp.dot(h, w_fc_ref[...],
                     preferred_element_type=jnp.float32) + b_fc_ref[...]
    m = jnp.max(scores, axis=1, keepdims=True)
    z = scores - m
    lse = jnp.log(jnp.sum(jnp.exp(z), axis=1, keepdims=True))
    out_ref[...] = z - lse


@functools.partial(jax.jit, static_argnames=("weight_dtype", "time_chunk"))
def lstm_lm_forward(seqs, params, *, weight_dtype=jnp.bfloat16, time_chunk=None):
    """seqs: int32 [B, T] -> log_probs float32 [B, n_class].

    weight_dtype=bf16 (default) keeps f32 MXU accumulation and f32 gate/state
    math; pass jnp.float32 for bit-tight numerics vs. an f32 reference.
    """
    emb_table = params["embedding"]          # [V, E]
    w_ih = params["w_ih"]                    # [E, 4H]
    w_hh = params["w_hh"]                    # [H, 4H]
    b = params["b"]                          # [1, 4H]
    w_fc = params["w_fc"]                    # [H, C]
    b_fc = params["b_fc"]                    # [1, C]

    B, T = seqs.shape
    E = emb_table.shape[1]
    H = w_hh.shape[0]
    C = w_fc.shape[1]

    # ---- alignment padding --------------------------------------------------
    H_pad = _round_up(H, 128)                # lane-aligned per-gate slabs
    C_pad = _round_up(C, 128)                # lane-dense fc output
    w_bytes = jnp.dtype(weight_dtype).itemsize

    # Batch tiling: >= 2 tiles of >= 64 rows once batch allows (so v7x's two
    # TensorCores both get work on the "parallel" axis); 256-row tiles for very
    # large batch fill the 256-wide v6e/v7x MXU.
    B_pad = _round_up(B, 8)
    if B_pad <= 64:
        Bt = B_pad
    elif B_pad <= 128:
        B_pad, Bt = 128, 64
    elif B_pad <= 512:
        B_pad = _round_up(B_pad, 128)
        Bt = 128
    else:
        B_pad = _round_up(B_pad, 256)
        Bt = 256
    n_btiles = B_pad // Bt

    # ---- VMEM budget -> time_chunk + explicit vmem limit ---------------------
    fc_resident = H_pad * C_pad * w_bytes + C_pad * 4
    fuse_fc = fc_resident <= 2 * _MIB        # merge fc+log_softmax into kernel 1

    weights_resident = (E + H_pad) * 4 * H_pad * w_bytes + 4 * H_pad * 4
    if fuse_fc:
        weights_resident += fc_resident
    state_bytes = 2 * Bt * H_pad * 4
    out_bytes = 2 * Bt * (C_pad if fuse_fc else H_pad) * 4
    fixed = weights_resident + state_bytes + out_bytes
    # Per-timestep VMEM: f32 gate pre-activations (single scratch) + the
    # double-buffered embedding chunk rows.
    per_step = Bt * 4 * H_pad * 4 + 2 * Bt * E * w_bytes

    vmem_phys = _vmem_capacity_bytes()
    vmem_target = max(24 * _MIB, min(int(vmem_phys * 0.6), 80 * _MIB))
    if time_chunk is None:
        budget = vmem_target - fixed - 2 * _MIB
        time_chunk = max(1, min(T, budget // per_step))
    Tc = int(max(1, min(T, time_chunk)))
    n_tchunks = pl.cdiv(T, Tc)
    T_pad = n_tchunks * Tc

    vmem_limit = fixed + Tc * per_step + 6 * _MIB
    vmem_limit = int(min(max(vmem_limit, 32 * _MIB), vmem_phys * 0.85))

    # ---- weight layout: pad each gate block H -> H_pad (zeros) --------------
    def pad_gate_cols(w):                    # [..., 4H] -> [..., 4H_pad]
        lead = w.shape[:-1]
        w4 = w.reshape(lead + (4, H))
        w4 = jnp.pad(w4, [(0, 0)] * len(lead) + [(0, 0), (0, H_pad - H)])
        return w4.reshape(lead + (4 * H_pad,))

    w_ih_p = pad_gate_cols(w_ih).astype(weight_dtype)                  # [E, 4H_pad]
    w_hh_p = pad_gate_cols(
        jnp.pad(w_hh, ((0, H_pad - H), (0, 0)))).astype(weight_dtype)  # [H_pad, 4H_pad]
    b_p = pad_gate_cols(b).astype(jnp.float32)                         # [1, 4H_pad]
    w_fc_p = jnp.pad(w_fc, ((0, H_pad - H), (0, C_pad - C))).astype(weight_dtype)
    # Padded classes get a huge negative bias so log_softmax ignores them.
    b_fc_p = jnp.pad(b_fc, ((0, 0), (0, C_pad - C)),
                     constant_values=-1e30).astype(jnp.float32)

    # ---- embedding lookup + dropout(p=0) identity (XLA glue) ----------------
    embs = jnp.take(emb_table, seqs, axis=0)                           # [B, T, E]
    embs = jnp.pad(embs, ((0, B_pad - B), (0, T_pad - T), (0, 0)))
    # Lay out as [n_btiles, n_tchunks*Tc*Bt, E]: each (bt, t) block is one
    # contiguous, sublane-dense [Tc*Bt, E] slab (time-major within the chunk).
    embs = embs.reshape(n_btiles, Bt, n_tchunks, Tc, E)
    embs = jnp.transpose(embs, (0, 2, 3, 1, 4))
    embs = embs.reshape(n_btiles, n_tchunks * Tc * Bt, E).astype(weight_dtype)

    def resident_spec(shape):
        # Constant index_map -> single buffer; double-buffering is VMEM waste.
        return pl.BlockSpec(shape, lambda bt, t: (0, 0),
                            pipeline_mode=pl.Buffered(1))

    common_in_specs = [
        pl.BlockSpec((1, Tc * Bt, E), lambda bt, t: (bt, t, 0)),       # emb chunk
        resident_spec((E, 4 * H_pad)),                                  # W_ih
        resident_spec((H_pad, 4 * H_pad)),                              # W_hh
        resident_spec((1, 4 * H_pad)),                                  # bias
    ]
    scratches = [
        pltpu.VMEM((Tc * Bt, 4 * H_pad), jnp.float32),   # gate pre-activations
        pltpu.VMEM((Bt, H_pad), jnp.float32),            # h state
        pltpu.VMEM((Bt, H_pad), jnp.float32),            # c state
    ]
    kernel1_params = pltpu.CompilerParams(
        dimension_semantics=("parallel", "arbitrary"),
        vmem_limit_bytes=vmem_limit,
    )

    if fuse_fc:
        out_pad = pl.pallas_call(
            functools.partial(_lstm_fused_kernel, t_total=T, t_chunk=Tc),
            out_shape=jax.ShapeDtypeStruct((B_pad, C_pad), jnp.float32),
            grid_spec=pltpu.PrefetchScalarGridSpec(
                num_scalar_prefetch=0,
                grid=(n_btiles, n_tchunks),
                in_specs=common_in_specs + [
                    resident_spec((H_pad, C_pad)),                      # W_fc
                    resident_spec((1, C_pad)),                          # b_fc
                ],
                out_specs=pl.BlockSpec((Bt, C_pad), lambda bt, t: (bt, 0)),
                scratch_shapes=scratches,
            ),
            compiler_params=kernel1_params,
        )(embs, w_ih_p, w_hh_p, b_p, w_fc_p, b_fc_p)
        return out_pad[:B, :C]

    # ---- large-W_fc path: keep fc out of VMEM during the recurrence ---------
    h_final = pl.pallas_call(
        functools.partial(_lstm_recurrence_kernel, t_total=T, t_chunk=Tc),
        out_shape=jax.ShapeDtypeStruct((B_pad, H_pad), jnp.float32),
        grid_spec=pltpu.PrefetchScalarGridSpec(
            num_scalar_prefetch=0,
            grid=(n_btiles, n_tchunks),
            in_specs=common_in_specs,
            out_specs=pl.BlockSpec((Bt, H_pad), lambda bt, t: (bt, 0)),
            scratch_shapes=scratches,
        ),
        compiler_params=kernel1_params,
    )(embs, w_ih_p, w_hh_p, b_p)

    k2_limit = int(min(max(fc_resident + 4 * Bt * (H_pad + C_pad) * 4 + 4 * _MIB,
                           32 * _MIB), vmem_phys * 0.85))
    out_pad = pl.pallas_call(
        _fc_logsoftmax_kernel,
        out_shape=jax.ShapeDtypeStruct((B_pad, C_pad), jnp.float32),
        grid_spec=pltpu.PrefetchScalarGridSpec(
            num_scalar_prefetch=0,
            grid=(n_btiles,),
            in_specs=[
                pl.BlockSpec((Bt, H_pad), lambda bt: (bt, 0)),
                pl.BlockSpec((H_pad, C_pad), lambda bt: (0, 0),
                             pipeline_mode=pl.Buffered(1)),
                pl.BlockSpec((1, C_pad), lambda bt: (0, 0),
                             pipeline_mode=pl.Buffered(1)),
            ],
            out_specs=pl.BlockSpec((Bt, C_pad), lambda bt: (bt, 0)),
        ),
        compiler_params=pltpu.CompilerParams(
            dimension_semantics=("parallel",),
            vmem_limit_bytes=k2_limit,
        ),
    )(h_final, w_fc_p, b_fc_p)
    return out_pad[:B, :C]


def init_params(key, vocab_size, n_class, emb_dim, hid):
    ks = jax.random.split(key, 7)
    emb = jax.random.normal(ks[0], (vocab_size, emb_dim), jnp.float32) * 0.1
    emb = emb.at[PAD_IDX].set(0.0)  # nn.Embedding zeroes the padding_idx row
    # PyTorch layouts: weight_ih [4H, E], weight_hh [4H, H]; store transposed.
    w_ih = jax.random.normal(ks[1], (emb_dim, 4 * hid), jnp.float32) * 0.1
    w_hh = jax.random.normal(ks[2], (hid, 4 * hid), jnp.float32) * 0.1
    b_ih = jax.random.normal(ks[3], (4 * hid,), jnp.float32) * 0.1
    b_hh = jax.random.normal(ks[4], (4 * hid,), jnp.float32) * 0.1
    w_fc = jax.random.normal(ks[5], (hid, n_class), jnp.float32) * 0.1
    b_fc = jax.random.normal(ks[6], (n_class,), jnp.float32) * 0.1
    return {
        "embedding": emb,
        "w_ih": w_ih,
        "w_hh": w_hh,
        "b": (b_ih + b_hh)[None, :],
        "w_fc": w_fc,
        "b_fc": b_fc[None, :],
    }


def reference_forward(seqs, params):
    """Pure-JAX reference matching the PyTorch semantics."""
    embs = jnp.take(params["embedding"], seqs, axis=0)  # [B, T, E]
    B, T, E = embs.shape
    H = params["w_hh"].shape[0]

    def step(carry, x_t):
        h, c = carry
        gates = x_t @ params["w_ih"] + h @ params["w_hh"] + params["b"]
        i = jax.nn.sigmoid(gates[:, 0 * H:1 * H])
        f = jax.nn.sigmoid(gates[:, 1 * H:2 * H])
        g = jnp.tanh(gates[:, 2 * H:3 * H])
        o = jax.nn.sigmoid(gates[:, 3 * H:4 * H])
        c = f * c + i * g
        h = o * jnp.tanh(c)
        return (h, c), None

    h0 = jnp.zeros((B, H), jnp.float32)
    (h, _), _ = jax.lax.scan(step, (h0, h0), jnp.transpose(embs, (1, 0, 2)))
    scores = h @ params["w_fc"] + params["b_fc"]
    return jax.nn.log_softmax(scores, axis=1)


if __name__ == "__main__":
    key = jax.random.PRNGKey(0)
    vocab_size, n_class, emb_dim, hid = 50, 16, 32, 64
    batch, seq_len = 2, 8

    pkey, skey = jax.random.split(key)
    params = init_params(pkey, vocab_size, n_class, emb_dim, hid)
    seqs = jax.random.randint(skey, (batch, seq_len), 0, vocab_size, jnp.int32)

    ref = reference_forward(seqs, params)

    # Exact-dtype path: tight check against the f32 reference.
    out_f32 = jax.block_until_ready(
        lstm_lm_forward(seqs, params, weight_dtype=jnp.float32))
    assert out_f32.shape == (batch, n_class)
    assert jnp.allclose(out_f32, ref, rtol=1e-4, atol=1e-4), "f32 mismatch vs reference"

    # Default bf16-weight fast path (f32 accumulation): loose check.
    out_bf16 = jax.block_until_ready(lstm_lm_forward(seqs, params))
    assert out_bf16.shape == (batch, n_class)
    assert bool(jnp.all(jnp.isfinite(out_bf16)))
    assert jnp.allclose(out_bf16, ref, rtol=0.0, atol=0.15), "bf16 drifted too far"

    print("KERNEL_OK")
</pallas_src>

<mosaic_0001>
module attributes {stable_mosaic.version = 11 : i64} {
  func.func @_lstm_fused_kernel(%arg0: i32, %arg1: i32, %arg2: memref<1x64x32xf32, #tpu.memory_space<vmem>>, %arg3: memref<32x512xf32, #tpu.memory_space<vmem>>, %arg4: memref<128x512xf32, #tpu.memory_space<vmem>>, %arg5: memref<1x512xf32, #tpu.memory_space<vmem>>, %arg6: memref<128x128xf32, #tpu.memory_space<vmem>>, %arg7: memref<1x128xf32, #tpu.memory_space<vmem>>, %arg8: memref<8x128xf32, #tpu.memory_space<vmem>>, %arg9: memref<64x512xf32, #tpu.memory_space<vmem>>, %arg10: memref<8x128xf32, #tpu.memory_space<vmem>>, %arg11: memref<8x128xf32, #tpu.memory_space<vmem>>) attributes {dimension_semantics = [#tpu.dimension_semantics<parallel>, #tpu.dimension_semantics<arbitrary>], iteration_bounds = array<i64: 1, 1>, scalar_prefetch = 0 : i64, scratch_operands = 3 : i64, tpu.core_type = #tpu.core_type<tc>, window_params = [{transform_indices = @transform_0, window_bounds = array<i64: 1, 64, 32>}, {pipeline_mode = #tpu.pipeline_mode<synchronous>, transform_indices = @transform_1, window_bounds = array<i64: 32, 512>}, {pipeline_mode = #tpu.pipeline_mode<synchronous>, transform_indices = @transform_2, window_bounds = array<i64: 128, 512>}, {pipeline_mode = #tpu.pipeline_mode<synchronous>, transform_indices = @transform_3, window_bounds = array<i64: 1, 512>}, {pipeline_mode = #tpu.pipeline_mode<synchronous>, transform_indices = @transform_4, window_bounds = array<i64: 128, 128>}, {pipeline_mode = #tpu.pipeline_mode<synchronous>, transform_indices = @transform_5, window_bounds = array<i64: 1, 128>}, {transform_indices = @transform_6, window_bounds = array<i64: 8, 128>}]} {
    %c0_i32 = arith.constant 0 : i32
    %0 = arith.cmpi eq, %arg1, %c0_i32 : i32
    %1 = arith.extui %0 : i1 to i32
    %c0_i32_0 = arith.constant 0 : i32
    %2 = arith.cmpi ne, %1, %c0_i32_0 : i32
    scf.if %2 {
      %cst_140 = arith.constant 0.000000e+00 : f32
      %302 = vector.broadcast %cst_140 : f32 to vector<8x128xf32>
      %c0_141 = arith.constant 0 : index
      %c0_142 = arith.constant 0 : index
      %303 = vector.load %arg10[%c0_141, %c0_142] : memref<8x128xf32, #tpu.memory_space<vmem>>, vector<8x128xf32>
      tpu.vector_store %arg10[%c0_141, %c0_142], %302 {strides = array<i32>} : memref<8x128xf32, #tpu.memory_space<vmem>>, vector<8x128xf32>,
      %cst_143 = arith.constant 0.000000e+00 : f32
      %304 = vector.broadcast %cst_143 : f32 to vector<8x128xf32>
      %c0_144 = arith.constant 0 : index
      %c0_145 = arith.constant 0 : index
      %305 = vector.load %arg11[%c0_144, %c0_145] : memref<8x128xf32, #tpu.memory_space<vmem>>, vector<8x128xf32>
      tpu.vector_store %arg11[%c0_144, %c0_145], %304 {strides = array<i32>} : memref<8x128xf32, #tpu.memory_space<vmem>>, vector<8x128xf32>,
    } else {
    }
    %c0 = arith.constant 0 : index
    %c0_1 = arith.constant 0 : index
    %c0_2 = arith.constant 0 : index
    %3 = vector.load %arg2[%c0, %c0_1, %c0_2] : memref<1x64x32xf32, #tpu.memory_space<vmem>>, vector<1x64x32xf32>
    %4 = vector.shape_cast %3 : vector<1x64x32xf32> to vector<64x32xf32>
    %c0_3 = arith.constant 0 : index
    %c0_4 = arith.constant 0 : index
    %5 = vector.load %arg3[%c0_3, %c0_4] : memref<32x512xf32, #tpu.memory_space<vmem>>, vector<32x512xf32>
    %cst = arith.constant dense<0.000000e+00> : vector<64x512xf32>
    %6 = tpu.matmul %4, %5, %cst {dimension_numbers = #tpu.dot_dimension_numbers<[1], [0], [0], [1], [0, 0, 1, 1], [], []>} : vector<64x32xf32>, vector<32x512xf32>, vector<64x512xf32> -> vector<64x512xf32>
    %c0_5 = arith.constant 0 : index
    %c0_6 = arith.constant 0 : index
    %7 = vector.load %arg5[%c0_5, %c0_6] : memref<1x512xf32, #tpu.memory_space<vmem>>, vector<1x512xf32>
    %8 = vector.broadcast %7 : vector<1x512xf32> to vector<64x512xf32>
    %9 = arith.addf %6, %8 : vector<64x512xf32>
    %c0_7 = arith.constant 0 : index
    %c0_8 = arith.constant 0 : index
    %10 = vector.load %arg9[%c0_7, %c0_8] : memref<64x512xf32, #tpu.memory_space<vmem>>, vector<64x512xf32>
    tpu.vector_store %arg9[%c0_7, %c0_8], %9 {strides = array<i32>} : memref<64x512xf32, #tpu.memory_space<vmem>>, vector<64x512xf32>,
    %c0_i32_9 = arith.constant 0 : i32
    %c8_i32 = arith.constant 8 : i32
    %11 = arith.muli %c0_i32_9, %c8_i32 : i32
    %12 = tpu.assume_multiple %11, 8 : i32
    %13 = arith.index_cast %12 : i32 to index
    %c0_10 = arith.constant 0 : index
    %14 = vector.load %arg9[%13, %c0_10] : memref<64x512xf32, #tpu.memory_space<vmem>>, vector<8x512xf32>
    %c0_11 = arith.constant 0 : index
    %c0_12 = arith.constant 0 : index
    %15 = vector.load %arg10[%c0_11, %c0_12] : memref<8x128xf32, #tpu.memory_space<vmem>>, vector<8x128xf32>
    %c0_13 = arith.constant 0 : index
    %c0_14 = arith.constant 0 : index
    %16 = vector.load %arg4[%c0_13, %c0_14] : memref<128x512xf32, #tpu.memory_space<vmem>>, vector<128x512xf32>
    %cst_15 = arith.constant dense<0.000000e+00> : vector<8x512xf32>
    %17 = tpu.matmul %15, %16, %cst_15 {dimension_numbers = #tpu.dot_dimension_numbers<[1], [0], [0], [1], [0, 0, 1, 1], [], []>} : vector<8x128xf32>, vector<128x512xf32>, vector<8x512xf32> -> vector<8x512xf32>
    %18 = arith.addf %14, %17 : vector<8x512xf32>
    %19 = vector.extract_strided_slice %18 {offsets = [0, 0], sizes = [8, 128], strides = [1, 1]} : vector<8x512xf32> to vector<8x128xf32>
    %20 = arith.negf %19 : vector<8x128xf32>
    %21 = math.exp %20 : vector<8x128xf32>
    %cst_16 = arith.constant 1.000000e+00 : f32
    %22 = vector.broadcast %cst_16 : f32 to vector<8x128xf32>
    %23 = arith.addf %22, %21 : vector<8x128xf32>
    %24 = arith.divf %22, %23 : vector<8x128xf32>
    %25 = vector.extract_strided_slice %18 {offsets = [0, 128], sizes = [8, 128], strides = [1, 1]} : vector<8x512xf32> to vector<8x128xf32>
    %26 = arith.negf %25 : vector<8x128xf32>
    %27 = math.exp %26 : vector<8x128xf32>
    %cst_17 = arith.constant 1.000000e+00 : f32
    %28 = vector.broadcast %cst_17 : f32 to vector<8x128xf32>
    %29 = arith.addf %28, %27 : vector<8x128xf32>
    %30 = arith.divf %28, %29 : vector<8x128xf32>
    %31 = vector.extract_strided_slice %18 {offsets = [0, 256], sizes = [8, 128], strides = [1, 1]} : vector<8x512xf32> to vector<8x128xf32>
    %32 = math.tanh %31 : vector<8x128xf32>
    %33 = vector.extract_strided_slice %18 {offsets = [0, 384], sizes = [8, 128], strides = [1, 1]} : vector<8x512xf32> to vector<8x128xf32>
    %34 = arith.negf %33 : vector<8x128xf32>
    %35 = math.exp %34 : vector<8x128xf32>
    %cst_18 = arith.constant 1.000000e+00 : f32
    %36 = vector.broadcast %cst_18 : f32 to vector<8x128xf32>
    %37 = arith.addf %36, %35 : vector<8x128xf32>
    %38 = arith.divf %36, %37 : vector<8x128xf32>
    %c0_19 = arith.constant 0 : index
    %c0_20 = arith.constant 0 : index
    %39 = vector.load %arg11[%c0_19, %c0_20] : memref<8x128xf32, #tpu.memory_space<vmem>>, vector<8x128xf32>
    %40 = arith.mulf %30, %39 : vector<8x128xf32>
    %41 = arith.mulf %24, %32 : vector<8x128xf32>
    %42 = arith.addf %40, %41 : vector<8x128xf32>
    %43 = math.tanh %42 : vector<8x128xf32>
    %44 = arith.mulf %38, %43 : vector<8x128xf32>
    %c0_21 = arith.constant 0 : index
    %c0_22 = arith.constant 0 : index
    %45 = vector.load %arg11[%c0_21, %c0_22] : memref<8x128xf32, #tpu.memory_space<vmem>>, vector<8x128xf32>
    tpu.vector_store %arg11[%c0_21, %c0_22], %42 {strides = array<i32>} : memref<8x128xf32, #tpu.memory_space<vmem>>, vector<8x128xf32>,
    %c0_23 = arith.constant 0 : index
    %c0_24 = arith.constant 0 : index
    %46 = vector.load %arg10[%c0_23, %c0_24] : memref<8x128xf32, #tpu.memory_space<vmem>>, vector<8x128xf32>
    tpu.vector_store %arg10[%c0_23, %c0_24], %44 {strides = array<i32>} : memref<8x128xf32, #tpu.memory_space<vmem>>, vector<8x128xf32>,
    %c1_i32 = arith.constant 1 : i32
    %c8_i32_25 = arith.constant 8 : i32
    %47 = arith.muli %c1_i32, %c8_i32_25 : i32
    %48 = tpu.assume_multiple %47, 8 : i32
    %49 = arith.index_cast %48 : i32 to index
    %c0_26 = arith.constant 0 : index
    %50 = vector.load %arg9[%49, %c0_26] : memref<64x512xf32, #tpu.memory_space<vmem>>, vector<8x512xf32>
    %c0_27 = arith.constant 0 : index
    %c0_28 = arith.constant 0 : index
    %51 = vector.load %arg10[%c0_27, %c0_28] : memref<8x128xf32, #tpu.memory_space<vmem>>, vector<8x128xf32>
    %c0_29 = arith.constant 0 : index
    %c0_30 = arith.constant 0 : index
    %52 = vector.load %arg4[%c0_29, %c0_30] : memref<128x512xf32, #tpu.memory_space<vmem>>, vector<128x512xf32>
    %cst_31 = arith.constant dense<0.000000e+00> : vector<8x512xf32>
    %53 = tpu.matmul %51, %52, %cst_31 {dimension_numbers = #tpu.dot_dimension_numbers<[1], [0], [0], [1], [0, 0, 1, 1], [], []>} : vector<8x128xf32>, vector<128x512xf32>, vector<8x512xf32> -> vector<8x512xf32>
    %54 = arith.addf %50, %53 : vector<8x512xf32>
    %55 = vector.extract_strided_slice %54 {offsets = [0, 0], sizes = [8, 128], strides = [1, 1]} : vector<8x512xf32> to vector<8x128xf32>
    %56 = arith.negf %55 : vector<8x128xf32>
    %57 = math.exp %56 : vector<8x128xf32>
    %cst_32 = arith.constant 1.000000e+00 : f32
    %58 = vector.broadcast %cst_32 : f32 to vector<8x128xf32>
    %59 = arith.addf %58, %57 : vector<8x128xf32>
    %60 = arith.divf %58, %59 : vector<8x128xf32>
    %61 = vector.extract_strided_slice %54 {offsets = [0, 128], sizes = [8, 128], strides = [1, 1]} : vector<8x512xf32> to vector<8x128xf32>
    %62 = arith.negf %61 : vector<8x128xf32>
    %63 = math.exp %62 : vector<8x128xf32>
    %cst_33 = arith.constant 1.000000e+00 : f32
    %64 = vector.broadcast %cst_33 : f32 to vector<8x128xf32>
    %65 = arith.addf %64, %63 : vector<8x128xf32>
    %66 = arith.divf %64, %65 : vector<8x128xf32>
    %67 = vector.extract_strided_slice %54 {offsets = [0, 256], sizes = [8, 128], strides = [1, 1]} : vector<8x512xf32> to vector<8x128xf32>
    %68 = math.tanh %67 : vector<8x128xf32>
    %69 = vector.extract_strided_slice %54 {offsets = [0, 384], sizes = [8, 128], strides = [1, 1]} : vector<8x512xf32> to vector<8x128xf32>
    %70 = arith.negf %69 : vector<8x128xf32>
    %71 = math.exp %70 : vector<8x128xf32>
    %cst_34 = arith.constant 1.000000e+00 : f32
    %72 = vector.broadcast %cst_34 : f32 to vector<8x128xf32>
    %73 = arith.addf %72, %71 : vector<8x128xf32>
    %74 = arith.divf %72, %73 : vector<8x128xf32>
    %c0_35 = arith.constant 0 : index
    %c0_36 = arith.constant 0 : index
    %75 = vector.load %arg11[%c0_35, %c0_36] : memref<8x128xf32, #tpu.memory_space<vmem>>, vector<8x128xf32>
    %76 = arith.mulf %66, %75 : vector<8x128xf32>
    %77 = arith.mulf %60, %68 : vector<8x128xf32>
    %78 = arith.addf %76, %77 : vector<8x128xf32>
    %79 = math.tanh %78 : vector<8x128xf32>
    %80 = arith.mulf %74, %79 : vector<8x128xf32>
    %c0_37 = arith.constant 0 : index
    %c0_38 = arith.constant 0 : index
    %81 = vector.load %arg11[%c0_37, %c0_38] : memref<8x128xf32, #tpu.memory_space<vmem>>, vector<8x128xf32>
    tpu.vector_store %arg11[%c0_37, %c0_38], %78 {strides = array<i32>} : memref<8x128xf32, #tpu.memory_space<vmem>>, vector<8x128xf32>,
    %c0_39 = arith.constant 0 : index
    %c0_40 = arith.constant 0 : index
    %82 = vector.load %arg10[%c0_39, %c0_40] : memref<8x128xf32, #tpu.memory_space<vmem>>, vector<8x128xf32>
    tpu.vector_store %arg10[%c0_39, %c0_40], %80 {strides = array<i32>} : memref<8x128xf32, #tpu.memory_space<vmem>>, vector<8x128xf32>,
    %c2_i32 = arith.constant 2 : i32
    %c8_i32_41 = arith.constant 8 : i32
    %83 = arith.muli %c2_i32, %c8_i32_41 : i32
    %84 = tpu.assume_multiple %83, 8 : i32
    %85 = arith.index_cast %84 : i32 to index
    %c0_42 = arith.constant 0 : index
    %86 = vector.load %arg9[%85, %c0_42] : memref<64x512xf32, #tpu.memory_space<vmem>>, vector<8x512xf32>
    %c0_43 = arith.constant 0 : index
    %c0_44 = arith.constant 0 : index
    %87 = vector.load %arg10[%c0_43, %c0_44] : memref<8x128xf32, #tpu.memory_space<vmem>>, vector<8x128xf32>
    %c0_45 = arith.constant 0 : index
    %c0_46 = arith.constant 0 : index
    %88 = vector.load %arg4[%c0_45, %c0_46] : memref<128x512xf32, #tpu.memory_space<vmem>>, vector<128x512xf32>
    %cst_47 = arith.constant dense<0.000000e+00> : vector<8x512xf32>
    %89 = tpu.matmul %87, %88, %cst_47 {dimension_numbers = #tpu.dot_dimension_numbers<[1], [0], [0], [1], [0, 0, 1, 1], [], []>} : vector<8x128xf32>, vector<128x512xf32>, vector<8x512xf32> -> vector<8x512xf32>
    %90 = arith.addf %86, %89 : vector<8x512xf32>
    %91 = vector.extract_strided_slice %90 {offsets = [0, 0], sizes = [8, 128], strides = [1, 1]} : vector<8x512xf32> to vector<8x128xf32>
    %92 = arith.negf %91 : vector<8x128xf32>
    %93 = math.exp %92 : vector<8x128xf32>
    %cst_48 = arith.constant 1.000000e+00 : f32
    %94 = vector.broadcast %cst_48 : f32 to vector<8x128xf32>
    %95 = arith.addf %94, %93 : vector<8x128xf32>
    %96 = arith.divf %94, %95 : vector<8x128xf32>
    %97 = vector.extract_strided_slice %90 {offsets = [0, 128], sizes = [8, 128], strides = [1, 1]} : vector<8x512xf32> to vector<8x128xf32>
    %98 = arith.negf %97 : vector<8x128xf32>
    %99 = math.exp %98 : vector<8x128xf32>
    %cst_49 = arith.constant 1.000000e+00 : f32
    %100 = vector.broadcast %cst_49 : f32 to vector<8x128xf32>
    %101 = arith.addf %100, %99 : vector<8x128xf32>
    %102 = arith.divf %100, %101 : vector<8x128xf32>
    %103 = vector.extract_strided_slice %90 {offsets = [0, 256], sizes = [8, 128], strides = [1, 1]} : vector<8x512xf32> to vector<8x128xf32>
    %104 = math.tanh %103 : vector<8x128xf32>
    %105 = vector.extract_strided_slice %90 {offsets = [0, 384], sizes = [8, 128], strides = [1, 1]} : vector<8x512xf32> to vector<8x128xf32>
    %106 = arith.negf %105 : vector<8x128xf32>
    %107 = math.exp %106 : vector<8x128xf32>
    %cst_50 = arith.constant 1.000000e+00 : f32
    %108 = vector.broadcast %cst_50 : f32 to vector<8x128xf32>
    %109 = arith.addf %108, %107 : vector<8x128xf32>
    %110 = arith.divf %108, %109 : vector<8x128xf32>
    %c0_51 = arith.constant 0 : index
    %c0_52 = arith.constant 0 : index
    %111 = vector.load %arg11[%c0_51, %c0_52] : memref<8x128xf32, #tpu.memory_space<vmem>>, vector<8x128xf32>
    %112 = arith.mulf %102, %111 : vector<8x128xf32>
    %113 = arith.mulf %96, %104 : vector<8x128xf32>
    %114 = arith.addf %112, %113 : vector<8x128xf32>
    %115 = math.tanh %114 : vector<8x128xf32>
    %116 = arith.mulf %110, %115 : vector<8x128xf32>
    %c0_53 = arith.constant 0 : index
    %c0_54 = arith.constant 0 : index
    %117 = vector.load %arg11[%c0_53, %c0_54] : memref<8x128xf32, #tpu.memory_space<vmem>>, vector<8x128xf32>
    tpu.vector_store %arg11[%c0_53, %c0_54], %114 {strides = array<i32>} : memref<8x128xf32, #tpu.memory_space<vmem>>, vector<8x128xf32>,
    %c0_55 = arith.constant 0 : index
    %c0_56 = arith.constant 0 : index
    %118 = vector.load %arg10[%c0_55, %c0_56] : memref<8x128xf32, #tpu.memory_space<vmem>>, vector<8x128xf32>
    tpu.vector_store %arg10[%c0_55, %c0_56], %116 {strides = array<i32>} : memref<8x128xf32, #tpu.memory_space<vmem>>, vector<8x128xf32>,
    %c3_i32 = arith.constant 3 : i32
    %c8_i32_57 = arith.constant 8 : i32
    %119 = arith.muli %c3_i32, %c8_i32_57 : i32
    %120 = tpu.assume_multiple %119, 8 : i32
    %121 = arith.index_cast %120 : i32 to index
    %c0_58 = arith.constant 0 : index
    %122 = vector.load %arg9[%121, %c0_58] : memref<64x512xf32, #tpu.memory_space<vmem>>, vector<8x512xf32>
    %c0_59 = arith.constant 0 : index
    %c0_60 = arith.constant 0 : index
    %123 = vector.load %arg10[%c0_59, %c0_60] : memref<8x128xf32, #tpu.memory_space<vmem>>, vector<8x128xf32>
    %c0_61 = arith.constant 0 : index
    %c0_62 = arith.constant 0 : index
    %124 = vector.load %arg4[%c0_61, %c0_62] : memref<128x512xf32, #tpu.memory_space<vmem>>, vector<128x512xf32>
    %cst_63 = arith.constant dense<0.000000e+00> : vector<8x512xf32>
    %125 = tpu.matmul %123, %124, %cst_63 {dimension_numbers = #tpu.dot_dimension_numbers<[1], [0], [0], [1], [0, 0, 1, 1], [], []>} : vector<8x128xf32>, vector<128x512xf32>, vector<8x512xf32> -> vector<8x512xf32>
    %126 = arith.addf %122, %125 : vector<8x512xf32>
    %127 = vector.extract_strided_slice %126 {offsets = [0, 0], sizes = [8, 128], strides = [1, 1]} : vector<8x512xf32> to vector<8x128xf32>
    %128 = arith.negf %127 : vector<8x128xf32>
    %129 = math.exp %128 : vector<8x128xf32>
    %cst_64 = arith.constant 1.000000e+00 : f32
    %130 = vector.broadcast %cst_64 : f32 to vector<8x128xf32>
    %131 = arith.addf %130, %129 : vector<8x128xf32>
    %132 = arith.divf %130, %131 : vector<8x128xf32>
    %133 = vector.extract_strided_slice %126 {offsets = [0, 128], sizes = [8, 128], strides = [1, 1]} : vector<8x512xf32> to vector<8x128xf32>
    %134 = arith.negf %133 : vector<8x128xf32>
    %135 = math.exp %134 : vector<8x128xf32>
    %cst_65 = arith.constant 1.000000e+00 : f32
    %136 = vector.broadcast %cst_65 : f32 to vector<8x128xf32>
    %137 = arith.addf %136, %135 : vector<8x128xf32>
    %138 = arith.divf %136, %137 : vector<8x128xf32>
    %139 = vector.extract_strided_slice %126 {offsets = [0, 256], sizes = [8, 128], strides = [1, 1]} : vector<8x512xf32> to vector<8x128xf32>
    %140 = math.tanh %139 : vector<8x128xf32>
    %141 = vector.extract_strided_slice %126 {offsets = [0, 384], sizes = [8, 128], strides = [1, 1]} : vector<8x512xf32> to vector<8x128xf32>
    %142 = arith.negf %141 : vector<8x128xf32>
    %143 = math.exp %142 : vector<8x128xf32>
    %cst_66 = arith.constant 1.000000e+00 : f32
    %144 = vector.broadcast %cst_66 : f32 to vector<8x128xf32>
    %145 = arith.addf %144, %143 : vector<8x128xf32>
    %146 = arith.divf %144, %145 : vector<8x128xf32>
    %c0_67 = arith.constant 0 : index
    %c0_68 = arith.constant 0 : index
    %147 = vector.load %arg11[%c0_67, %c0_68] : memref<8x128xf32, #tpu.memory_space<vmem>>, vector<8x128xf32>
    %148 = arith.mulf %138, %147 : vector<8x128xf32>
    %149 = arith.mulf %132, %140 : vector<8x128xf32>
    %150 = arith.addf %148, %149 : vector<8x128xf32>
    %151 = math.tanh %150 : vector<8x128xf32>
    %152 = arith.mulf %146, %151 : vector<8x128xf32>
    %c0_69 = arith.constant 0 : index
    %c0_70 = arith.constant 0 : index
    %153 = vector.load %arg11[%c0_69, %c0_70] : memref<8x128xf32, #tpu.memory_space<vmem>>, vector<8x128xf32>
    tpu.vector_store %arg11[%c0_69, %c0_70], %150 {strides = array<i32>} : memref<8x128xf32, #tpu.memory_space<vmem>>, vector<8x128xf32>,
    %c0_71 = arith.constant 0 : index
    %c0_72 = arith.constant 0 : index
    %154 = vector.load %arg10[%c0_71, %c0_72] : memref<8x128xf32, #tpu.memory_space<vmem>>, vector<8x128xf32>
    tpu.vector_store %arg10[%c0_71, %c0_72], %152 {strides = array<i32>} : memref<8x128xf32, #tpu.memory_space<vmem>>, vector<8x128xf32>,
    %c4_i32 = arith.constant 4 : i32
    %c8_i32_73 = arith.constant 8 : i32
    %155 = arith.muli %c4_i32, %c8_i32_73 : i32
    %156 = tpu.assume_multiple %155, 8 : i32
    %157 = arith.index_cast %156 : i32 to index
    %c0_74 = arith.constant 0 : index
    %158 = vector.load %arg9[%157, %c0_74] : memref<64x512xf32, #tpu.memory_space<vmem>>, vector<8x512xf32>
    %c0_75 = arith.constant 0 : index
    %c0_76 = arith.constant 0 : index
    %159 = vector.load %arg10[%c0_75, %c0_76] : memref<8x128xf32, #tpu.memory_space<vmem>>, vector<8x128xf32>
    %c0_77 = arith.constant 0 : index
    %c0_78 = arith.constant 0 : index
    %160 = vector.load %arg4[%c0_77, %c0_78] : memref<128x512xf32, #tpu.memory_space<vmem>>, vector<128x512xf32>
    %cst_79 = arith.constant dense<0.000000e+00> : vector<8x512xf32>
    %161 = tpu.matmul %159, %160, %cst_79 {dimension_numbers = #tpu.dot_dimension_numbers<[1], [0], [0], [1], [0, 0, 1, 1], [], []>} : vector<8x128xf32>, vector<128x512xf32>, vector<8x512xf32> -> vector<8x512xf32>
    %162 = arith.addf %158, %161 : vector<8x512xf32>
    %163 = vector.extract_strided_slice %162 {offsets = [0, 0], sizes = [8, 128], strides = [1, 1]} : vector<8x512xf32> to vector<8x128xf32>
    %164 = arith.negf %163 : vector<8x128xf32>
    %165 = math.exp %164 : vector<8x128xf32>
    %cst_80 = arith.constant 1.000000e+00 : f32
    %166 = vector.broadcast %cst_80 : f32 to vector<8x128xf32>
    %167 = arith.addf %166, %165 : vector<8x128xf32>
    %168 = arith.divf %166, %167 : vector<8x128xf32>
    %169 = vector.extract_strided_slice %162 {offsets = [0, 128], sizes = [8, 128], strides = [1, 1]} : vector<8x512xf32> to vector<8x128xf32>
    %170 = arith.negf %169 : vector<8x128xf32>
    %171 = math.exp %170 : vector<8x128xf32>
    %cst_81 = arith.constant 1.000000e+00 : f32
    %172 = vector.broadcast %cst_81 : f32 to vector<8x128xf32>
    %173 = arith.addf %172, %171 : vector<8x128xf32>
    %174 = arith.divf %172, %173 : vector<8x128xf32>
    %175 = vector.extract_strided_slice %162 {offsets = [0, 256], sizes = [8, 128], strides = [1, 1]} : vector<8x512xf32> to vector<8x128xf32>
    %176 = math.tanh %175 : vector<8x128xf32>
    %177 = vector.extract_strided_slice %162 {offsets = [0, 384], sizes = [8, 128], strides = [1, 1]} : vector<8x512xf32> to vector<8x128xf32>
    %178 = arith.negf %177 : vector<8x128xf32>
    %179 = math.exp %178 : vector<8x128xf32>
    %cst_82 = arith.constant 1.000000e+00 : f32
    %180 = vector.broadcast %cst_82 : f32 to vector<8x128xf32>
    %181 = arith.addf %180, %179 : vector<8x128xf32>
    %182 = arith.divf %180, %181 : vector<8x128xf32>
    %c0_83 = arith.constant 0 : index
    %c0_84 = arith.constant 0 : index
    %183 = vector.load %arg11[%c0_83, %c0_84] : memref<8x128xf32, #tpu.memory_space<vmem>>, vector<8x128xf32>
    %184 = arith.mulf %174, %183 : vector<8x128xf32>
    %185 = arith.mulf %168, %176 : vector<8x128xf32>
    %186 = arith.addf %184, %185 : vector<8x128xf32>
    %187 = math.tanh %186 : vector<8x128xf32>
    %188 = arith.mulf %182, %187 : vector<8x128xf32>
    %c0_85 = arith.constant 0 : index
    %c0_86 = arith.constant 0 : index
    %189 = vector.load %arg11[%c0_85, %c0_86] : memref<8x128xf32, #tpu.memory_space<vmem>>, vector<8x128xf32>
    tpu.vector_store %arg11[%c0_85, %c0_86], %186 {strides = array<i32>} : memref<8x128xf32, #tpu.memory_space<vmem>>, vector<8x128xf32>,
    %c0_87 = arith.constant 0 : index
    %c0_88 = arith.constant 0 : index
    %190 = vector.load %arg10[%c0_87, %c0_88] : memref<8x128xf32, #tpu.memory_space<vmem>>, vector<8x128xf32>
    tpu.vector_store %arg10[%c0_87, %c0_88], %188 {strides = array<i32>} : memref<8x128xf32, #tpu.memory_space<vmem>>, vector<8x128xf32>,
    %c5_i32 = arith.constant 5 : i32
    %c8_i32_89 = arith.constant 8 : i32
    %191 = arith.muli %c5_i32, %c8_i32_89 : i32
    %192 = tpu.assume_multiple %191, 8 : i32
    %193 = arith.index_cast %192 : i32 to index
    %c0_90 = arith.constant 0 : index
    %194 = vector.load %arg9[%193, %c0_90] : memref<64x512xf32, #tpu.memory_space<vmem>>, vector<8x512xf32>
    %c0_91 = arith.constant 0 : index
    %c0_92 = arith.constant 0 : index
    %195 = vector.load %arg10[%c0_91, %c0_92] : memref<8x128xf32, #tpu.memory_space<vmem>>, vector<8x128xf32>
    %c0_93 = arith.constant 0 : index
    %c0_94 = arith.constant 0 : index
    %196 = vector.load %arg4[%c0_93, %c0_94] : memref<128x512xf32, #tpu.memory_space<vmem>>, vector<128x512xf32>
    %cst_95 = arith.constant dense<0.000000e+00> : vector<8x512xf32>
    %197 = tpu.matmul %195, %196, %cst_95 {dimension_numbers = #tpu.dot_dimension_numbers<[1], [0], [0], [1], [0, 0, 1, 1], [], []>} : vector<8x128xf32>, vector<128x512xf32>, vector<8x512xf32> -> vector<8x512xf32>
    %198 = arith.addf %194, %197 : vector<8x512xf32>
    %199 = vector.extract_strided_slice %198 {offsets = [0, 0], sizes = [8, 128], strides = [1, 1]} : vector<8x512xf32> to vector<8x128xf32>
    %200 = arith.negf %199 : vector<8x128xf32>
    %201 = math.exp %200 : vector<8x128xf32>
    %cst_96 = arith.constant 1.000000e+00 : f32
    %202 = vector.broadcast %cst_96 : f32 to vector<8x128xf32>
    %203 = arith.addf %202, %201 : vector<8x128xf32>
    %204 = arith.divf %202, %203 : vector<8x128xf32>
    %205 = vector.extract_strided_slice %198 {offsets = [0, 128], sizes = [8, 128], strides = [1, 1]} : vector<8x512xf32> to vector<8x128xf32>
    %206 = arith.negf %205 : vector<8x128xf32>
    %207 = math.exp %206 : vector<8x128xf32>
    %cst_97 = arith.constant 1.000000e+00 : f32
    %208 = vector.broadcast %cst_97 : f32 to vector<8x128xf32>
    %209 = arith.addf %208, %207 : vector<8x128xf32>
    %210 = arith.divf %208, %209 : vector<8x128xf32>
    %211 = vector.extract_strided_slice %198 {offsets = [0, 256], sizes = [8, 128], strides = [1, 1]} : vector<8x512xf32> to vector<8x128xf32>
    %212 = math.tanh %211 : vector<8x128xf32>
    %213 = vector.extract_strided_slice %198 {offsets = [0, 384], sizes = [8, 128], strides = [1, 1]} : vector<8x512xf32> to vector<8x128xf32>
    %214 = arith.negf %213 : vector<8x128xf32>
    %215 = math.exp %214 : vector<8x128xf32>
    %cst_98 = arith.constant 1.000000e+00 : f32
    %216 = vector.broadcast %cst_98 : f32 to vector<8x128xf32>
    %217 = arith.addf %216, %215 : vector<8x128xf32>
    %218 = arith.divf %216, %217 : vector<8x128xf32>
    %c0_99 = arith.constant 0 : index
    %c0_100 = arith.constant 0 : index
    %219 = vector.load %arg11[%c0_99, %c0_100] : memref<8x128xf32, #tpu.memory_space<vmem>>, vector<8x128xf32>
    %220 = arith.mulf %210, %219 : vector<8x128xf32>
    %221 = arith.mulf %204, %212 : vector<8x128xf32>
    %222 = arith.addf %220, %221 : vector<8x128xf32>
    %223 = math.tanh %222 : vector<8x128xf32>
    %224 = arith.mulf %218, %223 : vector<8x128xf32>
    %c0_101 = arith.constant 0 : index
    %c0_102 = arith.constant 0 : index
    %225 = vector.load %arg11[%c0_101, %c0_102] : memref<8x128xf32, #tpu.memory_space<vmem>>, vector<8x128xf32>
    tpu.vector_store %arg11[%c0_101, %c0_102], %222 {strides = array<i32>} : memref<8x128xf32, #tpu.memory_space<vmem>>, vector<8x128xf32>,
    %c0_103 = arith.constant 0 : index
    %c0_104 = arith.constant 0 : index
    %226 = vector.load %arg10[%c0_103, %c0_104] : memref<8x128xf32, #tpu.memory_space<vmem>>, vector<8x128xf32>
    tpu.vector_store %arg10[%c0_103, %c0_104], %224 {strides = array<i32>} : memref<8x128xf32, #tpu.memory_space<vmem>>, vector<8x128xf32>,
    %c6_i32 = arith.constant 6 : i32
    %c8_i32_105 = arith.constant 8 : i32
    %227 = arith.muli %c6_i32, %c8_i32_105 : i32
    %228 = tpu.assume_multiple %227, 8 : i32
    %229 = arith.index_cast %228 : i32 to index
    %c0_106 = arith.constant 0 : index
    %230 = vector.load %arg9[%229, %c0_106] : memref<64x512xf32, #tpu.memory_space<vmem>>, vector<8x512xf32>
    %c0_107 = arith.constant 0 : index
    %c0_108 = arith.constant 0 : index
    %231 = vector.load %arg10[%c0_107, %c0_108] : memref<8x128xf32, #tpu.memory_space<vmem>>, vector<8x128xf32>
    %c0_109 = arith.constant 0 : index
    %c0_110 = arith.constant 0 : index
    %232 = vector.load %arg4[%c0_109, %c0_110] : memref<128x512xf32, #tpu.memory_space<vmem>>, vector<128x512xf32>
    %cst_111 = arith.constant dense<0.000000e+00> : vector<8x512xf32>
    %233 = tpu.matmul %231, %232, %cst_111 {dimension_numbers = #tpu.dot_dimension_numbers<[1], [0], [0], [1], [0, 0, 1, 1], [], []>} : vector<8x128xf32>, vector<128x512xf32>, vector<8x512xf32> -> vector<8x512xf32>
    %234 = arith.addf %230, %233 : vector<8x512xf32>
    %235 = vector.extract_strided_slice %234 {offsets = [0, 0], sizes = [8, 128], strides = [1, 1]} : vector<8x512xf32> to vector<8x128xf32>
    %236 = arith.negf %235 : vector<8x128xf32>
    %237 = math.exp %236 : vector<8x128xf32>
    %cst_112 = arith.constant 1.000000e+00 : f32
    %238 = vector.broadcast %cst_112 : f32 to vector<8x128xf32>
    %239 = arith.addf %238, %237 : vector<8x128xf32>
    %240 = arith.divf %238, %239 : vector<8x128xf32>
    %241 = vector.extract_strided_slice %234 {offsets = [0, 128], sizes = [8, 128], strides = [1, 1]} : vector<8x512xf32> to vector<8x128xf32>
    %242 = arith.negf %241 : vector<8x128xf32>
    %243 = math.exp %242 : vector<8x128xf32>
    %cst_113 = arith.constant 1.000000e+00 : f32
    %244 = vector.broadcast %cst_113 : f32 to vector<8x128xf32>
    %245 = arith.addf %244, %243 : vector<8x128xf32>
    %246 = arith.divf %244, %245 : vector<8x128xf32>
    %247 = vector.extract_strided_slice %234 {offsets = [0, 256], sizes = [8, 128], strides = [1, 1]} : vector<8x512xf32> to vector<8x128xf32>
    %248 = math.tanh %247 : vector<8x128xf32>
    %249 = vector.extract_strided_slice %234 {offsets = [0, 384], sizes = [8, 128], strides = [1, 1]} : vector<8x512xf32> to vector<8x128xf32>
    %250 = arith.negf %249 : vector<8x128xf32>
    %251 = math.exp %250 : vector<8x128xf32>
    %cst_114 = arith.constant 1.000000e+00 : f32
    %252 = vector.broadcast %cst_114 : f32 to vector<8x128xf32>
    %253 = arith.addf %252, %251 : vector<8x128xf32>
    %254 = arith.divf %252, %253 : vector<8x128xf32>
    %c0_115 = arith.constant 0 : index
    %c0_116 = arith.constant 0 : index
    %255 = vector.load %arg11[%c0_115, %c0_116] : memref<8x128xf32, #tpu.memory_space<vmem>>, vector<8x128xf32>
    %256 = arith.mulf %246, %255 : vector<8x128xf32>
    %257 = arith.mulf %240, %248 : vector<8x128xf32>
    %258 = arith.addf %256, %257 : vector<8x128xf32>
    %259 = math.tanh %258 : vector<8x128xf32>
    %260 = arith.mulf %254, %259 : vector<8x128xf32>
    %c0_117 = arith.constant 0 : index
    %c0_118 = arith.constant 0 : index
    %261 = vector.load %arg11[%c0_117, %c0_118] : memref<8x128xf32, #tpu.memory_space<vmem>>, vector<8x128xf32>
    tpu.vector_store %arg11[%c0_117, %c0_118], %258 {strides = array<i32>} : memref<8x128xf32, #tpu.memory_space<vmem>>, vector<8x128xf32>,
    %c0_119 = arith.constant 0 : index
    %c0_120 = arith.constant 0 : index
    %262 = vector.load %arg10[%c0_119, %c0_120] : memref<8x128xf32, #tpu.memory_space<vmem>>, vector<8x128xf32>
    tpu.vector_store %arg10[%c0_119, %c0_120], %260 {strides = array<i32>} : memref<8x128xf32, #tpu.memory_space<vmem>>, vector<8x128xf32>,
    %c7_i32 = arith.constant 7 : i32
    %c8_i32_121 = arith.constant 8 : i32
    %263 = arith.muli %c7_i32, %c8_i32_121 : i32
    %264 = tpu.assume_multiple %263, 8 : i32
    %265 = arith.index_cast %264 : i32 to index
    %c0_122 = arith.constant 0 : index
    %266 = vector.load %arg9[%265, %c0_122] : memref<64x512xf32, #tpu.memory_space<vmem>>, vector<8x512xf32>
    %c0_123 = arith.constant 0 : index
    %c0_124 = arith.constant 0 : index
    %267 = vector.load %arg10[%c0_123, %c0_124] : memref<8x128xf32, #tpu.memory_space<vmem>>, vector<8x128xf32>
    %c0_125 = arith.constant 0 : index
    %c0_126 = arith.constant 0 : index
    %268 = vector.load %arg4[%c0_125, %c0_126] : memref<128x512xf32, #tpu.memory_space<vmem>>, vector<128x512xf32>
    %cst_127 = arith.constant dense<0.000000e+00> : vector<8x512xf32>
    %269 = tpu.matmul %267, %268, %cst_127 {dimension_numbers = #tpu.dot_dimension_numbers<[1], [0], [0], [1], [0, 0, 1, 1], [], []>} : vector<8x128xf32>, vector<128x512xf32>, vector<8x512xf32> -> vector<8x512xf32>
    %270 = arith.addf %266, %269 : vector<8x512xf32>
    %271 = vector.extract_strided_slice %270 {offsets = [0, 0], sizes = [8, 128], strides = [1, 1]} : vector<8x512xf32> to vector<8x128xf32>
    %272 = arith.negf %271 : vector<8x128xf32>
    %273 = math.exp %272 : vector<8x128xf32>
    %cst_128 = arith.constant 1.000000e+00 : f32
    %274 = vector.broadcast %cst_128 : f32 to vector<8x128xf32>
    %275 = arith.addf %274, %273 : vector<8x128xf32>
    %276 = arith.divf %274, %275 : vector<8x128xf32>
    %277 = vector.extract_strided_slice %270 {offsets = [0, 128], sizes = [8, 128], strides = [1, 1]} : vector<8x512xf32> to vector<8x128xf32>
    %278 = arith.negf %277 : vector<8x128xf32>
    %279 = math.exp %278 : vector<8x128xf32>
    %cst_129 = arith.constant 1.000000e+00 : f32
    %280 = vector.broadcast %cst_129 : f32 to vector<8x128xf32>
    %281 = arith.addf %280, %279 : vector<8x128xf32>
    %282 = arith.divf %280, %281 : vector<8x128xf32>
    %283 = vector.extract_strided_slice %270 {offsets = [0, 256], sizes = [8, 128], strides = [1, 1]} : vector<8x512xf32> to vector<8x128xf32>
    %284 = math.tanh %283 : vector<8x128xf32>
    %285 = vector.extract_strided_slice %270 {offsets = [0, 384], sizes = [8, 128], strides = [1, 1]} : vector<8x512xf32> to vector<8x128xf32>
    %286 = arith.negf %285 : vector<8x128xf32>
    %287 = math.exp %286 : vector<8x128xf32>
    %cst_130 = arith.constant 1.000000e+00 : f32
    %288 = vector.broadcast %cst_130 : f32 to vector<8x128xf32>
    %289 = arith.addf %288, %287 : vector<8x128xf32>
    %290 = arith.divf %288, %289 : vector<8x128xf32>
    %c0_131 = arith.constant 0 : index
    %c0_132 = arith.constant 0 : index
    %291 = vector.load %arg11[%c0_131, %c0_132] : memref<8x128xf32, #tpu.memory_space<vmem>>, vector<8x128xf32>
    %292 = arith.mulf %282, %291 : vector<8x128xf32>
    %293 = arith.mulf %276, %284 : vector<8x128xf32>
    %294 = arith.addf %292, %293 : vector<8x128xf32>
    %295 = math.tanh %294 : vector<8x128xf32>
    %296 = arith.mulf %290, %295 : vector<8x128xf32>
    %c0_133 = arith.constant 0 : index
    %c0_134 = arith.constant 0 : index
    %297 = vector.load %arg11[%c0_133, %c0_134] : memref<8x128xf32, #tpu.memory_space<vmem>>, vector<8x128xf32>
    tpu.vector_store %arg11[%c0_133, %c0_134], %294 {strides = array<i32>} : memref<8x128xf32, #tpu.memory_space<vmem>>, vector<8x128xf32>,
    %c0_135 = arith.constant 0 : index
    %c0_136 = arith.constant 0 : index
    %298 = vector.load %arg10[%c0_135, %c0_136] : memref<8x128xf32, #tpu.memory_space<vmem>>, vector<8x128xf32>
    tpu.vector_store %arg10[%c0_135, %c0_136], %296 {strides = array<i32>} : memref<8x128xf32, #tpu.memory_space<vmem>>, vector<8x128xf32>,
    %c8_i32_137 = arith.constant 8 : i32
    %c0_i32_138 = arith.constant 0 : i32
    %299 = arith.cmpi eq, %arg1, %c0_i32_138 : i32
    %300 = arith.extui %299 : i1 to i32
    %c0_i32_139 = arith.constant 0 : i32
    %301 = arith.cmpi ne, %300, %c0_i32_139 : i32
    scf.if %301 {
      %c0_140 = arith.constant 0 : index
      %c0_141 = arith.constant 0 : index
      %302 = vector.load %arg10[%c0_140, %c0_141] : memref<8x128xf32, #tpu.memory_space<vmem>>, vector<8x128xf32>
      %c0_142 = arith.constant 0 : index
      %c0_143 = arith.constant 0 : index
      %303 = vector.load %arg6[%c0_142, %c0_143] : memref<128x128xf32, #tpu.memory_space<vmem>>, vector<128x128xf32>
      %cst_144 = arith.constant dense<0.000000e+00> : vector<8x128xf32>
      %304 = tpu.matmul %302, %303, %cst_144 {dimension_numbers = #tpu.dot_dimension_numbers<[1], [0], [0], [1], [0, 0, 1, 1], [], []>} : vector<8x128xf32>, vector<128x128xf32>, vector<8x128xf32> -> vector<8x128xf32>
      %c0_145 = arith.constant 0 : index
      %c0_146 = arith.constant 0 : index
      %305 = vector.load %arg7[%c0_145, %c0_146] : memref<1x128xf32, #tpu.memory_space<vmem>>, vector<1x128xf32>
      %306 = vector.broadcast %305 : vector<1x128xf32> to vector<8x128xf32>
      %307 = arith.addf %304, %306 : vector<8x128xf32>
      %cst_147 = arith.constant dense<0xFF800000> : vector<8xf32>
      %308 = vector.multi_reduction <maximumf>, %307, %cst_147 [1] : vector<8x128xf32> to vector<8xf32>
      %309 = vector.shape_cast %308 : vector<8xf32> to vector<8x1xf32>
      %310 = vector.broadcast %309 : vector<8x1xf32> to vector<8x128xf32>
      %311 = arith.subf %307, %310 : vector<8x128xf32>
      %312 = math.exp %311 : vector<8x128xf32>
      %cst_148 = arith.constant dense<0.000000e+00> : vector<8xf32>
      %313 = vector.multi_reduction <add>, %312, %cst_148 [1] : vector<8x128xf32> to vector<8xf32>
      %314 = vector.shape_cast %313 : vector<8xf32> to vector<8x1xf32>
      %315 = math.log %314 : vector<8x1xf32>
      %316 = vector.broadcast %315 : vector<8x1xf32> to vector<8x128xf32>
      %317 = arith.subf %311, %316 : vector<8x128xf32>
      %c0_149 = arith.constant 0 : index
      %c0_150 = arith.constant 0 : index
      %318 = vector.load %arg8[%c0_149, %c0_150] : memref<8x128xf32, #tpu.memory_space<vmem>>, vector<8x128xf32>
      tpu.vector_store %arg8[%c0_149, %c0_150], %317 {strides = array<i32>} : memref<8x128xf32, #tpu.memory_space<vmem>>, vector<8x128xf32>,
    } else {
    }
    return
  }
  func.func @transform_0(%arg0: i32, %arg1: i32) -> (i32, i32, i32) {
    %c0_i32 = arith.constant 0 : i32
    %c0_i32_0 = arith.constant 0 : i32
    return %arg0, %arg1, %c0_i32 : i32, i32, i32
  }
  func.func @transform_1(%arg0: i32, %arg1: i32) -> (i32, i32) {
    %c0_i32 = arith.constant 0 : i32
    %c0_i32_0 = arith.constant 0 : i32
    %c0_i32_1 = arith.constant 0 : i32
    return %c0_i32, %c0_i32_0 : i32, i32
  }
  func.func @transform_2(%arg0: i32, %arg1: i32) -> (i32, i32) {
    %c0_i32 = arith.constant 0 : i32
    %c0_i32_0 = arith.constant 0 : i32
    %c0_i32_1 = arith.constant 0 : i32
    return %c0_i32, %c0_i32_0 : i32, i32
  }
  func.func @transform_3(%arg0: i32, %arg1: i32) -> (i32, i32) {
    %c0_i32 = arith.constant 0 : i32
    %c0_i32_0 = arith.constant 0 : i32
    %c0_i32_1 = arith.constant 0 : i32
    return %c0_i32, %c0_i32_0 : i32, i32
  }
  func.func @transform_4(%arg0: i32, %arg1: i32) -> (i32, i32) {
    %c0_i32 = arith.constant 0 : i32
    %c0_i32_0 = arith.constant 0 : i32
    %c0_i32_1 = arith.constant 0 : i32
    return %c0_i32, %c0_i32_0 : i32, i32
  }
  func.func @transform_5(%arg0: i32, %arg1: i32) -> (i32, i32) {
    %c0_i32 = arith.constant 0 : i32
    %c0_i32_0 = arith.constant 0 : i32
    %c0_i32_1 = arith.constant 0 : i32
    return %c0_i32, %c0_i32_0 : i32, i32
  }
  func.func @transform_6(%arg0: i32, %arg1: i32) -> (i32, i32) {
    %c0_i32 = arith.constant 0 : i32
    %c0_i32_0 = arith.constant 0 : i32
    return %arg0, %c0_i32 : i32, i32
  }
}

</mosaic_0001>

<llo_original>
// kernel: lstm_lm_forward.1
$region0: #{lstm_lm_forward.1}
  #allocation0 [shape = 'u32[]', space=smem, size = 0x4, offset = 0x4, fixed_abs, tag = 'smem constant byte address 0x4 - core index']
  #allocation1 [shape = 'u32[72,128]{1,0:T(1,128)}', space=vmem, size = 0x9000, scoped, tag = 'internal scratch']
  #allocation2 [shape = 'f32[64,512]{1,0:T(8,128)}', space=vmem, size = 0x20000, scoped, tag = 'scratch operand']
  #allocation3 [shape = 'f32[8,128]{1,0:T(8,128)}', space=vmem, size = 0x1000, scoped, tag = 'scratch operand']
  #allocation4 [shape = 'f32[8,128]{1,0:T(8,128)}', space=vmem, size = 0x1000, scoped, tag = 'scratch operand']
  %s0 = inlined_call_operand.vmem [shape: f32[1,64,32], index: 0, kind: input, shape index: {}]
  %s1 = inlined_call_operand.vmem [shape: f32[32,512], index: 1, kind: input, shape index: {}]
  %s2 = inlined_call_operand.vmem [shape: f32[128,512], index: 2, kind: input, shape index: {}]
  %s3 = inlined_call_operand.vmem [shape: f32[1,512], index: 3, kind: input, shape index: {}]
  %s4 = inlined_call_operand.vmem [shape: f32[128,128], index: 4, kind: input, shape index: {}]
  %s5 = inlined_call_operand.vmem [shape: f32[1,128], index: 5, kind: input, shape index: {}]
  %s6 = inlined_call_operand.vmem [shape: f32[8,128], index: 6, kind: output, shape index: {}]
  %s7 = sld [smem:[#allocation0]]
  $region42: #{lstm_lm_forward.1} parent=0
    _
  %s9 = ssub.s32 1, %s7
  %s10 = scalar_select 0, %s9, %s7
  // Predicated region
  $region2: #{lstm_lm_forward.1} parent=0 // pred_check
    _
  $region3: #{lstm_lm_forward.1} parent=0 // pred_check_branch
    %12 = sbr.rel (0) target = $region5
  $region4: #{lstm_lm_forward.1} parent=0 // pred_region
    _
  $region5: #{lstm_lm_forward.1} parent=0 // pred_fallthru
    _
  // Predicated region
  $region6: #{lstm_lm_forward.1} parent=0 // pred_check
    _
  $region7: #{lstm_lm_forward.1} parent=0 // pred_check_branch
    %14 = sbr.rel (0) target = $region9
  $region8: #{lstm_lm_forward.1} parent=0 // pred_region
    _
  $region9: #{lstm_lm_forward.1} parent=0 // pred_fallthru
    _
  // Predicated region
  $region10: #{lstm_lm_forward.1} parent=0 // pred_check
    _
  $region11: #{lstm_lm_forward.1} parent=0 // pred_check_branch
    %16 = sbr.rel (0) target = $region13
  $region12: #{lstm_lm_forward.1} parent=0 // pred_region
    _
  $region13: #{lstm_lm_forward.1} parent=0 // pred_fallthru
    _
  // Predicated region
  $region14: #{lstm_lm_forward.1} parent=0 // pred_check
    _
  $region15: #{lstm_lm_forward.1} parent=0 // pred_check_branch
    %18 = sbr.rel (0) target = $region17
  $region16: #{lstm_lm_forward.1} parent=0 // pred_region
    _
  $region17: #{lstm_lm_forward.1} parent=0 // pred_fallthru
    _
  // Predicated region
  $region18: #{lstm_lm_forward.1} parent=0 // pred_check
    _
  $region19: #{lstm_lm_forward.1} parent=0 // pred_check_branch
    %20 = sbr.rel (0) target = $region21
  $region20: #{lstm_lm_forward.1} parent=0 // pred_region
    _
  $region21: #{lstm_lm_forward.1} parent=0 // pred_fallthru
    _
  // Predicated region
  $region22: #{lstm_lm_forward.1} parent=0 // pred_check
    _
  $region23: #{lstm_lm_forward.1} parent=0 // pred_check_branch
    %22 = sbr.rel (0) target = $region25
  $region24: #{lstm_lm_forward.1} parent=0 // pred_region
    _
  $region25: #{lstm_lm_forward.1} parent=0 // pred_fallthru
    _
  %p23 = scmp.eq.s32.totalorder 0, 0
  // Predicated region
  $region26: #{lstm_lm_forward.1} parent=0 // pred_check
    %p24 = pneg %p23
  $region27: #{lstm_lm_forward.1} parent=0 // pred_check_branch
    %26 = sbr.rel (%p24) target = $region29
  $region28: #{lstm_lm_forward.1} parent=0 // pred_region
    %27 = vst [vmem:[#allocation3] sm:$0xff] 0.0
    %28 = vst [vmem:[#allocation4] sm:$0xff] 0.0
  $region29: #{lstm_lm_forward.1} parent=0 // pred_fallthru
    _
  %v29 = vld [vmem:[%s0] sm:$0xff]
  %v30 = vld [vmem:[%s0 + $0x8] sm:$0xff]
  %v31 = vld [vmem:[%s0 + $0x10] sm:$0xff]
  %v32 = vld [vmem:[%s0 + $0x18] sm:$0xff]
  %v33 = vld [vmem:[%s0 + $0x20] sm:$0xff]
  %v34 = vld [vmem:[%s0 + $0x28] sm:$0xff]
  %v35 = vld [vmem:[%s0 + $0x30] sm:$0xff]
  %v36 = vld [vmem:[%s0 + $0x38] sm:$0xff]
  %v37 = vld [vmem:[%s1] sm:$0xff]
  %v38 = vld [vmem:[%s1 + $0x8] sm:$0xff]
  %v39 = vld [vmem:[%s1 + $0x10] sm:$0xff]
  %v40 = vld [vmem:[%s1 + $0x18] sm:$0xff]
  %v41 = vld [vmem:[%s1 + $0x20] sm:$0xff]
  %v42 = vld [vmem:[%s1 + $0x28] sm:$0xff]
  %v43 = vld [vmem:[%s1 + $0x30] sm:$0xff]
  %v44 = vld [vmem:[%s1 + $0x38] sm:$0xff]
  %v45 = vld [vmem:[%s1 + $0x40] sm:$0xff]
  %v46 = vld [vmem:[%s1 + $0x48] sm:$0xff]
  %v47 = vld [vmem:[%s1 + $0x50] sm:$0xff]
  %v48 = vld [vmem:[%s1 + $0x58] sm:$0xff]
  %v49 = vld [vmem:[%s1 + $0x60] sm:$0xff]
  %v50 = vld [vmem:[%s1 + $0x68] sm:$0xff]
  %v51 = vld [vmem:[%s1 + $0x70] sm:$0xff]
  %v52 = vld [vmem:[%s1 + $0x78] sm:$0xff]
  %v53 = vld [vmem:[%s3] sm:$0xf]
  %v55 = vperm.slane %v53, 0
  %v56 = vperm.slane %v53, 1
  %v57 = vperm.slane %v53, 2
  %v58 = vperm.slane %v53, 3
  %vm63 = vcmask 261120
  %v65 = vsel %vm63, %v29, 0
  %v68 = vsel %vm63, %v30, 0
  %v71 = vsel %vm63, %v31, 0
  %v74 = vsel %vm63, %v32, 0
  %v77 = vsel %vm63, %v33, 0
  %v80 = vsel %vm63, %v34, 0
  %v83 = vsel %vm63, %v35, 0
  %v86 = vsel %vm63, %v36, 0
  %88 = vmatpush.msra.mxu0 0.0
  %89 = vmatpush.msra.mxu0 0.0
  %90 = vmatpush.msra.mxu0 0.0
  %91 = vmatpush.msra.mxu0 0.0
  %92 = vmatpush.msra.mxu0 0.0
  %93 = vmatpush.msra.mxu0 0.0
  %94 = vmatpush.msra.mxu0 0.0
  %95 = vmatpush.msra.mxu0 0.0
  %96 = vmatpush.msra.mxu0 0.0
  %97 = vmatpush.msra.mxu0 0.0
  %98 = vmatpush.msra.mxu0 0.0
  %99 = vmatpush.msra.mxu0 0.0
  %100 = vmatpush.msra.mxu0 %v49
  %101 = vmatpush.msra.mxu0 %v45
  %102 = vmatpush.msra.mxu0 %v41
  %103 = vmatpush.msra.mxu0 %v37
  %104 = vmatmul.f32.gmra.mxu0 %v65
  %v105 = vpop.f32.mrf.mxu0
  %v106 = vadd.f32 %v55, %v105
  %107 = vmatmul.f32.gmra.mxu0 %v68
  %v108 = vpop.f32.mrf.mxu0
  %v109 = vadd.f32 %v55, %v108
  %110 = vmatmul.f32.gmra.mxu0 %v71
  %v111 = vpop.f32.mrf.mxu0
  %v112 = vadd.f32 %v55, %v111
  %113 = vmatmul.f32.gmra.mxu0 %v74
  %v114 = vpop.f32.mrf.mxu0
  %v115 = vadd.f32 %v55, %v114
  %116 = vmatmul.f32.gmra.mxu0 %v77
  %v117 = vpop.f32.mrf.mxu0
  %v118 = vadd.f32 %v55, %v117
  %119 = vmatmul.f32.gmra.mxu0 %v80
  %v120 = vpop.f32.mrf.mxu0
  %v121 = vadd.f32 %v55, %v120
  %122 = vmatmul.f32.gmra.mxu0 %v83
  %v123 = vpop.f32.mrf.mxu0
  %v124 = vadd.f32 %v55, %v123
  %125 = vmatmul.f32.gmra.mxu0 %v86
  %v126 = vpop.f32.mrf.mxu0
  %v127 = vadd.f32 %v55, %v126
  %128 = vdwg.mxu0
  %129 = vmatpush.msra.mxu0 0.0
  %130 = vmatpush.msra.mxu0 0.0
  %131 = vmatpush.msra.mxu0 0.0
  %132 = vmatpush.msra.mxu0 0.0
  %133 = vmatpush.msra.mxu0 0.0
  %134 = vmatpush.msra.mxu0 0.0
  %135 = vmatpush.msra.mxu0 0.0
  %136 = vmatpush.msra.mxu0 0.0
  %137 = vmatpush.msra.mxu0 0.0
  %138 = vmatpush.msra.mxu0 0.0
  %139 = vmatpush.msra.mxu0 0.0
  %140 = vmatpush.msra.mxu0 0.0
  %141 = vmatpush.msra.mxu0 %v50
  %142 = vmatpush.msra.mxu0 %v46
  %143 = vmatpush.msra.mxu0 %v42
  %144 = vmatpush.msra.mxu0 %v38
  %145 = vmatmul.f32.gmra.mxu0 %v65
  %v146 = vpop.f32.mrf.mxu0
  %v147 = vadd.f32 %v56, %v146
  %148 = vmatmul.f32.gmra.mxu0 %v68
  %v149 = vpop.f32.mrf.mxu0
  %v150 = vadd.f32 %v56, %v149
  %151 = vmatmul.f32.gmra.mxu0 %v71
  %v152 = vpop.f32.mrf.mxu0
  %v153 = vadd.f32 %v56, %v152
  %154 = vmatmul.f32.gmra.mxu0 %v74
  %v155 = vpop.f32.mrf.mxu0
  %v156 = vadd.f32 %v56, %v155
  %157 = vmatmul.f32.gmra.mxu0 %v77
  %v158 = vpop.f32.mrf.mxu0
  %v159 = vadd.f32 %v56, %v158
  %160 = vmatmul.f32.gmra.mxu0 %v80
  %v161 = vpop.f32.mrf.mxu0
  %v162 = vadd.f32 %v56, %v161
  %163 = vmatmul.f32.gmra.mxu0 %v83
  %v164 = vpop.f32.mrf.mxu0
  %v165 = vadd.f32 %v56, %v164
  %166 = vmatmul.f32.gmra.mxu0 %v86
  %v167 = vpop.f32.mrf.mxu0
  %v168 = vadd.f32 %v56, %v167
  %169 = vdwg.mxu0
  %170 = vmatpush.msra.mxu0 0.0
  %171 = vmatpush.msra.mxu0 0.0
  %172 = vmatpush.msra.mxu0 0.0
  %173 = vmatpush.msra.mxu0 0.0
  %174 = vmatpush.msra.mxu0 0.0
  %175 = vmatpush.msra.mxu0 0.0
  %176 = vmatpush.msra.mxu0 0.0
  %177 = vmatpush.msra.mxu0 0.0
  %178 = vmatpush.msra.mxu0 0.0
  %179 = vmatpush.msra.mxu0 0.0
  %180 = vmatpush.msra.mxu0 0.0
  %181 = vmatpush.msra.mxu0 0.0
  %182 = vmatpush.msra.mxu0 %v51
  %183 = vmatpush.msra.mxu0 %v47
  %184 = vmatpush.msra.mxu0 %v43
  %185 = vmatpush.msra.mxu0 %v39
  %186 = vmatmul.f32.gmra.mxu0 %v65
  %v187 = vpop.f32.mrf.mxu0
  %v188 = vadd.f32 %v57, %v187
  %189 = vmatmul.f32.gmra.mxu0 %v68
  %v190 = vpop.f32.mrf.mxu0
  %v191 = vadd.f32 %v57, %v190
  %192 = vmatmul.f32.gmra.mxu0 %v71
  %v193 = vpop.f32.mrf.mxu0
  %v194 = vadd.f32 %v57, %v193
  %195 = vmatmul.f32.gmra.mxu0 %v74
  %v196 = vpop.f32.mrf.mxu0
  %v197 = vadd.f32 %v57, %v196
  %198 = vmatmul.f32.gmra.mxu0 %v77
  %v199 = vpop.f32.mrf.mxu0
  %v200 = vadd.f32 %v57, %v199
  %201 = vmatmul.f32.gmra.mxu0 %v80
  %v202 = vpop.f32.mrf.mxu0
  %v203 = vadd.f32 %v57, %v202
  %204 = vmatmul.f32.gmra.mxu0 %v83
  %v205 = vpop.f32.mrf.mxu0
  %v206 = vadd.f32 %v57, %v205
  %207 = vmatmul.f32.gmra.mxu0 %v86
  %v208 = vpop.f32.mrf.mxu0
  %v209 = vadd.f32 %v57, %v208
  %210 = vdwg.mxu0
  %211 = vmatpush.msra.mxu0 0.0
  %212 = vmatpush.msra.mxu0 0.0
  %213 = vmatpush.msra.mxu0 0.0
  %214 = vmatpush.msra.mxu0 0.0
  %215 = vmatpush.msra.mxu0 0.0
  %216 = vmatpush.msra.mxu0 0.0
  %217 = vmatpush.msra.mxu0 0.0
  %218 = vmatpush.msra.mxu0 0.0
  %219 = vmatpush.msra.mxu0 0.0
  %220 = vmatpush.msra.mxu0 0.0
  %221 = vmatpush.msra.mxu0 0.0
  %222 = vmatpush.msra.mxu0 0.0
  %223 = vmatpush.msra.mxu0 %v52
  %224 = vmatpush.msra.mxu0 %v48
  %225 = vmatpush.msra.mxu0 %v44
  %226 = vmatpush.msra.mxu0 %v40
  %227 = vmatmul.f32.gmra.mxu0 %v65
  %v228 = vpop.f32.mrf.mxu0
  %v229 = vadd.f32 %v58, %v228
  %230 = vmatmul.f32.gmra.mxu0 %v68
  %v231 = vpop.f32.mrf.mxu0
  %v232 = vadd.f32 %v58, %v231
  %233 = vmatmul.f32.gmra.mxu0 %v71
  %v234 = vpop.f32.mrf.mxu0
  %v235 = vadd.f32 %v58, %v234
  %236 = vmatmul.f32.gmra.mxu0 %v74
  %v237 = vpop.f32.mrf.mxu0
  %v238 = vadd.f32 %v58, %v237
  %239 = vmatmul.f32.gmra.mxu0 %v77
  %v240 = vpop.f32.mrf.mxu0
  %v241 = vadd.f32 %v58, %v240
  %242 = vmatmul.f32.gmra.mxu0 %v80
  %v243 = vpop.f32.mrf.mxu0
  %v244 = vadd.f32 %v58, %v243
  %245 = vmatmul.f32.gmra.mxu0 %v83
  %v246 = vpop.f32.mrf.mxu0
  %v247 = vadd.f32 %v58, %v246
  %248 = vmatmul.f32.gmra.mxu0 %v86
  %v249 = vpop.f32.mrf.mxu0
  %v250 = vadd.f32 %v58, %v249
  %251 = vdwg.mxu0
  %252 = vst [vmem:[#allocation2] sm:$0xff] %v106
  %253 = vst [vmem:[#allocation2 + $0x8] sm:$0xff] %v147
  %254 = vst [vmem:[#allocation2 + $0x10] sm:$0xff] %v188
  %255 = vst [vmem:[#allocation2 + $0x18] sm:$0xff] %v229
  %256 = vst [vmem:[#allocation2 + $0x20] sm:$0xff] %v109
  %257 = vst [vmem:[#allocation2 + $0x28] sm:$0xff] %v150
  %258 = vst [vmem:[#allocation2 + $0x30] sm:$0xff] %v191
  %259 = vst [vmem:[#allocation2 + $0x38] sm:$0xff] %v232
  %260 = vst [vmem:[#allocation2 + $0x40] sm:$0xff] %v112
  %261 = vst [vmem:[#allocation2 + $0x48] sm:$0xff] %v153
  %262 = vst [vmem:[#allocation2 + $0x50] sm:$0xff] %v194
  %263 = vst [vmem:[#allocation2 + $0x58] sm:$0xff] %v235
  %264 = vst [vmem:[#allocation2 + $0x60] sm:$0xff] %v115
  %265 = vst [vmem:[#allocation2 + $0x68] sm:$0xff] %v156
  %266 = vst [vmem:[#allocation2 + $0x70] sm:$0xff] %v197
  %267 = vst [vmem:[#allocation2 + $0x78] sm:$0xff] %v238
  %268 = vst [vmem:[#allocation2 + $0x80] sm:$0xff] %v118
  %269 = vst [vmem:[#allocation2 + $0x88] sm:$0xff] %v159
  %270 = vst [vmem:[#allocation2 + $0x90] sm:$0xff] %v200
  %271 = vst [vmem:[#allocation2 + $0x98] sm:$0xff] %v241
  %272 = vst [vmem:[#allocation2 + $0xa0] sm:$0xff] %v121
  %273 = vst [vmem:[#allocation2 + $0xa8] sm:$0xff] %v162
  %274 = vst [vmem:[#allocation2 + $0xb0] sm:$0xff] %v203
  %275 = vst [vmem:[#allocation2 + $0xb8] sm:$0xff] %v244
  %276 = vst [vmem:[#allocation2 + $0xc0] sm:$0xff] %v124
  %277 = vst [vmem:[#allocation2 + $0xc8] sm:$0xff] %v165
  %278 = vst [vmem:[#allocation2 + $0xd0] sm:$0xff] %v206
  %279 = vst [vmem:[#allocation2 + $0xd8] sm:$0xff] %v247
  %280 = vst [vmem:[#allocation2 + $0xe0] sm:$0xff] %v127
  %281 = vst [vmem:[#allocation2 + $0xe8] sm:$0xff] %v168
  %282 = vst [vmem:[#allocation2 + $0xf0] sm:$0xff] %v209
  %283 = vst [vmem:[#allocation2 + $0xf8] sm:$0xff] %v250
  %s284 = smul.u32 0, 4
  %s285 = smul.addr %s284, 8
  %s286 = scalar_lea.vmem [#allocation2], %s285
  %v287 = vld [vmem:[%s286] sm:$0xff]
  %v288 = vld [vmem:[%s286 + $0x8] sm:$0xff]
  %v289 = vld [vmem:[%s286 + $0x10] sm:$0xff]
  %v290 = vld [vmem:[%s286 + $0x18] sm:$0xff]
  %v291 = vld [vmem:[#allocation3] sm:$0xff]
  %v292 = vld [vmem:[%s2] sm:$0xff]
  %v293 = vld [vmem:[%s2 + $0x8] sm:$0xff]
  %v294 = vld [vmem:[%s2 + $0x10] sm:$0xff]
  %v295 = vld [vmem:[%s2 + $0x18] sm:$0xff]
  %v296 = vld [vmem:[%s2 + $0x20] sm:$0xff]
  %v297 = vld [vmem:[%s2 + $0x28] sm:$0xff]
  %v298 = vld [vmem:[%s2 + $0x30] sm:$0xff]
  %v299 = vld [vmem:[%s2 + $0x38] sm:$0xff]
  %v300 = vld [vmem:[%s2 + $0x40] sm:$0xff]
  %v301 = vld [vmem:[%s2 + $0x48] sm:$0xff]
  %v302 = vld [vmem:[%s2 + $0x50] sm:$0xff]
  %v303 = vld [vmem:[%s2 + $0x58] sm:$0xff]
  %v304 = vld [vmem:[%s2 + $0x60] sm:$0xff]
  %v305 = vld [vmem:[%s2 + $0x68] sm:$0xff]
  %v306 = vld [vmem:[%s2 + $0x70] sm:$0xff]
  %v307 = vld [vmem:[%s2 + $0x78] sm:$0xff]
  %v308 = vld [vmem:[%s2 + $0x80] sm:$0xff]
  %v309 = vld [vmem:[%s2 + $0x88] sm:$0xff]
  %v310 = vld [vmem:[%s2 + $0x90] sm:$0xff]
  %v311 = vld [vmem:[%s2 + $0x98] sm:$0xff]
  %v312 = vld [vmem:[%s2 + $0xa0] sm:$0xff]
  %v313 = vld [vmem:[%s2 + $0xa8] sm:$0xff]
  %v314 = vld [vmem:[%s2 + $0xb0] sm:$0xff]
  %v315 = vld [vmem:[%s2 + $0xb8] sm:$0xff]
  %v316 = vld [vmem:[%s2 + $0xc0] sm:$0xff]
  %v317 = vld [vmem:[%s2 + $0xc8] sm:$0xff]
  %v318 = vld [vmem:[%s2 + $0xd0] sm:$0xff]
  %v319 = vld [vmem:[%s2 + $0xd8] sm:$0xff]
  %v320 = vld [vmem:[%s2 + $0xe0] sm:$0xff]
  %v321 = vld [vmem:[%s2 + $0xe8] sm:$0xff]
  %v322 = vld [vmem:[%s2 + $0xf0] sm:$0xff]
  %v323 = vld [vmem:[%s2 + $0xf8] sm:$0xff]
  %v324 = vld [vmem:[%s2 + $0x100] sm:$0xff]
  %v325 = vld [vmem:[%s2 + $0x108] sm:$0xff]
  %v326 = vld [vmem:[%s2 + $0x110] sm:$0xff]
  %v327 = vld [vmem:[%s2 + $0x118] sm:$0xff]
  %v328 = vld [vmem:[%s2 + $0x120] sm:$0xff]
  %v329 = vld [vmem:[%s2 + $0x128] sm:$0xff]
  %v330 = vld [vmem:[%s2 + $0x130] sm:$0xff]
  %v331 = vld [vmem:[%s2 + $0x138] sm:$0xff]
  %v332 = vld [vmem:[%s2 + $0x140] sm:$0xff]
  %v333 = vld [vmem:[%s2 + $0x148] sm:$0xff]
  %v334 = vld [vmem:[%s2 + $0x150] sm:$0xff]
  %v335 = vld [vmem:[%s2 + $0x158] sm:$0xff]
  %v336 = vld [vmem:[%s2 + $0x160] sm:$0xff]
  %v337 = vld [vmem:[%s2 + $0x168] sm:$0xff]
  %v338 = vld [vmem:[%s2 + $0x170] sm:$0xff]
  %v339 = vld [vmem:[%s2 + $0x178] sm:$0xff]
  %v340 = vld [vmem:[%s2 + $0x180] sm:$0xff]
  %v341 = vld [vmem:[%s2 + $0x188] sm:$0xff]
  %v342 = vld [vmem:[%s2 + $0x190] sm:$0xff]
  %v343 = vld [vmem:[%s2 + $0x198] sm:$0xff]
  %v344 = vld [vmem:[%s2 + $0x1a0] sm:$0xff]
  %v345 = vld [vmem:[%s2 + $0x1a8] sm:$0xff]
  %v346 = vld [vmem:[%s2 + $0x1b0] sm:$0xff]
  %v347 = vld [vmem:[%s2 + $0x1b8] sm:$0xff]
  %v348 = vld [vmem:[%s2 + $0x1c0] sm:$0xff]
  %v349 = vld [vmem:[%s2 + $0x1c8] sm:$0xff]
  %v350 = vld [vmem:[%s2 + $0x1d0] sm:$0xff]
  %v351 = vld [vmem:[%s2 + $0x1d8] sm:$0xff]
  %v352 = vld [vmem:[%s2 + $0x1e0] sm:$0xff]
  %v353 = vld [vmem:[%s2 + $0x1e8] sm:$0xff]
  %v354 = vld [vmem:[%s2 + $0x1f0] sm:$0xff]
  %v355 = vld [vmem:[%s2 + $0x1f8] sm:$0xff]
  %356 = vmatpush.msra.mxu0 %v352
  %357 = vmatpush.msra.mxu0 %v348
  %358 = vmatpush.msra.mxu0 %v344
  %359 = vmatpush.msra.mxu0 %v340
  %360 = vmatpush.msra.mxu0 %v336
  %361 = vmatpush.msra.mxu0 %v332
  %362 = vmatpush.msra.mxu0 %v328
  %363 = vmatpush.msra.mxu0 %v324
  %364 = vmatpush.msra.mxu0 %v320
  %365 = vmatpush.msra.mxu0 %v316
  %366 = vmatpush.msra.mxu0 %v312
  %367 = vmatpush.msra.mxu0 %v308
  %368 = vmatpush.msra.mxu0 %v304
  %369 = vmatpush.msra.mxu0 %v300
  %370 = vmatpush.msra.mxu0 %v296
  %371 = vmatpush.msra.mxu0 %v292
  %372 = vmatmul.f32.gmra.mxu0 %v291
  %v373 = vpop.f32.mrf.mxu0
  %v374 = vadd.f32 0.0, %v373
  %375 = vdwg.mxu0
  %376 = vmatpush.msra.mxu0 %v353
  %377 = vmatpush.msra.mxu0 %v349
  %378 = vmatpush.msra.mxu0 %v345
  %379 = vmatpush.msra.mxu0 %v341
  %380 = vmatpush.msra.mxu0 %v337
  %381 = vmatpush.msra.mxu0 %v333
  %382 = vmatpush.msra.mxu0 %v329
  %383 = vmatpush.msra.mxu0 %v325
  %384 = vmatpush.msra.mxu0 %v321
  %385 = vmatpush.msra.mxu0 %v317
  %386 = vmatpush.msra.mxu0 %v313
  %387 = vmatpush.msra.mxu0 %v309
  %388 = vmatpush.msra.mxu0 %v305
  %389 = vmatpush.msra.mxu0 %v301
  %390 = vmatpush.msra.mxu0 %v297
  %391 = vmatpush.msra.mxu0 %v293
  %392 = vmatmul.f32.gmra.mxu0 %v291
  %v393 = vpop.f32.mrf.mxu0
  %v394 = vadd.f32 0.0, %v393
  %395 = vdwg.mxu0
  %396 = vmatpush.msra.mxu0 %v354
  %397 = vmatpush.msra.mxu0 %v350
  %398 = vmatpush.msra.mxu0 %v346
  %399 = vmatpush.msra.mxu0 %v342
  %400 = vmatpush.msra.mxu0 %v338
  %401 = vmatpush.msra.mxu0 %v334
  %402 = vmatpush.msra.mxu0 %v330
  %403 = vmatpush.msra.mxu0 %v326
  %404 = vmatpush.msra.mxu0 %v322
  %405 = vmatpush.msra.mxu0 %v318
  %406 = vmatpush.msra.mxu0 %v314
  %407 = vmatpush.msra.mxu0 %v310
  %408 = vmatpush.msra.mxu0 %v306
  %409 = vmatpush.msra.mxu0 %v302
  %410 = vmatpush.msra.mxu0 %v298
  %411 = vmatpush.msra.mxu0 %v294
  %412 = vmatmul.f32.gmra.mxu0 %v291
  %v413 = vpop.f32.mrf.mxu0
  %v414 = vadd.f32 0.0, %v413
  %415 = vdwg.mxu0
  %416 = vmatpush.msra.mxu0 %v355
  %417 = vmatpush.msra.mxu0 %v351
  %418 = vmatpush.msra.mxu0 %v347
  %419 = vmatpush.msra.mxu0 %v343
  %420 = vmatpush.msra.mxu0 %v339
  %421 = vmatpush.msra.mxu0 %v335
  %422 = vmatpush.msra.mxu0 %v331
  %423 = vmatpush.msra.mxu0 %v327
  %424 = vmatpush.msra.mxu0 %v323
  %425 = vmatpush.msra.mxu0 %v319
  %426 = vmatpush.msra.mxu0 %v315
  %427 = vmatpush.msra.mxu0 %v311
  %428 = vmatpush.msra.mxu0 %v307
  %429 = vmatpush.msra.mxu0 %v303
  %430 = vmatpush.msra.mxu0 %v299
  %431 = vmatpush.msra.mxu0 %v295
  %432 = vmatmul.f32.gmra.mxu0 %v291
  %v433 = vpop.f32.mrf.mxu0
  %v434 = vadd.f32 0.0, %v433
  %435 = vdwg.mxu0
  %v436 = vadd.f32 %v287, %v374
  %v437 = vadd.f32 %v288, %v394
  %v438 = vadd.f32 %v289, %v414
  %v439 = vadd.f32 %v290, %v434
  %v440 = vxor.u32 %v436, 2147483648
  %v441 = vmul.f32 %v440, 1.442695
  %v442 = vpow.pop %v441
  %v443 = vadd.f32 %v442, 1.0
  %v444 = vrcp.pop %v443
  %v445 = vmul.f32 %v443, %v444
  %v446 = vsub.f32 1.0, %v445
  %v447 = vmul.f32 %v444, %v446
  %v448 = vadd.f32 %v444, %v447
  %vm449 = vweird.f32 %v443
  %vm450 = vweird.f32 %v444
  %vm451 = vmor %vm449, %vm450
  %v452 = vsel %vm451, %v444, %v448
  %v453 = vand.u32 2147483647, %v443
  %vm454 = vcmp.eq.f32.partialorder %v453, 8.507059e+37
  %v455 = vand.u32 %v443, 2147483648
  %v456 = vor.u32 1.1754944e-38, %v455
  %v457 = vsel %vm454, %v456, %v452
  %v458 = vmul.f32 1.0, %v457
  %v459 = vxor.u32 %v437, 2147483648
  %v460 = vmul.f32 %v459, 1.442695
  %v461 = vpow.pop %v460
  %v462 = vadd.f32 %v461, 1.0
  %v463 = vrcp.pop %v462
  %v464 = vmul.f32 %v462, %v463
  %v465 = vsub.f32 1.0, %v464
  %v466 = vmul.f32 %v463, %v465
  %v467 = vadd.f32 %v463, %v466
  %vm468 = vweird.f32 %v462
  %vm469 = vweird.f32 %v463
  %vm470 = vmor %vm468, %vm469
  %v471 = vsel %vm470, %v463, %v467
  %v472 = vand.u32 2147483647, %v462
  %vm473 = vcmp.eq.f32.partialorder %v472, 8.507059e+37
  %v474 = vand.u32 %v462, 2147483648
  %v475 = vor.u32 1.1754944e-38, %v474
  %v476 = vsel %vm473, %v475, %v471
  %v477 = vmul.f32 1.0, %v476
  %v478 = vtanh.pop %v438
  %v479 = vxor.u32 %v439, 2147483648
  %v480 = vmul.f32 %v479, 1.442695
  %v481 = vpow.pop %v480
  %v482 = vadd.f32 %v481, 1.0
  %v483 = vrcp.pop %v482
  %v484 = vmul.f32 %v482, %v483
  %v485 = vsub.f32 1.0, %v484
  %v486 = vmul.f32 %v483, %v485
  %v487 = vadd.f32 %v483, %v486
  %vm488 = vweird.f32 %v482
  %vm489 = vweird.f32 %v483
  %vm490 = vmor %vm488, %vm489
  %v491 = vsel %vm490, %v483, %v487
  %v492 = vand.u32 2147483647, %v482
  %vm493 = vcmp.eq.f32.partialorder %v492, 8.507059e+37
  %v494 = vand.u32 %v482, 2147483648
  %v495 = vor.u32 1.1754944e-38, %v494
  %v496 = vsel %vm493, %v495, %v491
  %v497 = vmul.f32 1.0, %v496
  %v498 = vld [vmem:[#allocation4] sm:$0xff]
  %v499 = vmul.f32 %v477, %v498
  %v500 = vmul.f32 %v458, %v478
  %v501 = vadd.f32 %v499, %v500
  %v502 = vtanh.pop %v501
  %v503 = vmul.f32 %v497, %v502
  %504 = vst [vmem:[#allocation4] sm:$0xff] %v501
  %505 = vst [vmem:[#allocation3] sm:$0xff] %v503
  %s506 = smul.u32 1, 4
  %s507 = smul.addr %s506, 8
  %s508 = scalar_lea.vmem [#allocation2], %s507
  %v509 = vld [vmem:[%s508] sm:$0xff]
  %v510 = vld [vmem:[%s508 + $0x8] sm:$0xff]
  %v511 = vld [vmem:[%s508 + $0x10] sm:$0xff]
  %v512 = vld [vmem:[%s508 + $0x18] sm:$0xff]
  %v513 = vld [vmem:[#allocation3] sm:$0xff]
  %v514 = vld [vmem:[%s2] sm:$0xff]
  %v515 = vld [vmem:[%s2 + $0x8] sm:$0xff]
  %v516 = vld [vmem:[%s2 + $0x10] sm:$0xff]
  %v517 = vld [vmem:[%s2 + $0x18] sm:$0xff]
  %v518 = vld [vmem:[%s2 + $0x20] sm:$0xff]
  %v519 = vld [vmem:[%s2 + $0x28] sm:$0xff]
  %v520 = vld [vmem:[%s2 + $0x30] sm:$0xff]
  %v521 = vld [vmem:[%s2 + $0x38] sm:$0xff]
  %v522 = vld [vmem:[%s2 + $0x40] sm:$0xff]
  %v523 = vld [vmem:[%s2 + $0x48] sm:$0xff]
  %v524 = vld [vmem:[%s2 + $0x50] sm:$0xff]
  %v525 = vld [vmem:[%s2 + $0x58] sm:$0xff]
  %v526 = vld [vmem:[%s2 + $0x60] sm:$0xff]
  %v527 = vld [vmem:[%s2 + $0x68] sm:$0xff]
  %v528 = vld [vmem:[%s2 + $0x70] sm:$0xff]
  %v529 = vld [vmem:[%s2 + $0x78] sm:$0xff]
  %v530 = vld [vmem:[%s2 + $0x80] sm:$0xff]
  %v531 = vld [vmem:[%s2 + $0x88] sm:$0xff]
  %v532 = vld [vmem:[%s2 + $0x90] sm:$0xff]
  %v533 = vld [vmem:[%s2 + $0x98] sm:$0xff]
  %v534 = vld [vmem:[%s2 + $0xa0] sm:$0xff]
  %v535 = vld [vmem:[%s2 + $0xa8] sm:$0xff]
  %v536 = vld [vmem:[%s2 + $0xb0] sm:$0xff]
  %v537 = vld [vmem:[%s2 + $0xb8] sm:$0xff]
  %v538 = vld [vmem:[%s2 + $0xc0] sm:$0xff]
  %v539 = vld [vmem:[%s2 + $0xc8] sm:$0xff]
  %v540 = vld [vmem:[%s2 + $0xd0] sm:$0xff]
  %v541 = vld [vmem:[%s2 + $0xd8] sm:$0xff]
  %v542 = vld [vmem:[%s2 + $0xe0] sm:$0xff]
  %v543 = vld [vmem:[%s2 + $0xe8] sm:$0xff]
  %v544 = vld [vmem:[%s2 + $0xf0] sm:$0xff]
  %v545 = vld [vmem:[%s2 + $0xf8] sm:$0xff]
  %v546 = vld [vmem:[%s2 + $0x100] sm:$0xff]
  %v547 = vld [vmem:[%s2 + $0x108] sm:$0xff]
  %v548 = vld [vmem:[%s2 + $0x110] sm:$0xff]
  %v549 = vld [vmem:[%s2 + $0x118] sm:$0xff]
  %v550 = vld [vmem:[%s2 + $0x120] sm:$0xff]
  %v551 = vld [vmem:[%s2 + $0x128] sm:$0xff]
  %v552 = vld [vmem:[%s2 + $0x130] sm:$0xff]
  %v553 = vld [vmem:[%s2 + $0x138] sm:$0xff]
  %v554 = vld [vmem:[%s2 + $0x140] sm:$0xff]
  %v555 = vld [vmem:[%s2 + $0x148] sm:$0xff]
  %v556 = vld [vmem:[%s2 + $0x150] sm:$0xff]
  %v557 = vld [vmem:[%s2 + $0x158] sm:$0xff]
  %v558 = vld [vmem:[%s2 + $0x160] sm:$0xff]
  %v559 = vld [vmem:[%s2 + $0x168] sm:$0xff]
  %v560 = vld [vmem:[%s2 + $0x170] sm:$0xff]
  %v561 = vld [vmem:[%s2 + $0x178] sm:$0xff]
  %v562 = vld [vmem:[%s2 + $0x180] sm:$0xff]
  %v563 = vld [vmem:[%s2 + $0x188] sm:$0xff]
  %v564 = vld [vmem:[%s2 + $0x190] sm:$0xff]
  %v565 = vld [vmem:[%s2 + $0x198] sm:$0xff]
  %v566 = vld [vmem:[%s2 + $0x1a0] sm:$0xff]
  %v567 = vld [vmem:[%s2 + $0x1a8] sm:$0xff]
  %v568 = vld [vmem:[%s2 + $0x1b0] sm:$0xff]
  %v569 = vld [vmem:[%s2 + $0x1b8] sm:$0xff]
  %v570 = vld [vmem:[%s2 + $0x1c0] sm:$0xff]
  %v571 = vld [vmem:[%s2 + $0x1c8] sm:$0xff]
  %v572 = vld [vmem:[%s2 + $0x1d0] sm:$0xff]
  %v573 = vld [vmem:[%s2 + $0x1d8] sm:$0xff]
  %v574 = vld [vmem:[%s2 + $0x1e0] sm:$0xff]
  %v575 = vld [vmem:[%s2 + $0x1e8] sm:$0xff]
  %v576 = vld [vmem:[%s2 + $0x1f0] sm:$0xff]
  %v577 = vld [vmem:[%s2 + $0x1f8] sm:$0xff]
  %578 = vmatpush.msra.mxu0 %v574
  %579 = vmatpush.msra.mxu0 %v570
  %580 = vmatpush.msra.mxu0 %v566
  %581 = vmatpush.msra.mxu0 %v562
  %582 = vmatpush.msra.mxu0 %v558
  %583 = vmatpush.msra.mxu0 %v554
  %584 = vmatpush.msra.mxu0 %v550
  %585 = vmatpush.msra.mxu0 %v546
  %586 = vmatpush.msra.mxu0 %v542
  %587 = vmatpush.msra.mxu0 %v538
  %588 = vmatpush.msra.mxu0 %v534
  %589 = vmatpush.msra.mxu0 %v530
  %590 = vmatpush.msra.mxu0 %v526
  %591 = vmatpush.msra.mxu0 %v522
  %592 = vmatpush.msra.mxu0 %v518
  %593 = vmatpush.msra.mxu0 %v514
  %594 = vmatmul.f32.gmra.mxu0 %v513
  %v595 = vpop.f32.mrf.mxu0
  %v596 = vadd.f32 0.0, %v595
  %597 = vdwg.mxu0
  %598 = vmatpush.msra.mxu0 %v575
  %599 = vmatpush.msra.mxu0 %v571
  %600 = vmatpush.msra.mxu0 %v567
  %601 = vmatpush.msra.mxu0 %v563
  %602 = vmatpush.msra.mxu0 %v559
  %603 = vmatpush.msra.mxu0 %v555
  %604 = vmatpush.msra.mxu0 %v551
  %605 = vmatpush.msra.mxu0 %v547
  %606 = vmatpush.msra.mxu0 %v543
  %607 = vmatpush.msra.mxu0 %v539
  %608 = vmatpush.msra.mxu0 %v535
  %609 = vmatpush.msra.mxu0 %v531
  %610 = vmatpush.msra.mxu0 %v527
  %611 = vmatpush.msra.mxu0 %v523
  %612 = vmatpush.msra.mxu0 %v519
  %613 = vmatpush.msra.mxu0 %v515
  %614 = vmatmul.f32.gmra.mxu0 %v513
  %v615 = vpop.f32.mrf.mxu0
  %v616 = vadd.f32 0.0, %v615
  %617 = vdwg.mxu0
  %618 = vmatpush.msra.mxu0 %v576
  %619 = vmatpush.msra.mxu0 %v572
  %620 = vmatpush.msra.mxu0 %v568
  %621 = vmatpush.msra.mxu0 %v564
  %622 = vmatpush.msra.mxu0 %v560
  %623 = vmatpush.msra.mxu0 %v556
  %624 = vmatpush.msra.mxu0 %v552
  %625 = vmatpush.msra.mxu0 %v548
  %626 = vmatpush.msra.mxu0 %v544
  %627 = vmatpush.msra.mxu0 %v540
  %628 = vmatpush.msra.mxu0 %v536
  %629 = vmatpush.msra.mxu0 %v532
  %630 = vmatpush.msra.mxu0 %v528
  %631 = vmatpush.msra.mxu0 %v524
  %632 = vmatpush.msra.mxu0 %v520
  %633 = vmatpush.msra.mxu0 %v516
  %634 = vmatmul.f32.gmra.mxu0 %v513
  %v635 = vpop.f32.mrf.mxu0
  %v636 = vadd.f32 0.0, %v635
  %637 = vdwg.mxu0
  %638 = vmatpush.msra.mxu0 %v577
  %639 = vmatpush.msra.mxu0 %v573
  %640 = vmatpush.msra.mxu0 %v569
  %641 = vmatpush.msra.mxu0 %v565
  %642 = vmatpush.msra.mxu0 %v561
  %643 = vmatpush.msra.mxu0 %v557
  %644 = vmatpush.msra.mxu0 %v553
  %645 = vmatpush.msra.mxu0 %v549
  %646 = vmatpush.msra.mxu0 %v545
  %647 = vmatpush.msra.mxu0 %v541
  %648 = vmatpush.msra.mxu0 %v537
  %649 = vmatpush.msra.mxu0 %v533
  %650 = vmatpush.msra.mxu0 %v529
  %651 = vmatpush.msra.mxu0 %v525
  %652 = vmatpush.msra.mxu0 %v521
  %653 = vmatpush.msra.mxu0 %v517
  %654 = vmatmul.f32.gmra.mxu0 %v513
  %v655 = vpop.f32.mrf.mxu0
  %v656 = vadd.f32 0.0, %v655
  %657 = vdwg.mxu0
  %v658 = vadd.f32 %v509, %v596
  %v659 = vadd.f32 %v510, %v616
  %v660 = vadd.f32 %v511, %v636
  %v661 = vadd.f32 %v512, %v656
  %v662 = vxor.u32 %v658, 2147483648
  %v663 = vmul.f32 %v662, 1.442695
  %v664 = vpow.pop %v663
  %v665 = vadd.f32 %v664, 1.0
  %v666 = vrcp.pop %v665
  %v667 = vmul.f32 %v665, %v666
  %v668 = vsub.f32 1.0, %v667
  %v669 = vmul.f32 %v666, %v668
  %v670 = vadd.f32 %v666, %v669
  %vm671 = vweird.f32 %v665
  %vm672 = vweird.f32 %v666
  %vm673 = vmor %vm671, %vm672
  %v674 = vsel %vm673, %v666, %v670
  %v675 = vand.u32 2147483647, %v665
  %vm676 = vcmp.eq.f32.partialorder %v675, 8.507059e+37
  %v677 = vand.u32 %v665, 2147483648
  %v678 = vor.u32 1.1754944e-38, %v677
  %v679 = vsel %vm676, %v678, %v674
  %v680 = vmul.f32 1.0, %v679
  %v681 = vxor.u32 %v659, 2147483648
  %v682 = vmul.f32 %v681, 1.442695
  %v683 = vpow.pop %v682
  %v684 = vadd.f32 %v683, 1.0
  %v685 = vrcp.pop %v684
  %v686 = vmul.f32 %v684, %v685
  %v687 = vsub.f32 1.0, %v686
  %v688 = vmul.f32 %v685, %v687
  %v689 = vadd.f32 %v685, %v688
  %vm690 = vweird.f32 %v684
  %vm691 = vweird.f32 %v685
  %vm692 = vmor %vm690, %vm691
  %v693 = vsel %vm692, %v685, %v689
  %v694 = vand.u32 2147483647, %v684
  %vm695 = vcmp.eq.f32.partialorder %v694, 8.507059e+37
  %v696 = vand.u32 %v684, 2147483648
  %v697 = vor.u32 1.1754944e-38, %v696
  %v698 = vsel %vm695, %v697, %v693
  %v699 = vmul.f32 1.0, %v698
  %v700 = vtanh.pop %v660
  %v701 = vxor.u32 %v661, 2147483648
  %v702 = vmul.f32 %v701, 1.442695
  %v703 = vpow.pop %v702
  %v704 = vadd.f32 %v703, 1.0
  %v705 = vrcp.pop %v704
  %v706 = vmul.f32 %v704, %v705
  %v707 = vsub.f32 1.0, %v706
  %v708 = vmul.f32 %v705, %v707
  %v709 = vadd.f32 %v705, %v708
  %vm710 = vweird.f32 %v704
  %vm711 = vweird.f32 %v705
  %vm712 = vmor %vm710, %vm711
  %v713 = vsel %vm712, %v705, %v709
  %v714 = vand.u32 2147483647, %v704
  %vm715 = vcmp.eq.f32.partialorder %v714, 8.507059e+37
  %v716 = vand.u32 %v704, 2147483648
  %v717 = vor.u32 1.1754944e-38, %v716
  %v718 = vsel %vm715, %v717, %v713
  %v719 = vmul.f32 1.0, %v718
  %v720 = vld [vmem:[#allocation4] sm:$0xff]
  %v721 = vmul.f32 %v699, %v720
  %v722 = vmul.f32 %v680, %v700
  %v723 = vadd.f32 %v721, %v722
  %v724 = vtanh.pop %v723
  %v725 = vmul.f32 %v719, %v724
  %726 = vst [vmem:[#allocation4] sm:$0xff] %v723
  %727 = vst [vmem:[#allocation3] sm:$0xff] %v725
  %s728 = smul.u32 2, 4
  %s729 = smul.addr %s728, 8
  %s730 = scalar_lea.vmem [#allocation2], %s729
  %v731 = vld [vmem:[%s730] sm:$0xff]
  %v732 = vld [vmem:[%s730 + $0x8] sm:$0xff]
  %v733 = vld [vmem:[%s730 + $0x10] sm:$0xff]
  %v734 = vld [vmem:[%s730 + $0x18] sm:$0xff]
  %v735 = vld [vmem:[#allocation3] sm:$0xff]
  %v736 = vld [vmem:[%s2] sm:$0xff]
  %v737 = vld [vmem:[%s2 + $0x8] sm:$0xff]
  %v738 = vld [vmem:[%s2 + $0x10] sm:$0xff]
  %v739 = vld [vmem:[%s2 + $0x18] sm:$0xff]
  %v740 = vld [vmem:[%s2 + $0x20] sm:$0xff]
  %v741 = vld [vmem:[%s2 + $0x28] sm:$0xff]
  %v742 = vld [vmem:[%s2 + $0x30] sm:$0xff]
  %v743 = vld [vmem:[%s2 + $0x38] sm:$0xff]
  %v744 = vld [vmem:[%s2 + $0x40] sm:$0xff]
  %v745 = vld [vmem:[%s2 + $0x48] sm:$0xff]
  %v746 = vld [vmem:[%s2 + $0x50] sm:$0xff]
  %v747 = vld [vmem:[%s2 + $0x58] sm:$0xff]
  %v748 = vld [vmem:[%s2 + $0x60] sm:$0xff]
  %v749 = vld [vmem:[%s2 + $0x68] sm:$0xff]
  %v750 = vld [vmem:[%s2 + $0x70] sm:$0xff]
  %v751 = vld [vmem:[%s2 + $0x78] sm:$0xff]
  %v752 = vld [vmem:[%s2 + $0x80] sm:$0xff]
  %v753 = vld [vmem:[%s2 + $0x88] sm:$0xff]
  %v754 = vld [vmem:[%s2 + $0x90] sm:$0xff]
  %v755 = vld [vmem:[%s2 + $0x98] sm:$0xff]
  %v756 = vld [vmem:[%s2 + $0xa0] sm:$0xff]
  %v757 = vld [vmem:[%s2 + $0xa8] sm:$0xff]
  %v758 = vld [vmem:[%s2 + $0xb0] sm:$0xff]
  %v759 = vld [vmem:[%s2 + $0xb8] sm:$0xff]
  %v760 = vld [vmem:[%s2 + $0xc0] sm:$0xff]
  %v761 = vld [vmem:[%s2 + $0xc8] sm:$0xff]
  %v762 = vld [vmem:[%s2 + $0xd0] sm:$0xff]
  %v763 = vld [vmem:[%s2 + $0xd8] sm:$0xff]
  %v764 = vld [vmem:[%s2 + $0xe0] sm:$0xff]
  %v765 = vld [vmem:[%s2 + $0xe8] sm:$0xff]
  %v766 = vld [vmem:[%s2 + $0xf0] sm:$0xff]
  %v767 = vld [vmem:[%s2 + $0xf8] sm:$0xff]
  %v768 = vld [vmem:[%s2 + $0x100] sm:$0xff]
  %v769 = vld [vmem:[%s2 + $0x108] sm:$0xff]
  %v770 = vld [vmem:[%s2 + $0x110] sm:$0xff]
  %v771 = vld [vmem:[%s2 + $0x118] sm:$0xff]
  %v772 = vld [vmem:[%s2 + $0x120] sm:$0xff]
  %v773 = vld [vmem:[%s2 + $0x128] sm:$0xff]
  %v774 = vld [vmem:[%s2 + $0x130] sm:$0xff]
  %v775 = vld [vmem:[%s2 + $0x138] sm:$0xff]
  %v776 = vld [vmem:[%s2 + $0x140] sm:$0xff]
  %v777 = vld [vmem:[%s2 + $0x148] sm:$0xff]
  %v778 = vld [vmem:[%s2 + $0x150] sm:$0xff]
  %v779 = vld [vmem:[%s2 + $0x158] sm:$0xff]
  %v780 = vld [vmem:[%s2 + $0x160] sm:$0xff]
  %v781 = vld [vmem:[%s2 + $0x168] sm:$0xff]
  %v782 = vld [vmem:[%s2 + $0x170] sm:$0xff]
  %v783 = vld [vmem:[%s2 + $0x178] sm:$0xff]
  %v784 = vld [vmem:[%s2 + $0x180] sm:$0xff]
  %v785 = vld [vmem:[%s2 + $0x188] sm:$0xff]
  %v786 = vld [vmem:[%s2 + $0x190] sm:$0xff]
  %v787 = vld [vmem:[%s2 + $0x198] sm:$0xff]
  %v788 = vld [vmem:[%s2 + $0x1a0] sm:$0xff]
  %v789 = vld [vmem:[%s2 + $0x1a8] sm:$0xff]
  %v790 = vld [vmem:[%s2 + $0x1b0] sm:$0xff]
  %v791 = vld [vmem:[%s2 + $0x1b8] sm:$0xff]
  %v792 = vld [vmem:[%s2 + $0x1c0] sm:$0xff]
  %v793 = vld [vmem:[%s2 + $0x1c8] sm:$0xff]
  %v794 = vld [vmem:[%s2 + $0x1d0] sm:$0xff]
  %v795 = vld [vmem:[%s2 + $0x1d8] sm:$0xff]
  %v796 = vld [vmem:[%s2 + $0x1e0] sm:$0xff]
  %v797 = vld [vmem:[%s2 + $0x1e8] sm:$0xff]
  %v798 = vld [vmem:[%s2 + $0x1f0] sm:$0xff]
  %v799 = vld [vmem:[%s2 + $0x1f8] sm:$0xff]
  %800 = vmatpush.msra.mxu0 %v796
  %801 = vmatpush.msra.mxu0 %v792
  %802 = vmatpush.msra.mxu0 %v788
  %803 = vmatpush.msra.mxu0 %v784
  %804 = vmatpush.msra.mxu0 %v780
  %805 = vmatpush.msra.mxu0 %v776
  %806 = vmatpush.msra.mxu0 %v772
  %807 = vmatpush.msra.mxu0 %v768
  %808 = vmatpush.msra.mxu0 %v764
  %809 = vmatpush.msra.mxu0 %v760
  %810 = vmatpush.msra.mxu0 %v756
  %811 = vmatpush.msra.mxu0 %v752
  %812 = vmatpush.msra.mxu0 %v748
  %813 = vmatpush.msra.mxu0 %v744
  %814 = vmatpush.msra.mxu0 %v740
  %815 = vmatpush.msra.mxu0 %v736
  %816 = vmatmul.f32.gmra.mxu0 %v735
  %v817 = vpop.f32.mrf.mxu0
  %v818 = vadd.f32 0.0, %v817
  %819 = vdwg.mxu0
  %820 = vmatpush.msra.mxu0 %v797
  %821 = vmatpush.msra.mxu0 %v793
  %822 = vmatpush.msra.mxu0 %v789
  %823 = vmatpush.msra.mxu0 %v785
  %824 = vmatpush.msra.mxu0 %v781
  %825 = vmatpush.msra.mxu0 %v777
  %826 = vmatpush.msra.mxu0 %v773
  %827 = vmatpush.msra.mxu0 %v769
  %828 = vmatpush.msra.mxu0 %v765
  %829 = vmatpush.msra.mxu0 %v761
  %830 = vmatpush.msra.mxu0 %v757
  %831 = vmatpush.msra.mxu0 %v753
  %832 = vmatpush.msra.mxu0 %v749
  %833 = vmatpush.msra.mxu0 %v745
  %834 = vmatpush.msra.mxu0 %v741
  %835 = vmatpush.msra.mxu0 %v737
  %836 = vmatmul.f32.gmra.mxu0 %v735
  %v837 = vpop.f32.mrf.mxu0
  %v838 = vadd.f32 0.0, %v837
  %839 = vdwg.mxu0
  %840 = vmatpush.msra.mxu0 %v798
  %841 = vmatpush.msra.mxu0 %v794
  %842 = vmatpush.msra.mxu0 %v790
  %843 = vmatpush.msra.mxu0 %v786
  %844 = vmatpush.msra.mxu0 %v782
  %845 = vmatpush.msra.mxu0 %v778
  %846 = vmatpush.msra.mxu0 %v774
  %847 = vmatpush.msra.mxu0 %v770
  %848 = vmatpush.msra.mxu0 %v766
  %849 = vmatpush.msra.mxu0 %v762
  %850 = vmatpush.msra.mxu0 %v758
  %851 = vmatpush.msra.mxu0 %v754
  %852 = vmatpush.msra.mxu0 %v750
  %853 = vmatpush.msra.mxu0 %v746
  %854 = vmatpush.msra.mxu0 %v742
  %855 = vmatpush.msra.mxu0 %v738
  %856 = vmatmul.f32.gmra.mxu0 %v735
  %v857 = vpop.f32.mrf.mxu0
  %v858 = vadd.f32 0.0, %v857
  %859 = vdwg.mxu0
  %860 = vmatpush.msra.mxu0 %v799
  %861 = vmatpush.msra.mxu0 %v795
  %862 = vmatpush.msra.mxu0 %v791
  %863 = vmatpush.msra.mxu0 %v787
  %864 = vmatpush.msra.mxu0 %v783
  %865 = vmatpush.msra.mxu0 %v779
  %866 = vmatpush.msra.mxu0 %v775
  %867 = vmatpush.msra.mxu0 %v771
  %868 = vmatpush.msra.mxu0 %v767
  %869 = vmatpush.msra.mxu0 %v763
  %870 = vmatpush.msra.mxu0 %v759
  %871 = vmatpush.msra.mxu0 %v755
  %872 = vmatpush.msra.mxu0 %v751
  %873 = vmatpush.msra.mxu0 %v747
  %874 = vmatpush.msra.mxu0 %v743
  %875 = vmatpush.msra.mxu0 %v739
  %876 = vmatmul.f32.gmra.mxu0 %v735
  %v877 = vpop.f32.mrf.mxu0
  %v878 = vadd.f32 0.0, %v877
  %879 = vdwg.mxu0
  %v880 = vadd.f32 %v731, %v818
  %v881 = vadd.f32 %v732, %v838
  %v882 = vadd.f32 %v733, %v858
  %v883 = vadd.f32 %v734, %v878
  %v884 = vxor.u32 %v880, 2147483648
  %v885 = vmul.f32 %v884, 1.442695
  %v886 = vpow.pop %v885
  %v887 = vadd.f32 %v886, 1.0
  %v888 = vrcp.pop %v887
  %v889 = vmul.f32 %v887, %v888
  %v890 = vsub.f32 1.0, %v889
  %v891 = vmul.f32 %v888, %v890
  %v892 = vadd.f32 %v888, %v891
  %vm893 = vweird.f32 %v887
  %vm894 = vweird.f32 %v888
  %vm895 = vmor %vm893, %vm894
  %v896 = vsel %vm895, %v888, %v892
  %v897 = vand.u32 2147483647, %v887
  %vm898 = vcmp.eq.f32.partialorder %v897, 8.507059e+37
  %v899 = vand.u32 %v887, 2147483648
  %v900 = vor.u32 1.1754944e-38, %v899
  %v901 = vsel %vm898, %v900, %v896
  %v902 = vmul.f32 1.0, %v901
  %v903 = vxor.u32 %v881, 2147483648
  %v904 = vmul.f32 %v903, 1.442695
  %v905 = vpow.pop %v904
  %v906 = vadd.f32 %v905, 1.0
  %v907 = vrcp.pop %v906
  %v908 = vmul.f32 %v906, %v907
  %v909 = vsub.f32 1.0, %v908
  %v910 = vmul.f32 %v907, %v909
  %v911 = vadd.f32 %v907, %v910
  %vm912 = vweird.f32 %v906
  %vm913 = vweird.f32 %v907
  %vm914 = vmor %vm912, %vm913
  %v915 = vsel %vm914, %v907, %v911
  %v916 = vand.u32 2147483647, %v906
  %vm917 = vcmp.eq.f32.partialorder %v916, 8.507059e+37
  %v918 = vand.u32 %v906, 2147483648
  %v919 = vor.u32 1.1754944e-38, %v918
  %v920 = vsel %vm917, %v919, %v915
  %v921 = vmul.f32 1.0, %v920
  %v922 = vtanh.pop %v882
  %v923 = vxor.u32 %v883, 2147483648
  %v924 = vmul.f32 %v923, 1.442695
  %v925 = vpow.pop %v924
  %v926 = vadd.f32 %v925, 1.0
  %v927 = vrcp.pop %v926
  %v928 = vmul.f32 %v926, %v927
  %v929 = vsub.f32 1.0, %v928
  %v930 = vmul.f32 %v927, %v929
  %v931 = vadd.f32 %v927, %v930
  %vm932 = vweird.f32 %v926
  %vm933 = vweird.f32 %v927
  %vm934 = vmor %vm932, %vm933
  %v935 = vsel %vm934, %v927, %v931
  %v936 = vand.u32 2147483647, %v926
  %vm937 = vcmp.eq.f32.partialorder %v936, 8.507059e+37
  %v938 = vand.u32 %v926, 2147483648
  %v939 = vor.u32 1.1754944e-38, %v938
  %v940 = vsel %vm937, %v939, %v935
  %v941 = vmul.f32 1.0, %v940
  %v942 = vld [vmem:[#allocation4] sm:$0xff]
  %v943 = vmul.f32 %v921, %v942
  %v944 = vmul.f32 %v902, %v922
  %v945 = vadd.f32 %v943, %v944
  %v946 = vtanh.pop %v945
  %v947 = vmul.f32 %v941, %v946
  %948 = vst [vmem:[#allocation4] sm:$0xff] %v945
  %949 = vst [vmem:[#allocation3] sm:$0xff] %v947
  %s950 = smul.u32 3, 4
  %s951 = smul.addr %s950, 8
  %s952 = scalar_lea.vmem [#allocation2], %s951
  %v953 = vld [vmem:[%s952] sm:$0xff]
  %v954 = vld [vmem:[%s952 + $0x8] sm:$0xff]
  %v955 = vld [vmem:[%s952 + $0x10] sm:$0xff]
  %v956 = vld [vmem:[%s952 + $0x18] sm:$0xff]
  %v957 = vld [vmem:[#allocation3] sm:$0xff]
  %v958 = vld [vmem:[%s2] sm:$0xff]
  %v959 = vld [vmem:[%s2 + $0x8] sm:$0xff]
  %v960 = vld [vmem:[%s2 + $0x10] sm:$0xff]
  %v961 = vld [vmem:[%s2 + $0x18] sm:$0xff]
  %v962 = vld [vmem:[%s2 + $0x20] sm:$0xff]
  %v963 = vld [vmem:[%s2 + $0x28] sm:$0xff]
  %v964 = vld [vmem:[%s2 + $0x30] sm:$0xff]
  %v965 = vld [vmem:[%s2 + $0x38] sm:$0xff]
  %v966 = vld [vmem:[%s2 + $0x40] sm:$0xff]
  %v967 = vld [vmem:[%s2 + $0x48] sm:$0xff]
  %v968 = vld [vmem:[%s2 + $0x50] sm:$0xff]
  %v969 = vld [vmem:[%s2 + $0x58] sm:$0xff]
  %v970 = vld [vmem:[%s2 + $0x60] sm:$0xff]
  %v971 = vld [vmem:[%s2 + $0x68] sm:$0xff]
  %v972 = vld [vmem:[%s2 + $0x70] sm:$0xff]
  %v973 = vld [vmem:[%s2 + $0x78] sm:$0xff]
  %v974 = vld [vmem:[%s2 + $0x80] sm:$0xff]
  %v975 = vld [vmem:[%s2 + $0x88] sm:$0xff]
  %v976 = vld [vmem:[%s2 + $0x90] sm:$0xff]
  %v977 = vld [vmem:[%s2 + $0x98] sm:$0xff]
  %v978 = vld [vmem:[%s2 + $0xa0] sm:$0xff]
  %v979 = vld [vmem:[%s2 + $0xa8] sm:$0xff]
  %v980 = vld [vmem:[%s2 + $0xb0] sm:$0xff]
  %v981 = vld [vmem:[%s2 + $0xb8] sm:$0xff]
  %v982 = vld [vmem:[%s2 + $0xc0] sm:$0xff]
  %v983 = vld [vmem:[%s2 + $0xc8] sm:$0xff]
  %v984 = vld [vmem:[%s2 + $0xd0] sm:$0xff]
  %v985 = vld [vmem:[%s2 + $0xd8] sm:$0xff]
  %v986 = vld [vmem:[%s2 + $0xe0] sm:$0xff]
  %v987 = vld [vmem:[%s2 + $0xe8] sm:$0xff]
  %v988 = vld [vmem:[%s2 + $0xf0] sm:$0xff]
  %v989 = vld [vmem:[%s2 + $0xf8] sm:$0xff]
  %v990 = vld [vmem:[%s2 + $0x100] sm:$0xff]
  %v991 = vld [vmem:[%s2 + $0x108] sm:$0xff]
  %v992 = vld [vmem:[%s2 + $0x110] sm:$0xff]
  %v993 = vld [vmem:[%s2 + $0x118] sm:$0xff]
  %v994 = vld [vmem:[%s2 + $0x120] sm:$0xff]
  %v995 = vld [vmem:[%s2 + $0x128] sm:$0xff]
  %v996 = vld [vmem:[%s2 + $0x130] sm:$0xff]
  %v997 = vld [vmem:[%s2 + $0x138] sm:$0xff]
  %v998 = vld [vmem:[%s2 + $0x140] sm:$0xff]
  %v999 = vld [vmem:[%s2 + $0x148] sm:$0xff]
  %v1000 = vld [vmem:[%s2 + $0x150] sm:$0xff]
  %v1001 = vld [vmem:[%s2 + $0x158] sm:$0xff]
  %v1002 = vld [vmem:[%s2 + $0x160] sm:$0xff]
  %v1003 = vld [vmem:[%s2 + $0x168] sm:$0xff]
  %v1004 = vld [vmem:[%s2 + $0x170] sm:$0xff]
  %v1005 = vld [vmem:[%s2 + $0x178] sm:$0xff]
  %v1006 = vld [vmem:[%s2 + $0x180] sm:$0xff]
  %v1007 = vld [vmem:[%s2 + $0x188] sm:$0xff]
  %v1008 = vld [vmem:[%s2 + $0x190] sm:$0xff]
  %v1009 = vld [vmem:[%s2 + $0x198] sm:$0xff]
  %v1010 = vld [vmem:[%s2 + $0x1a0] sm:$0xff]
  %v1011 = vld [vmem:[%s2 + $0x1a8] sm:$0xff]
  %v1012 = vld [vmem:[%s2 + $0x1b0] sm:$0xff]
  %v1013 = vld [vmem:[%s2 + $0x1b8] sm:$0xff]
  %v1014 = vld [vmem:[%s2 + $0x1c0] sm:$0xff]
  %v1015 = vld [vmem:[%s2 + $0x1c8] sm:$0xff]
  %v1016 = vld [vmem:[%s2 + $0x1d0] sm:$0xff]
  %v1017 = vld [vmem:[%s2 + $0x1d8] sm:$0xff]
  %v1018 = vld [vmem:[%s2 + $0x1e0] sm:$0xff]
  %v1019 = vld [vmem:[%s2 + $0x1e8] sm:$0xff]
  %v1020 = vld [vmem:[%s2 + $0x1f0] sm:$0xff]
  %v1021 = vld [vmem:[%s2 + $0x1f8] sm:$0xff]
  %1022 = vmatpush.msra.mxu0 %v1018
  %1023 = vmatpush.msra.mxu0 %v1014
  %1024 = vmatpush.msra.mxu0 %v1010
  %1025 = vmatpush.msra.mxu0 %v1006
  %1026 = vmatpush.msra.mxu0 %v1002
  %1027 = vmatpush.msra.mxu0 %v998
  %1028 = vmatpush.msra.mxu0 %v994
  %1029 = vmatpush.msra.mxu0 %v990
  %1030 = vmatpush.msra.mxu0 %v986
  %1031 = vmatpush.msra.mxu0 %v982
  %1032 = vmatpush.msra.mxu0 %v978
  %1033 = vmatpush.msra.mxu0 %v974
  %1034 = vmatpush.msra.mxu0 %v970
  %1035 = vmatpush.msra.mxu0 %v966
  %1036 = vmatpush.msra.mxu0 %v962
  %1037 = vmatpush.msra.mxu0 %v958
  %1038 = vmatmul.f32.gmra.mxu0 %v957
  %v1039 = vpop.f32.mrf.mxu0
  %v1040 = vadd.f32 0.0, %v1039
  %1041 = vdwg.mxu0
  %1042 = vmatpush.msra.mxu0 %v1019
  %1043 = vmatpush.msra.mxu0 %v1015
  %1044 = vmatpush.msra.mxu0 %v1011
  %1045 = vmatpush.msra.mxu0 %v1007
  %1046 = vmatpush.msra.mxu0 %v1003
  %1047 = vmatpush.msra.mxu0 %v999
  %1048 = vmatpush.msra.mxu0 %v995
  %1049 = vmatpush.msra.mxu0 %v991
  %1050 = vmatpush.msra.mxu0 %v987
  %1051 = vmatpush.msra.mxu0 %v983
  %1052 = vmatpush.msra.mxu0 %v979
  %1053 = vmatpush.msra.mxu0 %v975
  %1054 = vmatpush.msra.mxu0 %v971
  %1055 = vmatpush.msra.mxu0 %v967
  %1056 = vmatpush.msra.mxu0 %v963
  %1057 = vmatpush.msra.mxu0 %v959
  %1058 = vmatmul.f32.gmra.mxu0 %v957
  %v1059 = vpop.f32.mrf.mxu0
  %v1060 = vadd.f32 0.0, %v1059
  %1061 = vdwg.mxu0
  %1062 = vmatpush.msra.mxu0 %v1020
  %1063 = vmatpush.msra.mxu0 %v1016
  %1064 = vmatpush.msra.mxu0 %v1012
  %1065 = vmatpush.msra.mxu0 %v1008
  %1066 = vmatpush.msra.mxu0 %v1004
  %1067 = vmatpush.msra.mxu0 %v1000
  %1068 = vmatpush.msra.mxu0 %v996
  %1069 = vmatpush.msra.mxu0 %v992
  %1070 = vmatpush.msra.mxu0 %v988
  %1071 = vmatpush.msra.mxu0 %v984
  %1072 = vmatpush.msra.mxu0 %v980
  %1073 = vmatpush.msra.mxu0 %v976
  %1074 = vmatpush.msra.mxu0 %v972
  %1075 = vmatpush.msra.mxu0 %v968
  %1076 = vmatpush.msra.mxu0 %v964
  %1077 = vmatpush.msra.mxu0 %v960
  %1078 = vmatmul.f32.gmra.mxu0 %v957
  %v1079 = vpop.f32.mrf.mxu0
  %v1080 = vadd.f32 0.0, %v1079
  %1081 = vdwg.mxu0
  %1082 = vmatpush.msra.mxu0 %v1021
  %1083 = vmatpush.msra.mxu0 %v1017
  %1084 = vmatpush.msra.mxu0 %v1013
  %1085 = vmatpush.msra.mxu0 %v1009
  %1086 = vmatpush.msra.mxu0 %v1005
  %1087 = vmatpush.msra.mxu0 %v1001
  %1088 = vmatpush.msra.mxu0 %v997
  %1089 = vmatpush.msra.mxu0 %v993
  %1090 = vmatpush.msra.mxu0 %v989
  %1091 = vmatpush.msra.mxu0 %v985
  %1092 = vmatpush.msra.mxu0 %v981
  %1093 = vmatpush.msra.mxu0 %v977
  %1094 = vmatpush.msra.mxu0 %v973
  %1095 = vmatpush.msra.mxu0 %v969
  %1096 = vmatpush.msra.mxu0 %v965
  %1097 = vmatpush.msra.mxu0 %v961
  %1098 = vmatmul.f32.gmra.mxu0 %v957
  %v1099 = vpop.f32.mrf.mxu0
  %v1100 = vadd.f32 0.0, %v1099
  %1101 = vdwg.mxu0
  %v1102 = vadd.f32 %v953, %v1040
  %v1103 = vadd.f32 %v954, %v1060
  %v1104 = vadd.f32 %v955, %v1080
  %v1105 = vadd.f32 %v956, %v1100
  %v1106 = vxor.u32 %v1102, 2147483648
  %v1107 = vmul.f32 %v1106, 1.442695
  %v1108 = vpow.pop %v1107
  %v1109 = vadd.f32 %v1108, 1.0
  %v1110 = vrcp.pop %v1109
  %v1111 = vmul.f32 %v1109, %v1110
  %v1112 = vsub.f32 1.0, %v1111
  %v1113 = vmul.f32 %v1110, %v1112
  %v1114 = vadd.f32 %v1110, %v1113
  %vm1115 = vweird.f32 %v1109
  %vm1116 = vweird.f32 %v1110
  %vm1117 = vmor %vm1115, %vm1116
  %v1118 = vsel %vm1117, %v1110, %v1114
  %v1119 = vand.u32 2147483647, %v1109
  %vm1120 = vcmp.eq.f32.partialorder %v1119, 8.507059e+37
  %v1121 = vand.u32 %v1109, 2147483648
  %v1122 = vor.u32 1.1754944e-38, %v1121
  %v1123 = vsel %vm1120, %v1122, %v1118
  %v1124 = vmul.f32 1.0, %v1123
  %v1125 = vxor.u32 %v1103, 2147483648
  %v1126 = vmul.f32 %v1125, 1.442695
  %v1127 = vpow.pop %v1126
  %v1128 = vadd.f32 %v1127, 1.0
  %v1129 = vrcp.pop %v1128
  %v1130 = vmul.f32 %v1128, %v1129
  %v1131 = vsub.f32 1.0, %v1130
  %v1132 = vmul.f32 %v1129, %v1131
  %v1133 = vadd.f32 %v1129, %v1132
  %vm1134 = vweird.f32 %v1128
  %vm1135 = vweird.f32 %v1129
  %vm1136 = vmor %vm1134, %vm1135
  %v1137 = vsel %vm1136, %v1129, %v1133
  %v1138 = vand.u32 2147483647, %v1128
  %vm1139 = vcmp.eq.f32.partialorder %v1138, 8.507059e+37
  %v1140 = vand.u32 %v1128, 2147483648
  %v1141 = vor.u32 1.1754944e-38, %v1140
  %v1142 = vsel %vm1139, %v1141, %v1137
  %v1143 = vmul.f32 1.0, %v1142
  %v1144 = vtanh.pop %v1104
  %v1145 = vxor.u32 %v1105, 2147483648
  %v1146 = vmul.f32 %v1145, 1.442695
  %v1147 = vpow.pop %v1146
  %v1148 = vadd.f32 %v1147, 1.0
  %v1149 = vrcp.pop %v1148
  %v1150 = vmul.f32 %v1148, %v1149
  %v1151 = vsub.f32 1.0, %v1150
  %v1152 = vmul.f32 %v1149, %v1151
  %v1153 = vadd.f32 %v1149, %v1152
  %vm1154 = vweird.f32 %v1148
  %vm1155 = vweird.f32 %v1149
  %vm1156 = vmor %vm1154, %vm1155
  %v1157 = vsel %vm1156, %v1149, %v1153
  %v1158 = vand.u32 2147483647, %v1148
  %vm1159 = vcmp.eq.f32.partialorder %v1158, 8.507059e+37
  %v1160 = vand.u32 %v1148, 2147483648
  %v1161 = vor.u32 1.1754944e-38, %v1160
  %v1162 = vsel %vm1159, %v1161, %v1157
  %v1163 = vmul.f32 1.0, %v1162
  %v1164 = vld [vmem:[#allocation4] sm:$0xff]
  %v1165 = vmul.f32 %v1143, %v1164
  %v1166 = vmul.f32 %v1124, %v1144
  %v1167 = vadd.f32 %v1165, %v1166
  %v1168 = vtanh.pop %v1167
  %v1169 = vmul.f32 %v1163, %v1168
  %1170 = vst [vmem:[#allocation4] sm:$0xff] %v1167
  %1171 = vst [vmem:[#allocation3] sm:$0xff] %v1169
  %s1172 = smul.u32 4, 4
  %s1173 = smul.addr %s1172, 8
  %s1174 = scalar_lea.vmem [#allocation2], %s1173
  %v1175 = vld [vmem:[%s1174] sm:$0xff]
  %v1176 = vld [vmem:[%s1174 + $0x8] sm:$0xff]
  %v1177 = vld [vmem:[%s1174 + $0x10] sm:$0xff]
  %v1178 = vld [vmem:[%s1174 + $0x18] sm:$0xff]
  %v1179 = vld [vmem:[#allocation3] sm:$0xff]
  %v1180 = vld [vmem:[%s2] sm:$0xff]
  %v1181 = vld [vmem:[%s2 + $0x8] sm:$0xff]
  %v1182 = vld [vmem:[%s2 + $0x10] sm:$0xff]
  %v1183 = vld [vmem:[%s2 + $0x18] sm:$0xff]
  %v1184 = vld [vmem:[%s2 + $0x20] sm:$0xff]
  %v1185 = vld [vmem:[%s2 + $0x28] sm:$0xff]
  %v1186 = vld [vmem:[%s2 + $0x30] sm:$0xff]
  %v1187 = vld [vmem:[%s2 + $0x38] sm:$0xff]
  %v1188 = vld [vmem:[%s2 + $0x40] sm:$0xff]
  %v1189 = vld [vmem:[%s2 + $0x48] sm:$0xff]
  %v1190 = vld [vmem:[%s2 + $0x50] sm:$0xff]
  %v1191 = vld [vmem:[%s2 + $0x58] sm:$0xff]
  %v1192 = vld [vmem:[%s2 + $0x60] sm:$0xff]
  %v1193 = vld [vmem:[%s2 + $0x68] sm:$0xff]
  %v1194 = vld [vmem:[%s2 + $0x70] sm:$0xff]
  %v1195 = vld [vmem:[%s2 + $0x78] sm:$0xff]
  %v1196 = vld [vmem:[%s2 + $0x80] sm:$0xff]
  %v1197 = vld [vmem:[%s2 + $0x88] sm:$0xff]
  %v1198 = vld [vmem:[%s2 + $0x90] sm:$0xff]
  %v1199 = vld [vmem:[%s2 + $0x98] sm:$0xff]
  %v1200 = vld [vmem:[%s2 + $0xa0] sm:$0xff]
  %v1201 = vld [vmem:[%s2 + $0xa8] sm:$0xff]
  %v1202 = vld [vmem:[%s2 + $0xb0] sm:$0xff]
  %v1203 = vld [vmem:[%s2 + $0xb8] sm:$0xff]
  %v1204 = vld [vmem:[%s2 + $0xc0] sm:$0xff]
  %v1205 = vld [vmem:[%s2 + $0xc8] sm:$0xff]
  %v1206 = vld [vmem:[%s2 + $0xd0] sm:$0xff]
  %v1207 = vld [vmem:[%s2 + $0xd8] sm:$0xff]
  %v1208 = vld [vmem:[%s2 + $0xe0] sm:$0xff]
  %v1209 = vld [vmem:[%s2 + $0xe8] sm:$0xff]
  %v1210 = vld [vmem:[%s2 + $0xf0] sm:$0xff]
  %v1211 = vld [vmem:[%s2 + $0xf8] sm:$0xff]
  %v1212 = vld [vmem:[%s2 + $0x100] sm:$0xff]
  %v1213 = vld [vmem:[%s2 + $0x108] sm:$0xff]
  %v1214 = vld [vmem:[%s2 + $0x110] sm:$0xff]
  %v1215 = vld [vmem:[%s2 + $0x118] sm:$0xff]
  %v1216 = vld [vmem:[%s2 + $0x120] sm:$0xff]
  %v1217 = vld [vmem:[%s2 + $0x128] sm:$0xff]
  %v1218 = vld [vmem:[%s2 + $0x130] sm:$0xff]
  %v1219 = vld [vmem:[%s2 + $0x138] sm:$0xff]
  %v1220 = vld [vmem:[%s2 + $0x140] sm:$0xff]
  %v1221 = vld [vmem:[%s2 + $0x148] sm:$0xff]
  %v1222 = vld [vmem:[%s2 + $0x150] sm:$0xff]
  %v1223 = vld [vmem:[%s2 + $0x158] sm:$0xff]
  %v1224 = vld [vmem:[%s2 + $0x160] sm:$0xff]
  %v1225 = vld [vmem:[%s2 + $0x168] sm:$0xff]
  %v1226 = vld [vmem:[%s2 + $0x170] sm:$0xff]
  %v1227 = vld [vmem:[%s2 + $0x178] sm:$0xff]
  %v1228 = vld [vmem:[%s2 + $0x180] sm:$0xff]
  %v1229 = vld [vmem:[%s2 + $0x188] sm:$0xff]
  %v1230 = vld [vmem:[%s2 + $0x190] sm:$0xff]
  %v1231 = vld [vmem:[%s2 + $0x198] sm:$0xff]
  %v1232 = vld [vmem:[%s2 + $0x1a0] sm:$0xff]
  %v1233 = vld [vmem:[%s2 + $0x1a8] sm:$0xff]
  %v1234 = vld [vmem:[%s2 + $0x1b0] sm:$0xff]
  %v1235 = vld [vmem:[%s2 + $0x1b8] sm:$0xff]
  %v1236 = vld [vmem:[%s2 + $0x1c0] sm:$0xff]
  %v1237 = vld [vmem:[%s2 + $0x1c8] sm:$0xff]
  %v1238 = vld [vmem:[%s2 + $0x1d0] sm:$0xff]
  %v1239 = vld [vmem:[%s2 + $0x1d8] sm:$0xff]
  %v1240 = vld [vmem:[%s2 + $0x1e0] sm:$0xff]
  %v1241 = vld [vmem:[%s2 + $0x1e8] sm:$0xff]
  %v1242 = vld [vmem:[%s2 + $0x1f0] sm:$0xff]
  %v1243 = vld [vmem:[%s2 + $0x1f8] sm:$0xff]
  %1244 = vmatpush.msra.mxu0 %v1240
  %1245 = vmatpush.msra.mxu0 %v1236
  %1246 = vmatpush.msra.mxu0 %v1232
  %1247 = vmatpush.msra.mxu0 %v1228
  %1248 = vmatpush.msra.mxu0 %v1224
  %1249 = vmatpush.msra.mxu0 %v1220
  %1250 = vmatpush.msra.mxu0 %v1216
  %1251 = vmatpush.msra.mxu0 %v1212
  %1252 = vmatpush.msra.mxu0 %v1208
  %1253 = vmatpush.msra.mxu0 %v1204
  %1254 = vmatpush.msra.mxu0 %v1200
  %1255 = vmatpush.msra.mxu0 %v1196
  %1256 = vmatpush.msra.mxu0 %v1192
  %1257 = vmatpush.msra.mxu0 %v1188
  %1258 = vmatpush.msra.mxu0 %v1184
  %1259 = vmatpush.msra.mxu0 %v1180
  %1260 = vmatmul.f32.gmra.mxu0 %v1179
  %v1261 = vpop.f32.mrf.mxu0
  %v1262 = vadd.f32 0.0, %v1261
  %1263 = vdwg.mxu0
  %1264 = vmatpush.msra.mxu0 %v1241
  %1265 = vmatpush.msra.mxu0 %v1237
  %1266 = vmatpush.msra.mxu0 %v1233
  %1267 = vmatpush.msra.mxu0 %v1229
  %1268 = vmatpush.msra.mxu0 %v1225
  %1269 = vmatpush.msra.mxu0 %v1221
  %1270 = vmatpush.msra.mxu0 %v1217
  %1271 = vmatpush.msra.mxu0 %v1213
  %1272 = vmatpush.msra.mxu0 %v1209
  %1273 = vmatpush.msra.mxu0 %v1205
  %1274 = vmatpush.msra.mxu0 %v1201
  %1275 = vmatpush.msra.mxu0 %v1197
  %1276 = vmatpush.msra.mxu0 %v1193
  %1277 = vmatpush.msra.mxu0 %v1189
  %1278 = vmatpush.msra.mxu0 %v1185
  %1279 = vmatpush.msra.mxu0 %v1181
  %1280 = vmatmul.f32.gmra.mxu0 %v1179
  %v1281 = vpop.f32.mrf.mxu0
  %v1282 = vadd.f32 0.0, %v1281
  %1283 = vdwg.mxu0
  %1284 = vmatpush.msra.mxu0 %v1242
  %1285 = vmatpush.msra.mxu0 %v1238
  %1286 = vmatpush.msra.mxu0 %v1234
  %1287 = vmatpush.msra.mxu0 %v1230
  %1288 = vmatpush.msra.mxu0 %v1226
  %1289 = vmatpush.msra.mxu0 %v1222
  %1290 = vmatpush.msra.mxu0 %v1218
  %1291 = vmatpush.msra.mxu0 %v1214
  %1292 = vmatpush.msra.mxu0 %v1210
  %1293 = vmatpush.msra.mxu0 %v1206
  %1294 = vmatpush.msra.mxu0 %v1202
  %1295 = vmatpush.msra.mxu0 %v1198
  %1296 = vmatpush.msra.mxu0 %v1194
  %1297 = vmatpush.msra.mxu0 %v1190
  %1298 = vmatpush.msra.mxu0 %v1186
  %1299 = vmatpush.msra.mxu0 %v1182
  %1300 = vmatmul.f32.gmra.mxu0 %v1179
  %v1301 = vpop.f32.mrf.mxu0
  %v1302 = vadd.f32 0.0, %v1301
  %1303 = vdwg.mxu0
  %1304 = vmatpush.msra.mxu0 %v1243
  %1305 = vmatpush.msra.mxu0 %v1239
  %1306 = vmatpush.msra.mxu0 %v1235
  %1307 = vmatpush.msra.mxu0 %v1231
  %1308 = vmatpush.msra.mxu0 %v1227
  %1309 = vmatpush.msra.mxu0 %v1223
  %1310 = vmatpush.msra.mxu0 %v1219
  %1311 = vmatpush.msra.mxu0 %v1215
  %1312 = vmatpush.msra.mxu0 %v1211
  %1313 = vmatpush.msra.mxu0 %v1207
  %1314 = vmatpush.msra.mxu0 %v1203
  %1315 = vmatpush.msra.mxu0 %v1199
  %1316 = vmatpush.msra.mxu0 %v1195
  %1317 = vmatpush.msra.mxu0 %v1191
  %1318 = vmatpush.msra.mxu0 %v1187
  %1319 = vmatpush.msra.mxu0 %v1183
  %1320 = vmatmul.f32.gmra.mxu0 %v1179
  %v1321 = vpop.f32.mrf.mxu0
  %v1322 = vadd.f32 0.0, %v1321
  %1323 = vdwg.mxu0
  %v1324 = vadd.f32 %v1175, %v1262
  %v1325 = vadd.f32 %v1176, %v1282
  %v1326 = vadd.f32 %v1177, %v1302
  %v1327 = vadd.f32 %v1178, %v1322
  %v1328 = vxor.u32 %v1324, 2147483648
  %v1329 = vmul.f32 %v1328, 1.442695
  %v1330 = vpow.pop %v1329
  %v1331 = vadd.f32 %v1330, 1.0
  %v1332 = vrcp.pop %v1331
  %v1333 = vmul.f32 %v1331, %v1332
  %v1334 = vsub.f32 1.0, %v1333
  %v1335 = vmul.f32 %v1332, %v1334
  %v1336 = vadd.f32 %v1332, %v1335
  %vm1337 = vweird.f32 %v1331
  %vm1338 = vweird.f32 %v1332
  %vm1339 = vmor %vm1337, %vm1338
  %v1340 = vsel %vm1339, %v1332, %v1336
  %v1341 = vand.u32 2147483647, %v1331
  %vm1342 = vcmp.eq.f32.partialorder %v1341, 8.507059e+37
  %v1343 = vand.u32 %v1331, 2147483648
  %v1344 = vor.u32 1.1754944e-38, %v1343
  %v1345 = vsel %vm1342, %v1344, %v1340
  %v1346 = vmul.f32 1.0, %v1345
  %v1347 = vxor.u32 %v1325, 2147483648
  %v1348 = vmul.f32 %v1347, 1.442695
  %v1349 = vpow.pop %v1348
  %v1350 = vadd.f32 %v1349, 1.0
  %v1351 = vrcp.pop %v1350
  %v1352 = vmul.f32 %v1350, %v1351
  %v1353 = vsub.f32 1.0, %v1352
  %v1354 = vmul.f32 %v1351, %v1353
  %v1355 = vadd.f32 %v1351, %v1354
  %vm1356 = vweird.f32 %v1350
  %vm1357 = vweird.f32 %v1351
  %vm1358 = vmor %vm1356, %vm1357
  %v1359 = vsel %vm1358, %v1351, %v1355
  %v1360 = vand.u32 2147483647, %v1350
  %vm1361 = vcmp.eq.f32.partialorder %v1360, 8.507059e+37
  %v1362 = vand.u32 %v1350, 2147483648
  %v1363 = vor.u32 1.1754944e-38, %v1362
  %v1364 = vsel %vm1361, %v1363, %v1359
  %v1365 = vmul.f32 1.0, %v1364
  %v1366 = vtanh.pop %v1326
  %v1367 = vxor.u32 %v1327, 2147483648
  %v1368 = vmul.f32 %v1367, 1.442695
  %v1369 = vpow.pop %v1368
  %v1370 = vadd.f32 %v1369, 1.0
  %v1371 = vrcp.pop %v1370
  %v1372 = vmul.f32 %v1370, %v1371
  %v1373 = vsub.f32 1.0, %v1372
  %v1374 = vmul.f32 %v1371, %v1373
  %v1375 = vadd.f32 %v1371, %v1374
  %vm1376 = vweird.f32 %v1370
  %vm1377 = vweird.f32 %v1371
  %vm1378 = vmor %vm1376, %vm1377
  %v1379 = vsel %vm1378, %v1371, %v1375
  %v1380 = vand.u32 2147483647, %v1370
  %vm1381 = vcmp.eq.f32.partialorder %v1380, 8.507059e+37
  %v1382 = vand.u32 %v1370, 2147483648
  %v1383 = vor.u32 1.1754944e-38, %v1382
  %v1384 = vsel %vm1381, %v1383, %v1379
  %v1385 = vmul.f32 1.0, %v1384
  %v1386 = vld [vmem:[#allocation4] sm:$0xff]
  %v1387 = vmul.f32 %v1365, %v1386
  %v1388 = vmul.f32 %v1346, %v1366
  %v1389 = vadd.f32 %v1387, %v1388
  %v1390 = vtanh.pop %v1389
  %v1391 = vmul.f32 %v1385, %v1390
  %1392 = vst [vmem:[#allocation4] sm:$0xff] %v1389
  %1393 = vst [vmem:[#allocation3] sm:$0xff] %v1391
  %s1394 = smul.u32 5, 4
  %s1395 = smul.addr %s1394, 8
  %s1396 = scalar_lea.vmem [#allocation2], %s1395
  %v1397 = vld [vmem:[%s1396] sm:$0xff]
  %v1398 = vld [vmem:[%s1396 + $0x8] sm:$0xff]
  %v1399 = vld [vmem:[%s1396 + $0x10] sm:$0xff]
  %v1400 = vld [vmem:[%s1396 + $0x18] sm:$0xff]
  %v1401 = vld [vmem:[#allocation3] sm:$0xff]
  %v1402 = vld [vmem:[%s2] sm:$0xff]
  %v1403 = vld [vmem:[%s2 + $0x8] sm:$0xff]
  %v1404 = vld [vmem:[%s2 + $0x10] sm:$0xff]
  %v1405 = vld [vmem:[%s2 + $0x18] sm:$0xff]
  %v1406 = vld [vmem:[%s2 + $0x20] sm:$0xff]
  %v1407 = vld [vmem:[%s2 + $0x28] sm:$0xff]
  %v1408 = vld [vmem:[%s2 + $0x30] sm:$0xff]
  %v1409 = vld [vmem:[%s2 + $0x38] sm:$0xff]
  %v1410 = vld [vmem:[%s2 + $0x40] sm:$0xff]
  %v1411 = vld [vmem:[%s2 + $0x48] sm:$0xff]
  %v1412 = vld [vmem:[%s2 + $0x50] sm:$0xff]
  %v1413 = vld [vmem:[%s2 + $0x58] sm:$0xff]
  %v1414 = vld [vmem:[%s2 + $0x60] sm:$0xff]
  %v1415 = vld [vmem:[%s2 + $0x68] sm:$0xff]
  %v1416 = vld [vmem:[%s2 + $0x70] sm:$0xff]
  %v1417 = vld [vmem:[%s2 + $0x78] sm:$0xff]
  %v1418 = vld [vmem:[%s2 + $0x80] sm:$0xff]
  %v1419 = vld [vmem:[%s2 + $0x88] sm:$0xff]
  %v1420 = vld [vmem:[%s2 + $0x90] sm:$0xff]
  %v1421 = vld [vmem:[%s2 + $0x98] sm:$0xff]
  %v1422 = vld [vmem:[%s2 + $0xa0] sm:$0xff]
  %v1423 = vld [vmem:[%s2 + $0xa8] sm:$0xff]
  %v1424 = vld [vmem:[%s2 + $0xb0] sm:$0xff]
  %v1425 = vld [vmem:[%s2 + $0xb8] sm:$0xff]
  %v1426 = vld [vmem:[%s2 + $0xc0] sm:$0xff]
  %v1427 = vld [vmem:[%s2 + $0xc8] sm:$0xff]
  %v1428 = vld [vmem:[%s2 + $0xd0] sm:$0xff]
  %v1429 = vld [vmem:[%s2 + $0xd8] sm:$0xff]
  %v1430 = vld [vmem:[%s2 + $0xe0] sm:$0xff]
  %v1431 = vld [vmem:[%s2 + $0xe8] sm:$0xff]
  %v1432 = vld [vmem:[%s2 + $0xf0] sm:$0xff]
  %v1433 = vld [vmem:[%s2 + $0xf8] sm:$0xff]
  %v1434 = vld [vmem:[%s2 + $0x100] sm:$0xff]
  %v1435 = vld [vmem:[%s2 + $0x108] sm:$0xff]
  %v1436 = vld [vmem:[%s2 + $0x110] sm:$0xff]
  %v1437 = vld [vmem:[%s2 + $0x118] sm:$0xff]
  %v1438 = vld [vmem:[%s2 + $0x120] sm:$0xff]
  %v1439 = vld [vmem:[%s2 + $0x128] sm:$0xff]
  %v1440 = vld [vmem:[%s2 + $0x130] sm:$0xff]
  %v1441 = vld [vmem:[%s2 + $0x138] sm:$0xff]
  %v1442 = vld [vmem:[%s2 + $0x140] sm:$0xff]
  %v1443 = vld [vmem:[%s2 + $0x148] sm:$0xff]
  %v1444 = vld [vmem:[%s2 + $0x150] sm:$0xff]
  %v1445 = vld [vmem:[%s2 + $0x158] sm:$0xff]
  %v1446 = vld [vmem:[%s2 + $0x160] sm:$0xff]
  %v1447 = vld [vmem:[%s2 + $0x168] sm:$0xff]
  %v1448 = vld [vmem:[%s2 + $0x170] sm:$0xff]
  %v1449 = vld [vmem:[%s2 + $0x178] sm:$0xff]
  %v1450 = vld [vmem:[%s2 + $0x180] sm:$0xff]
  %v1451 = vld [vmem:[%s2 + $0x188] sm:$0xff]
  %v1452 = vld [vmem:[%s2 + $0x190] sm:$0xff]
  %v1453 = vld [vmem:[%s2 + $0x198] sm:$0xff]
  %v1454 = vld [vmem:[%s2 + $0x1a0] sm:$0xff]
  %v1455 = vld [vmem:[%s2 + $0x1a8] sm:$0xff]
  %v1456 = vld [vmem:[%s2 + $0x1b0] sm:$0xff]
  %v1457 = vld [vmem:[%s2 + $0x1b8] sm:$0xff]
  %v1458 = vld [vmem:[%s2 + $0x1c0] sm:$0xff]
  %v1459 = vld [vmem:[%s2 + $0x1c8] sm:$0xff]
  %v1460 = vld [vmem:[%s2 + $0x1d0] sm:$0xff]
  %v1461 = vld [vmem:[%s2 + $0x1d8] sm:$0xff]
  %v1462 = vld [vmem:[%s2 + $0x1e0] sm:$0xff]
  %v1463 = vld [vmem:[%s2 + $0x1e8] sm:$0xff]
  %v1464 = vld [vmem:[%s2 + $0x1f0] sm:$0xff]
  %v1465 = vld [vmem:[%s2 + $0x1f8] sm:$0xff]
  %1466 = vmatpush.msra.mxu0 %v1462
  %1467 = vmatpush.msra.mxu0 %v1458
  %1468 = vmatpush.msra.mxu0 %v1454
  %1469 = vmatpush.msra.mxu0 %v1450
  %1470 = vmatpush.msra.mxu0 %v1446
  %1471 = vmatpush.msra.mxu0 %v1442
  %1472 = vmatpush.msra.mxu0 %v1438
  %1473 = vmatpush.msra.mxu0 %v1434
  %1474 = vmatpush.msra.mxu0 %v1430
  %1475 = vmatpush.msra.mxu0 %v1426
  %1476 = vmatpush.msra.mxu0 %v1422
  %1477 = vmatpush.msra.mxu0 %v1418
  %1478 = vmatpush.msra.mxu0 %v1414
  %1479 = vmatpush.msra.mxu0 %v1410
  %1480 = vmatpush.msra.mxu0 %v1406
  %1481 = vmatpush.msra.mxu0 %v1402
  %1482 = vmatmul.f32.gmra.mxu0 %v1401
  %v1483 = vpop.f32.mrf.mxu0
  %v1484 = vadd.f32 0.0, %v1483
  %1485 = vdwg.mxu0
  %1486 = vmatpush.msra.mxu0 %v1463
  %1487 = vmatpush.msra.mxu0 %v1459
  %1488 = vmatpush.msra.mxu0 %v1455
  %1489 = vmatpush.msra.mxu0 %v1451
  %1490 = vmatpush.msra.mxu0 %v1447
  %1491 = vmatpush.msra.mxu0 %v1443
  %1492 = vmatpush.msra.mxu0 %v1439
  %1493 = vmatpush.msra.mxu0 %v1435
  %1494 = vmatpush.msra.mxu0 %v1431
  %1495 = vmatpush.msra.mxu0 %v1427
  %1496 = vmatpush.msra.mxu0 %v1423
  %1497 = vmatpush.msra.mxu0 %v1419
  %1498 = vmatpush.msra.mxu0 %v1415
  %1499 = vmatpush.msra.mxu0 %v1411
  %1500 = vmatpush.msra.mxu0 %v1407
  %1501 = vmatpush.msra.mxu0 %v1403
  %1502 = vmatmul.f32.gmra.mxu0 %v1401
  %v1503 = vpop.f32.mrf.mxu0
  %v1504 = vadd.f32 0.0, %v1503
  %1505 = vdwg.mxu0
  %1506 = vmatpush.msra.mxu0 %v1464
  %1507 = vmatpush.msra.mxu0 %v1460
  %1508 = vmatpush.msra.mxu0 %v1456
  %1509 = vmatpush.msra.mxu0 %v1452
  %1510 = vmatpush.msra.mxu0 %v1448
  %1511 = vmatpush.msra.mxu0 %v1444
  %1512 = vmatpush.msra.mxu0 %v1440
  %1513 = vmatpush.msra.mxu0 %v1436
  %1514 = vmatpush.msra.mxu0 %v1432
  %1515 = vmatpush.msra.mxu0 %v1428
  %1516 = vmatpush.msra.mxu0 %v1424
  %1517 = vmatpush.msra.mxu0 %v1420
  %1518 = vmatpush.msra.mxu0 %v1416
  %1519 = vmatpush.msra.mxu0 %v1412
  %1520 = vmatpush.msra.mxu0 %v1408
  %1521 = vmatpush.msra.mxu0 %v1404
  %1522 = vmatmul.f32.gmra.mxu0 %v1401
  %v1523 = vpop.f32.mrf.mxu0
  %v1524 = vadd.f32 0.0, %v1523
  %1525 = vdwg.mxu0
  %1526 = vmatpush.msra.mxu0 %v1465
  %1527 = vmatpush.msra.mxu0 %v1461
  %1528 = vmatpush.msra.mxu0 %v1457
  %1529 = vmatpush.msra.mxu0 %v1453
  %1530 = vmatpush.msra.mxu0 %v1449
  %1531 = vmatpush.msra.mxu0 %v1445
  %1532 = vmatpush.msra.mxu0 %v1441
  %1533 = vmatpush.msra.mxu0 %v1437
  %1534 = vmatpush.msra.mxu0 %v1433
  %1535 = vmatpush.msra.mxu0 %v1429
  %1536 = vmatpush.msra.mxu0 %v1425
  %1537 = vmatpush.msra.mxu0 %v1421
  %1538 = vmatpush.msra.mxu0 %v1417
  %1539 = vmatpush.msra.mxu0 %v1413
  %1540 = vmatpush.msra.mxu0 %v1409
  %1541 = vmatpush.msra.mxu0 %v1405
  %1542 = vmatmul.f32.gmra.mxu0 %v1401
  %v1543 = vpop.f32.mrf.mxu0
  %v1544 = vadd.f32 0.0, %v1543
  %1545 = vdwg.mxu0
  %v1546 = vadd.f32 %v1397, %v1484
  %v1547 = vadd.f32 %v1398, %v1504
  %v1548 = vadd.f32 %v1399, %v1524
  %v1549 = vadd.f32 %v1400, %v1544
  %v1550 = vxor.u32 %v1546, 2147483648
  %v1551 = vmul.f32 %v1550, 1.442695
  %v1552 = vpow.pop %v1551
  %v1553 = vadd.f32 %v1552, 1.0
  %v1554 = vrcp.pop %v1553
  %v1555 = vmul.f32 %v1553, %v1554
  %v1556 = vsub.f32 1.0, %v1555
  %v1557 = vmul.f32 %v1554, %v1556
  %v1558 = vadd.f32 %v1554, %v1557
  %vm1559 = vweird.f32 %v1553
  %vm1560 = vweird.f32 %v1554
  %vm1561 = vmor %vm1559, %vm1560
  %v1562 = vsel %vm1561, %v1554, %v1558
  %v1563 = vand.u32 2147483647, %v1553
  %vm1564 = vcmp.eq.f32.partialorder %v1563, 8.507059e+37
  %v1565 = vand.u32 %v1553, 2147483648
  %v1566 = vor.u32 1.1754944e-38, %v1565
  %v1567 = vsel %vm1564, %v1566, %v1562
  %v1568 = vmul.f32 1.0, %v1567
  %v1569 = vxor.u32 %v1547, 2147483648
  %v1570 = vmul.f32 %v1569, 1.442695
  %v1571 = vpow.pop %v1570
  %v1572 = vadd.f32 %v1571, 1.0
  %v1573 = vrcp.pop %v1572
  %v1574 = vmul.f32 %v1572, %v1573
  %v1575 = vsub.f32 1.0, %v1574
  %v1576 = vmul.f32 %v1573, %v1575
  %v1577 = vadd.f32 %v1573, %v1576
  %vm1578 = vweird.f32 %v1572
  %vm1579 = vweird.f32 %v1573
  %vm1580 = vmor %vm1578, %vm1579
  %v1581 = vsel %vm1580, %v1573, %v1577
  %v1582 = vand.u32 2147483647, %v1572
  %vm1583 = vcmp.eq.f32.partialorder %v1582, 8.507059e+37
  %v1584 = vand.u32 %v1572, 2147483648
  %v1585 = vor.u32 1.1754944e-38, %v1584
  %v1586 = vsel %vm1583, %v1585, %v1581
  %v1587 = vmul.f32 1.0, %v1586
  %v1588 = vtanh.pop %v1548
  %v1589 = vxor.u32 %v1549, 2147483648
  %v1590 = vmul.f32 %v1589, 1.442695
  %v1591 = vpow.pop %v1590
  %v1592 = vadd.f32 %v1591, 1.0
  %v1593 = vrcp.pop %v1592
  %v1594 = vmul.f32 %v1592, %v1593
  %v1595 = vsub.f32 1.0, %v1594
  %v1596 = vmul.f32 %v1593, %v1595
  %v1597 = vadd.f32 %v1593, %v1596
  %vm1598 = vweird.f32 %v1592
  %vm1599 = vweird.f32 %v1593
  %vm1600 = vmor %vm1598, %vm1599
  %v1601 = vsel %vm1600, %v1593, %v1597
  %v1602 = vand.u32 2147483647, %v1592
  %vm1603 = vcmp.eq.f32.partialorder %v1602, 8.507059e+37
  %v1604 = vand.u32 %v1592, 2147483648
  %v1605 = vor.u32 1.1754944e-38, %v1604
  %v1606 = vsel %vm1603, %v1605, %v1601
  %v1607 = vmul.f32 1.0, %v1606
  %v1608 = vld [vmem:[#allocation4] sm:$0xff]
  %v1609 = vmul.f32 %v1587, %v1608
  %v1610 = vmul.f32 %v1568, %v1588
  %v1611 = vadd.f32 %v1609, %v1610
  %v1612 = vtanh.pop %v1611
  %v1613 = vmul.f32 %v1607, %v1612
  %1614 = vst [vmem:[#allocation4] sm:$0xff] %v1611
  %1615 = vst [vmem:[#allocation3] sm:$0xff] %v1613
  %s1616 = smul.u32 6, 4
  %s1617 = smul.addr %s1616, 8
  %s1618 = scalar_lea.vmem [#allocation2], %s1617
  %v1619 = vld [vmem:[%s1618] sm:$0xff]
  %v1620 = vld [vmem:[%s1618 + $0x8] sm:$0xff]
  %v1621 = vld [vmem:[%s1618 + $0x10] sm:$0xff]
  %v1622 = vld [vmem:[%s1618 + $0x18] sm:$0xff]
  %v1623 = vld [vmem:[#allocation3] sm:$0xff]
  %v1624 = vld [vmem:[%s2] sm:$0xff]
  %v1625 = vld [vmem:[%s2 + $0x8] sm:$0xff]
  %v1626 = vld [vmem:[%s2 + $0x10] sm:$0xff]
  %v1627 = vld [vmem:[%s2 + $0x18] sm:$0xff]
  %v1628 = vld [vmem:[%s2 + $0x20] sm:$0xff]
  %v1629 = vld [vmem:[%s2 + $0x28] sm:$0xff]
  %v1630 = vld [vmem:[%s2 + $0x30] sm:$0xff]
  %v1631 = vld [vmem:[%s2 + $0x38] sm:$0xff]
  %v1632 = vld [vmem:[%s2 + $0x40] sm:$0xff]
  %v1633 = vld [vmem:[%s2 + $0x48] sm:$0xff]
  %v1634 = vld [vmem:[%s2 + $0x50] sm:$0xff]
  %v1635 = vld [vmem:[%s2 + $0x58] sm:$0xff]
  %v1636 = vld [vmem:[%s2 + $0x60] sm:$0xff]
  %v1637 = vld [vmem:[%s2 + $0x68] sm:$0xff]
  %v1638 = vld [vmem:[%s2 + $0x70] sm:$0xff]
  %v1639 = vld [vmem:[%s2 + $0x78] sm:$0xff]
  %v1640 = vld [vmem:[%s2 + $0x80] sm:$0xff]
  %v1641 = vld [vmem:[%s2 + $0x88] sm:$0xff]
  %v1642 = vld [vmem:[%s2 + $0x90] sm:$0xff]
  %v1643 = vld [vmem:[%s2 + $0x98] sm:$0xff]
  %v1644 = vld [vmem:[%s2 + $0xa0] sm:$0xff]
  %v1645 = vld [vmem:[%s2 + $0xa8] sm:$0xff]
  %v1646 = vld [vmem:[%s2 + $0xb0] sm:$0xff]
  %v1647 = vld [vmem:[%s2 + $0xb8] sm:$0xff]
  %v1648 = vld [vmem:[%s2 + $0xc0] sm:$0xff]
  %v1649 = vld [vmem:[%s2 + $0xc8] sm:$0xff]
  %v1650 = vld [vmem:[%s2 + $0xd0] sm:$0xff]
  %v1651 = vld [vmem:[%s2 + $0xd8] sm:$0xff]
  %v1652 = vld [vmem:[%s2 + $0xe0] sm:$0xff]
  %v1653 = vld [vmem:[%s2 + $0xe8] sm:$0xff]
  %v1654 = vld [vmem:[%s2 + $0xf0] sm:$0xff]
  %v1655 = vld [vmem:[%s2 + $0xf8] sm:$0xff]
  %v1656 = vld [vmem:[%s2 + $0x100] sm:$0xff]
  %v1657 = vld [vmem:[%s2 + $0x108] sm:$0xff]
  %v1658 = vld [vmem:[%s2 + $0x110] sm:$0xff]
  %v1659 = vld [vmem:[%s2 + $0x118] sm:$0xff]
  %v1660 = vld [vmem:[%s2 + $0x120] sm:$0xff]
  %v1661 = vld [vmem:[%s2 + $0x128] sm:$0xff]
  %v1662 = vld [vmem:[%s2 + $0x130] sm:$0xff]
  %v1663 = vld [vmem:[%s2 + $0x138] sm:$0xff]
  %v1664 = vld [vmem:[%s2 + $0x140] sm:$0xff]
  %v1665 = vld [vmem:[%s2 + $0x148] sm:$0xff]
  %v1666 = vld [vmem:[%s2 + $0x150] sm:$0xff]
  %v1667 = vld [vmem:[%s2 + $0x158] sm:$0xff]
  %v1668 = vld [vmem:[%s2 + $0x160] sm:$0xff]
  %v1669 = vld [vmem:[%s2 + $0x168] sm:$0xff]
  %v1670 = vld [vmem:[%s2 + $0x170] sm:$0xff]
  %v1671 = vld [vmem:[%s2 + $0x178] sm:$0xff]
  %v1672 = vld [vmem:[%s2 + $0x180] sm:$0xff]
  %v1673 = vld [vmem:[%s2 + $0x188] sm:$0xff]
  %v1674 = vld [vmem:[%s2 + $0x190] sm:$0xff]
  %v1675 = vld [vmem:[%s2 + $0x198] sm:$0xff]
  %v1676 = vld [vmem:[%s2 + $0x1a0] sm:$0xff]
  %v1677 = vld [vmem:[%s2 + $0x1a8] sm:$0xff]
  %v1678 = vld [vmem:[%s2 + $0x1b0] sm:$0xff]
  %v1679 = vld [vmem:[%s2 + $0x1b8] sm:$0xff]
  %v1680 = vld [vmem:[%s2 + $0x1c0] sm:$0xff]
  %v1681 = vld [vmem:[%s2 + $0x1c8] sm:$0xff]
  %v1682 = vld [vmem:[%s2 + $0x1d0] sm:$0xff]
  %v1683 = vld [vmem:[%s2 + $0x1d8] sm:$0xff]
  %v1684 = vld [vmem:[%s2 + $0x1e0] sm:$0xff]
  %v1685 = vld [vmem:[%s2 + $0x1e8] sm:$0xff]
  %v1686 = vld [vmem:[%s2 + $0x1f0] sm:$0xff]
  %v1687 = vld [vmem:[%s2 + $0x1f8] sm:$0xff]
  %1688 = vmatpush.msra.mxu0 %v1684
  %1689 = vmatpush.msra.mxu0 %v1680
  %1690 = vmatpush.msra.mxu0 %v1676
  %1691 = vmatpush.msra.mxu0 %v1672
  %1692 = vmatpush.msra.mxu0 %v1668
  %1693 = vmatpush.msra.mxu0 %v1664
  %1694 = vmatpush.msra.mxu0 %v1660
  %1695 = vmatpush.msra.mxu0 %v1656
  %1696 = vmatpush.msra.mxu0 %v1652
  %1697 = vmatpush.msra.mxu0 %v1648
  %1698 = vmatpush.msra.mxu0 %v1644
  %1699 = vmatpush.msra.mxu0 %v1640
  %1700 = vmatpush.msra.mxu0 %v1636
  %1701 = vmatpush.msra.mxu0 %v1632
  %1702 = vmatpush.msra.mxu0 %v1628
  %1703 = vmatpush.msra.mxu0 %v1624
  %1704 = vmatmul.f32.gmra.mxu0 %v1623
  %v1705 = vpop.f32.mrf.mxu0
  %v1706 = vadd.f32 0.0, %v1705
  %1707 = vdwg.mxu0
  %1708 = vmatpush.msra.mxu0 %v1685
  %1709 = vmatpush.msra.mxu0 %v1681
  %1710 = vmatpush.msra.mxu0 %v1677
  %1711 = vmatpush.msra.mxu0 %v1673
  %1712 = vmatpush.msra.mxu0 %v1669
  %1713 = vmatpush.msra.mxu0 %v1665
  %1714 = vmatpush.msra.mxu0 %v1661
  %1715 = vmatpush.msra.mxu0 %v1657
  %1716 = vmatpush.msra.mxu0 %v1653
  %1717 = vmatpush.msra.mxu0 %v1649
  %1718 = vmatpush.msra.mxu0 %v1645
  %1719 = vmatpush.msra.mxu0 %v1641
  %1720 = vmatpush.msra.mxu0 %v1637
  %1721 = vmatpush.msra.mxu0 %v1633
  %1722 = vmatpush.msra.mxu0 %v1629
  %1723 = vmatpush.msra.mxu0 %v1625
  %1724 = vmatmul.f32.gmra.mxu0 %v1623
  %v1725 = vpop.f32.mrf.mxu0
  %v1726 = vadd.f32 0.0, %v1725
  %1727 = vdwg.mxu0
  %1728 = vmatpush.msra.mxu0 %v1686
  %1729 = vmatpush.msra.mxu0 %v1682
  %1730 = vmatpush.msra.mxu0 %v1678
  %1731 = vmatpush.msra.mxu0 %v1674
  %1732 = vmatpush.msra.mxu0 %v1670
  %1733 = vmatpush.msra.mxu0 %v1666
  %1734 = vmatpush.msra.mxu0 %v1662
  %1735 = vmatpush.msra.mxu0 %v1658
  %1736 = vmatpush.msra.mxu0 %v1654
  %1737 = vmatpush.msra.mxu0 %v1650
  %1738 = vmatpush.msra.mxu0 %v1646
  %1739 = vmatpush.msra.mxu0 %v1642
  %1740 = vmatpush.msra.mxu0 %v1638
  %1741 = vmatpush.msra.mxu0 %v1634
  %1742 = vmatpush.msra.mxu0 %v1630
  %1743 = vmatpush.msra.mxu0 %v1626
  %1744 = vmatmul.f32.gmra.mxu0 %v1623
  %v1745 = vpop.f32.mrf.mxu0
  %v1746 = vadd.f32 0.0, %v1745
  %1747 = vdwg.mxu0
  %1748 = vmatpush.msra.mxu0 %v1687
  %1749 = vmatpush.msra.mxu0 %v1683
  %1750 = vmatpush.msra.mxu0 %v1679
  %1751 = vmatpush.msra.mxu0 %v1675
  %1752 = vmatpush.msra.mxu0 %v1671
  %1753 = vmatpush.msra.mxu0 %v1667
  %1754 = vmatpush.msra.mxu0 %v1663
  %1755 = vmatpush.msra.mxu0 %v1659
  %1756 = vmatpush.msra.mxu0 %v1655
  %1757 = vmatpush.msra.mxu0 %v1651
  %1758 = vmatpush.msra.mxu0 %v1647
  %1759 = vmatpush.msra.mxu0 %v1643
  %1760 = vmatpush.msra.mxu0 %v1639
  %1761 = vmatpush.msra.mxu0 %v1635
  %1762 = vmatpush.msra.mxu0 %v1631
  %1763 = vmatpush.msra.mxu0 %v1627
  %1764 = vmatmul.f32.gmra.mxu0 %v1623
  %v1765 = vpop.f32.mrf.mxu0
  %v1766 = vadd.f32 0.0, %v1765
  %1767 = vdwg.mxu0
  %v1768 = vadd.f32 %v1619, %v1706
  %v1769 = vadd.f32 %v1620, %v1726
  %v1770 = vadd.f32 %v1621, %v1746
  %v1771 = vadd.f32 %v1622, %v1766
  %v1772 = vxor.u32 %v1768, 2147483648
  %v1773 = vmul.f32 %v1772, 1.442695
  %v1774 = vpow.pop %v1773
  %v1775 = vadd.f32 %v1774, 1.0
  %v1776 = vrcp.pop %v1775
  %v1777 = vmul.f32 %v1775, %v1776
  %v1778 = vsub.f32 1.0, %v1777
  %v1779 = vmul.f32 %v1776, %v1778
  %v1780 = vadd.f32 %v1776, %v1779
  %vm1781 = vweird.f32 %v1775
  %vm1782 = vweird.f32 %v1776
  %vm1783 = vmor %vm1781, %vm1782
  %v1784 = vsel %vm1783, %v1776, %v1780
  %v1785 = vand.u32 2147483647, %v1775
  %vm1786 = vcmp.eq.f32.partialorder %v1785, 8.507059e+37
  %v1787 = vand.u32 %v1775, 2147483648
  %v1788 = vor.u32 1.1754944e-38, %v1787
  %v1789 = vsel %vm1786, %v1788, %v1784
  %v1790 = vmul.f32 1.0, %v1789
  %v1791 = vxor.u32 %v1769, 2147483648
  %v1792 = vmul.f32 %v1791, 1.442695
  %v1793 = vpow.pop %v1792
  %v1794 = vadd.f32 %v1793, 1.0
  %v1795 = vrcp.pop %v1794
  %v1796 = vmul.f32 %v1794, %v1795
  %v1797 = vsub.f32 1.0, %v1796
  %v1798 = vmul.f32 %v1795, %v1797
  %v1799 = vadd.f32 %v1795, %v1798
  %vm1800 = vweird.f32 %v1794
  %vm1801 = vweird.f32 %v1795
  %vm1802 = vmor %vm1800, %vm1801
  %v1803 = vsel %vm1802, %v1795, %v1799
  %v1804 = vand.u32 2147483647, %v1794
  %vm1805 = vcmp.eq.f32.partialorder %v1804, 8.507059e+37
  %v1806 = vand.u32 %v1794, 2147483648
  %v1807 = vor.u32 1.1754944e-38, %v1806
  %v1808 = vsel %vm1805, %v1807, %v1803
  %v1809 = vmul.f32 1.0, %v1808
  %v1810 = vtanh.pop %v1770
  %v1811 = vxor.u32 %v1771, 2147483648
  %v1812 = vmul.f32 %v1811, 1.442695
  %v1813 = vpow.pop %v1812
  %v1814 = vadd.f32 %v1813, 1.0
  %v1815 = vrcp.pop %v1814
  %v1816 = vmul.f32 %v1814, %v1815
  %v1817 = vsub.f32 1.0, %v1816
  %v1818 = vmul.f32 %v1815, %v1817
  %v1819 = vadd.f32 %v1815, %v1818
  %vm1820 = vweird.f32 %v1814
  %vm1821 = vweird.f32 %v1815
  %vm1822 = vmor %vm1820, %vm1821
  %v1823 = vsel %vm1822, %v1815, %v1819
  %v1824 = vand.u32 2147483647, %v1814
  %vm1825 = vcmp.eq.f32.partialorder %v1824, 8.507059e+37
  %v1826 = vand.u32 %v1814, 2147483648
  %v1827 = vor.u32 1.1754944e-38, %v1826
  %v1828 = vsel %vm1825, %v1827, %v1823
  %v1829 = vmul.f32 1.0, %v1828
  %v1830 = vld [vmem:[#allocation4] sm:$0xff]
  %v1831 = vmul.f32 %v1809, %v1830
  %v1832 = vmul.f32 %v1790, %v1810
  %v1833 = vadd.f32 %v1831, %v1832
  %v1834 = vtanh.pop %v1833
  %v1835 = vmul.f32 %v1829, %v1834
  %1836 = vst [vmem:[#allocation4] sm:$0xff] %v1833
  %1837 = vst [vmem:[#allocation3] sm:$0xff] %v1835
  %s1838 = smul.u32 7, 4
  %s1839 = smul.addr %s1838, 8
  %s1840 = scalar_lea.vmem [#allocation2], %s1839
  %v1841 = vld [vmem:[%s1840] sm:$0xff]
  %v1842 = vld [vmem:[%s1840 + $0x8] sm:$0xff]
  %v1843 = vld [vmem:[%s1840 + $0x10] sm:$0xff]
  %v1844 = vld [vmem:[%s1840 + $0x18] sm:$0xff]
  %v1845 = vld [vmem:[#allocation3] sm:$0xff]
  %v1846 = vld [vmem:[%s2] sm:$0xff]
  %v1847 = vld [vmem:[%s2 + $0x8] sm:$0xff]
  %v1848 = vld [vmem:[%s2 + $0x10] sm:$0xff]
  %v1849 = vld [vmem:[%s2 + $0x18] sm:$0xff]
  %v1850 = vld [vmem:[%s2 + $0x20] sm:$0xff]
  %v1851 = vld [vmem:[%s2 + $0x28] sm:$0xff]
  %v1852 = vld [vmem:[%s2 + $0x30] sm:$0xff]
  %v1853 = vld [vmem:[%s2 + $0x38] sm:$0xff]
  %v1854 = vld [vmem:[%s2 + $0x40] sm:$0xff]
  %v1855 = vld [vmem:[%s2 + $0x48] sm:$0xff]
  %v1856 = vld [vmem:[%s2 + $0x50] sm:$0xff]
  %v1857 = vld [vmem:[%s2 + $0x58] sm:$0xff]
  %v1858 = vld [vmem:[%s2 + $0x60] sm:$0xff]
  %v1859 = vld [vmem:[%s2 + $0x68] sm:$0xff]
  %v1860 = vld [vmem:[%s2 + $0x70] sm:$0xff]
  %v1861 = vld [vmem:[%s2 + $0x78] sm:$0xff]
  %v1862 = vld [vmem:[%s2 + $0x80] sm:$0xff]
  %v1863 = vld [vmem:[%s2 + $0x88] sm:$0xff]
  %v1864 = vld [vmem:[%s2 + $0x90] sm:$0xff]
  %v1865 = vld [vmem:[%s2 + $0x98] sm:$0xff]
  %v1866 = vld [vmem:[%s2 + $0xa0] sm:$0xff]
  %v1867 = vld [vmem:[%s2 + $0xa8] sm:$0xff]
  %v1868 = vld [vmem:[%s2 + $0xb0] sm:$0xff]
  %v1869 = vld [vmem:[%s2 + $0xb8] sm:$0xff]
  %v1870 = vld [vmem:[%s2 + $0xc0] sm:$0xff]
  %v1871 = vld [vmem:[%s2 + $0xc8] sm:$0xff]
  %v1872 = vld [vmem:[%s2 + $0xd0] sm:$0xff]
  %v1873 = vld [vmem:[%s2 + $0xd8] sm:$0xff]
  %v1874 = vld [vmem:[%s2 + $0xe0] sm:$0xff]
  %v1875 = vld [vmem:[%s2 + $0xe8] sm:$0xff]
  %v1876 = vld [vmem:[%s2 + $0xf0] sm:$0xff]
  %v1877 = vld [vmem:[%s2 + $0xf8] sm:$0xff]
  %v1878 = vld [vmem:[%s2 + $0x100] sm:$0xff]
  %v1879 = vld [vmem:[%s2 + $0x108] sm:$0xff]
  %v1880 = vld [vmem:[%s2 + $0x110] sm:$0xff]
  %v1881 = vld [vmem:[%s2 + $0x118] sm:$0xff]
  %v1882 = vld [vmem:[%s2 + $0x120] sm:$0xff]
  %v1883 = vld [vmem:[%s2 + $0x128] sm:$0xff]
  %v1884 = vld [vmem:[%s2 + $0x130] sm:$0xff]
  %v1885 = vld [vmem:[%s2 + $0x138] sm:$0xff]
  %v1886 = vld [vmem:[%s2 + $0x140] sm:$0xff]
  %v1887 = vld [vmem:[%s2 + $0x148] sm:$0xff]
  %v1888 = vld [vmem:[%s2 + $0x150] sm:$0xff]
  %v1889 = vld [vmem:[%s2 + $0x158] sm:$0xff]
  %v1890 = vld [vmem:[%s2 + $0x160] sm:$0xff]
  %v1891 = vld [vmem:[%s2 + $0x168] sm:$0xff]
  %v1892 = vld [vmem:[%s2 + $0x170] sm:$0xff]
  %v1893 = vld [vmem:[%s2 + $0x178] sm:$0xff]
  %v1894 = vld [vmem:[%s2 + $0x180] sm:$0xff]
  %v1895 = vld [vmem:[%s2 + $0x188] sm:$0xff]
  %v1896 = vld [vmem:[%s2 + $0x190] sm:$0xff]
  %v1897 = vld [vmem:[%s2 + $0x198] sm:$0xff]
  %v1898 = vld [vmem:[%s2 + $0x1a0] sm:$0xff]
  %v1899 = vld [vmem:[%s2 + $0x1a8] sm:$0xff]
  %v1900 = vld [vmem:[%s2 + $0x1b0] sm:$0xff]
  %v1901 = vld [vmem:[%s2 + $0x1b8] sm:$0xff]
  %v1902 = vld [vmem:[%s2 + $0x1c0] sm:$0xff]
  %v1903 = vld [vmem:[%s2 + $0x1c8] sm:$0xff]
  %v1904 = vld [vmem:[%s2 + $0x1d0] sm:$0xff]
  %v1905 = vld [vmem:[%s2 + $0x1d8] sm:$0xff]
  %v1906 = vld [vmem:[%s2 + $0x1e0] sm:$0xff]
  %v1907 = vld [vmem:[%s2 + $0x1e8] sm:$0xff]
  %v1908 = vld [vmem:[%s2 + $0x1f0] sm:$0xff]
  %v1909 = vld [vmem:[%s2 + $0x1f8] sm:$0xff]
  %1910 = vmatpush.msra.mxu0 %v1906
  %1911 = vmatpush.msra.mxu0 %v1902
  %1912 = vmatpush.msra.mxu0 %v1898
  %1913 = vmatpush.msra.mxu0 %v1894
  %1914 = vmatpush.msra.mxu0 %v1890
  %1915 = vmatpush.msra.mxu0 %v1886
  %1916 = vmatpush.msra.mxu0 %v1882
  %1917 = vmatpush.msra.mxu0 %v1878
  %1918 = vmatpush.msra.mxu0 %v1874
  %1919 = vmatpush.msra.mxu0 %v1870
  %1920 = vmatpush.msra.mxu0 %v1866
  %1921 = vmatpush.msra.mxu0 %v1862
  %1922 = vmatpush.msra.mxu0 %v1858
  %1923 = vmatpush.msra.mxu0 %v1854
  %1924 = vmatpush.msra.mxu0 %v1850
  %1925 = vmatpush.msra.mxu0 %v1846
  %1926 = vmatmul.f32.gmra.mxu0 %v1845
  %v1927 = vpop.f32.mrf.mxu0
  %v1928 = vadd.f32 0.0, %v1927
  %1929 = vdwg.mxu0
  %1930 = vmatpush.msra.mxu0 %v1907
  %1931 = vmatpush.msra.mxu0 %v1903
  %1932 = vmatpush.msra.mxu0 %v1899
  %1933 = vmatpush.msra.mxu0 %v1895
  %1934 = vmatpush.msra.mxu0 %v1891
  %1935 = vmatpush.msra.mxu0 %v1887
  %1936 = vmatpush.msra.mxu0 %v1883
  %1937 = vmatpush.msra.mxu0 %v1879
  %1938 = vmatpush.msra.mxu0 %v1875
  %1939 = vmatpush.msra.mxu0 %v1871
  %1940 = vmatpush.msra.mxu0 %v1867
  %1941 = vmatpush.msra.mxu0 %v1863
  %1942 = vmatpush.msra.mxu0 %v1859
  %1943 = vmatpush.msra.mxu0 %v1855
  %1944 = vmatpush.msra.mxu0 %v1851
  %1945 = vmatpush.msra.mxu0 %v1847
  %1946 = vmatmul.f32.gmra.mxu0 %v1845
  %v1947 = vpop.f32.mrf.mxu0
  %v1948 = vadd.f32 0.0, %v1947
  %1949 = vdwg.mxu0
  %1950 = vmatpush.msra.mxu0 %v1908
  %1951 = vmatpush.msra.mxu0 %v1904
  %1952 = vmatpush.msra.mxu0 %v1900
  %1953 = vmatpush.msra.mxu0 %v1896
  %1954 = vmatpush.msra.mxu0 %v1892
  %1955 = vmatpush.msra.mxu0 %v1888
  %1956 = vmatpush.msra.mxu0 %v1884
  %1957 = vmatpush.msra.mxu0 %v1880
  %1958 = vmatpush.msra.mxu0 %v1876
  %1959 = vmatpush.msra.mxu0 %v1872
  %1960 = vmatpush.msra.mxu0 %v1868
  %1961 = vmatpush.msra.mxu0 %v1864
  %1962 = vmatpush.msra.mxu0 %v1860
  %1963 = vmatpush.msra.mxu0 %v1856
  %1964 = vmatpush.msra.mxu0 %v1852
  %1965 = vmatpush.msra.mxu0 %v1848
  %1966 = vmatmul.f32.gmra.mxu0 %v1845
  %v1967 = vpop.f32.mrf.mxu0
  %v1968 = vadd.f32 0.0, %v1967
  %1969 = vdwg.mxu0
  %1970 = vmatpush.msra.mxu0 %v1909
  %1971 = vmatpush.msra.mxu0 %v1905
  %1972 = vmatpush.msra.mxu0 %v1901
  %1973 = vmatpush.msra.mxu0 %v1897
  %1974 = vmatpush.msra.mxu0 %v1893
  %1975 = vmatpush.msra.mxu0 %v1889
  %1976 = vmatpush.msra.mxu0 %v1885
  %1977 = vmatpush.msra.mxu0 %v1881
  %1978 = vmatpush.msra.mxu0 %v1877
  %1979 = vmatpush.msra.mxu0 %v1873
  %1980 = vmatpush.msra.mxu0 %v1869
  %1981 = vmatpush.msra.mxu0 %v1865
  %1982 = vmatpush.msra.mxu0 %v1861
  %1983 = vmatpush.msra.mxu0 %v1857
  %1984 = vmatpush.msra.mxu0 %v1853
  %1985 = vmatpush.msra.mxu0 %v1849
  %1986 = vmatmul.f32.gmra.mxu0 %v1845
  %v1987 = vpop.f32.mrf.mxu0
  %v1988 = vadd.f32 0.0, %v1987
  %1989 = vdwg.mxu0
  %v1990 = vadd.f32 %v1841, %v1928
  %v1991 = vadd.f32 %v1842, %v1948
  %v1992 = vadd.f32 %v1843, %v1968
  %v1993 = vadd.f32 %v1844, %v1988
  %v1994 = vxor.u32 %v1990, 2147483648
  %v1995 = vmul.f32 %v1994, 1.442695
  %v1996 = vpow.pop %v1995
  %v1997 = vadd.f32 %v1996, 1.0
  %v1998 = vrcp.pop %v1997
  %v1999 = vmul.f32 %v1997, %v1998
  %v2000 = vsub.f32 1.0, %v1999
  %v2001 = vmul.f32 %v1998, %v2000
  %v2002 = vadd.f32 %v1998, %v2001
  %vm2003 = vweird.f32 %v1997
  %vm2004 = vweird.f32 %v1998
  %vm2005 = vmor %vm2003, %vm2004
  %v2006 = vsel %vm2005, %v1998, %v2002
  %v2007 = vand.u32 2147483647, %v1997
  %vm2008 = vcmp.eq.f32.partialorder %v2007, 8.507059e+37
  %v2009 = vand.u32 %v1997, 2147483648
  %v2010 = vor.u32 1.1754944e-38, %v2009
  %v2011 = vsel %vm2008, %v2010, %v2006
  %v2012 = vmul.f32 1.0, %v2011
  %v2013 = vxor.u32 %v1991, 2147483648
  %v2014 = vmul.f32 %v2013, 1.442695
  %v2015 = vpow.pop %v2014
  %v2016 = vadd.f32 %v2015, 1.0
  %v2017 = vrcp.pop %v2016
  %v2018 = vmul.f32 %v2016, %v2017
  %v2019 = vsub.f32 1.0, %v2018
  %v2020 = vmul.f32 %v2017, %v2019
  %v2021 = vadd.f32 %v2017, %v2020
  %vm2022 = vweird.f32 %v2016
  %vm2023 = vweird.f32 %v2017
  %vm2024 = vmor %vm2022, %vm2023
  %v2025 = vsel %vm2024, %v2017, %v2021
  %v2026 = vand.u32 2147483647, %v2016
  %vm2027 = vcmp.eq.f32.partialorder %v2026, 8.507059e+37
  %v2028 = vand.u32 %v2016, 2147483648
  %v2029 = vor.u32 1.1754944e-38, %v2028
  %v2030 = vsel %vm2027, %v2029, %v2025
  %v2031 = vmul.f32 1.0, %v2030
  %v2032 = vtanh.pop %v1992
  %v2033 = vxor.u32 %v1993, 2147483648
  %v2034 = vmul.f32 %v2033, 1.442695
  %v2035 = vpow.pop %v2034
  %v2036 = vadd.f32 %v2035, 1.0
  %v2037 = vrcp.pop %v2036
  %v2038 = vmul.f32 %v2036, %v2037
  %v2039 = vsub.f32 1.0, %v2038
  %v2040 = vmul.f32 %v2037, %v2039
  %v2041 = vadd.f32 %v2037, %v2040
  %vm2042 = vweird.f32 %v2036
  %vm2043 = vweird.f32 %v2037
  %vm2044 = vmor %vm2042, %vm2043
  %v2045 = vsel %vm2044, %v2037, %v2041
  %v2046 = vand.u32 2147483647, %v2036
  %vm2047 = vcmp.eq.f32.partialorder %v2046, 8.507059e+37
  %v2048 = vand.u32 %v2036, 2147483648
  %v2049 = vor.u32 1.1754944e-38, %v2048
  %v2050 = vsel %vm2047, %v2049, %v2045
  %v2051 = vmul.f32 1.0, %v2050
  %v2052 = vld [vmem:[#allocation4] sm:$0xff]
  %v2053 = vmul.f32 %v2031, %v2052
  %v2054 = vmul.f32 %v2012, %v2032
  %v2055 = vadd.f32 %v2053, %v2054
  %v2056 = vtanh.pop %v2055
  %v2057 = vmul.f32 %v2051, %v2056
  %2058 = vst [vmem:[#allocation4] sm:$0xff] %v2055
  %2059 = vst [vmem:[#allocation3] sm:$0xff] %v2057
  // Predicated region
  $region30: #{lstm_lm_forward.1} parent=0 // pred_check
    %p2060 = pneg %p23
  $region31: #{lstm_lm_forward.1} parent=0 // pred_check_branch
    %2062 = sbr.rel (%p2060) target = $region33
  $region32: #{lstm_lm_forward.1} parent=0 // pred_region
    %v2063 = vld [vmem:[#allocation3] sm:$0xff]
    %v2064 = vld [vmem:[%s4] sm:$0xff]
    %v2065 = vld [vmem:[%s4 + $0x8] sm:$0xff]
    %v2066 = vld [vmem:[%s4 + $0x10] sm:$0xff]
    %v2067 = vld [vmem:[%s4 + $0x18] sm:$0xff]
    %v2068 = vld [vmem:[%s4 + $0x20] sm:$0xff]
    %v2069 = vld [vmem:[%s4 + $0x28] sm:$0xff]
    %v2070 = vld [vmem:[%s4 + $0x30] sm:$0xff]
    %v2071 = vld [vmem:[%s4 + $0x38] sm:$0xff]
    %v2072 = vld [vmem:[%s4 + $0x40] sm:$0xff]
    %v2073 = vld [vmem:[%s4 + $0x48] sm:$0xff]
    %v2074 = vld [vmem:[%s4 + $0x50] sm:$0xff]
    %v2075 = vld [vmem:[%s4 + $0x58] sm:$0xff]
    %v2076 = vld [vmem:[%s4 + $0x60] sm:$0xff]
    %v2077 = vld [vmem:[%s4 + $0x68] sm:$0xff]
    %v2078 = vld [vmem:[%s4 + $0x70] sm:$0xff]
    %v2079 = vld [vmem:[%s4 + $0x78] sm:$0xff]
    %v2080 = vld [vmem:[%s5] sm:$0x1]
    %v2082 = vperm.slane %v2080, 0
    %2084 = vmatpush.msra.mxu0 %v2079
    %2085 = vmatpush.msra.mxu0 %v2078
    %2086 = vmatpush.msra.mxu0 %v2077
    %2087 = vmatpush.msra.mxu0 %v2076
    %2088 = vmatpush.msra.mxu0 %v2075
    %2089 = vmatpush.msra.mxu0 %v2074
    %2090 = vmatpush.msra.mxu0 %v2073
    %2091 = vmatpush.msra.mxu0 %v2072
    %2092 = vmatpush.msra.mxu0 %v2071
    %2093 = vmatpush.msra.mxu0 %v2070
    %2094 = vmatpush.msra.mxu0 %v2069
    %2095 = vmatpush.msra.mxu0 %v2068
    %2096 = vmatpush.msra.mxu0 %v2067
    %2097 = vmatpush.msra.mxu0 %v2066
    %2098 = vmatpush.msra.mxu0 %v2065
    %2099 = vmatpush.msra.mxu0 %v2064
    %2100 = vmatmul.f32.gmra.mxu0 %v2063
    %v2101 = vpop.f32.mrf.mxu0
    %v2102 = vadd.f32 %v2082, %v2101
    %2103 = vdwg.mxu0
    %2104 = vmax.xlane.f32.xlu0 %v2102
    %v2105 = vpop.xlane.xlu0 %2104
    %v2106 = vsub.f32 %v2102, %v2105
    %v2107 = vmul.f32 %v2106, 1.442695
    %v2108 = vpow.pop %v2107
    %2109 = vadd.xlane.f32.xlu0 %v2108
    %v2110 = vpop.xlane.xlu0 %2109
    %v2111 = vlog2.pop %v2110
    %v2112 = vmul.f32 %v2111, 0.6931472
    %v2113 = vsub.f32 %v2106, %v2112
    %2114 = vst [vmem:[%s6] sm:$0xff] %v2113
  $region33: #{lstm_lm_forward.1} parent=0 // pred_fallthru
    _
  // Predicated region
  $region34: #{lstm_lm_forward.1} parent=0 // pred_check
    _
  $region35: #{lstm_lm_forward.1} parent=0 // pred_check_branch
    %2116 = sbr.rel (0) target = $region37
  $region36: #{lstm_lm_forward.1} parent=0 // pred_region
    _
  $region37: #{lstm_lm_forward.1} parent=0 // pred_fallthru
    _
  // Predicated region
  $region38: #{lstm_lm_forward.1} parent=0 // pred_check
    _
  $region39: #{lstm_lm_forward.1} parent=0 // pred_check_branch
    %2118 = sbr.rel (0) target = $region41
  $region40: #{lstm_lm_forward.1} parent=0 // pred_region
    _
  $region41: #{lstm_lm_forward.1} parent=0 // pred_fallthru
    _

</llo_original>
